<compile_context>
chip_gen: v5e
topology: v5e:2x2
jax: 0.10.0
libtpu: 0.0.40
codegen_flags: <defaults>
</compile_context>

<pallas_src>
import functools

import jax
import jax.numpy as jnp
from jax.experimental import pallas as pl
from jax.experimental.pallas import tpu as pltpu


# ----------------------------------------------------------------------------
# Helpers
# ----------------------------------------------------------------------------
def _pick_tile(n, cands=(512, 256, 128)):
    for t in cands:
        if n % t == 0:
            return t
    return n


def fold_conv_bn(w, b, gamma, beta, mean, var, eps=1e-5):
    """Fold eval-mode BN into a channels-first conv weight (Cout, K) + bias."""
    scale = gamma / jnp.sqrt(var + eps)
    return w * scale[:, None], b * scale + beta - mean * scale


def im2col_cf(x_nchw, dil):
    """3x3 dilated conv patches (padding == dilation), channels-first.
    Returns (N, 9*C, H*W); tap-major channel ordering (matches weight layout)."""
    N, C, H, W = x_nchw.shape
    xp = jnp.pad(x_nchw, ((0, 0), (0, 0), (dil, dil), (dil, dil)))
    cols = []
    for ky in range(3):
        for kx in range(3):
            cols.append(xp[:, :, ky * dil:ky * dil + H, kx * dil:kx * dil + W])
    return jnp.concatenate(cols, axis=1).reshape(N, 9 * C, H * W)


def dft_kron_matrices(h, w):
    """2D DFT as one (h*w, h*w) complex matrix over the row-major flattened
    spatial axis:  fft2(X).reshape(-1) == X.reshape(-1) @ K   (K symmetric)."""
    def f(n):
        k = jnp.arange(n, dtype=jnp.float32)
        ang = -2.0 * jnp.pi * jnp.outer(k, k) / n
        return jnp.cos(ang), jnp.sin(ang)
    fhr, fhi = f(h)
    fwr, fwi = f(w)
    kr = jnp.kron(fhr, fwr) - jnp.kron(fhi, fwi)
    ki = jnp.kron(fhr, fwi) + jnp.kron(fhi, fwr)
    return kr, ki


# ----------------------------------------------------------------------------
# Kernel 1: channels-first conv (BN already folded) + bias + activation.
# Serves every conv (1x1 directly, 3x3 via im2col).  Output lanes = spatial.
# ----------------------------------------------------------------------------
def _conv_cf_kernel(x_ref, w_ref, b_ref, o_ref, *, act):
    y = jnp.dot(w_ref[...], x_ref[0], preferred_element_type=jnp.float32)
    y = y + b_ref[...]
    if act == "relu":
        y = jnp.maximum(y, 0.0)
    elif act == "relu_sigmoid":
        y = jax.nn.sigmoid(jnp.maximum(y, 0.0))
    o_ref[0] = y.astype(o_ref.dtype)


def conv_cf(x_nkm, w, b, act):
    """x: (N, K, M) ; w: (Cout, K) [BN folded] ; b: (Cout,) -> (N, Cout, M) f32."""
    N, K, M = x_nkm.shape
    Cout = w.shape[0]
    Mp = int(pl.cdiv(M, 128)) * 128
    x = x_nkm.astype(jnp.bfloat16)
    if Mp != M:
        x = jnp.pad(x, ((0, 0), (0, 0), (0, Mp - M)))
    Mt = _pick_tile(Mp)
    out = pl.pallas_call(
        functools.partial(_conv_cf_kernel, act=act),
        out_shape=jax.ShapeDtypeStruct((N, Cout, Mp), jnp.float32),
        grid_spec=pltpu.PrefetchScalarGridSpec(
            num_scalar_prefetch=0,
            grid=(N, Mp // Mt),
            in_specs=[
                pl.BlockSpec((1, K, Mt), lambda n, m: (n, 0, m)),
                pl.BlockSpec((Cout, K), lambda n, m: (0, 0)),
                pl.BlockSpec((Cout, 1), lambda n, m: (0, 0)),
            ],
            out_specs=pl.BlockSpec((1, Cout, Mt), lambda n, m: (n, 0, m)),
        ),
        compiler_params=pltpu.CompilerParams(
            dimension_semantics=("parallel", "parallel")),
    )(x, w.astype(jnp.bfloat16), b.reshape(Cout, 1).astype(jnp.float32))
    return out if Mp == M else out[:, :, :M]


# ----------------------------------------------------------------------------
# Kernel 2: forward 2D DFT over the flattened spatial axis (all N*C maps
# batched into one lane-dense matmul pair).
# ----------------------------------------------------------------------------
def _dft2_fwd_kernel(x_ref, kr_ref, ki_ref, zr_ref, zi_ref):
    x = x_ref[...]
    zr_ref[...] = jnp.dot(x, kr_ref[...], preferred_element_type=jnp.float32)
    zi_ref[...] = jnp.dot(x, ki_ref[...], preferred_element_type=jnp.float32)


def dft2_fwd(x_bm, kr, ki):
    B, M = x_bm.shape
    Bp = int(pl.cdiv(B, 8)) * 8
    Mp = int(pl.cdiv(M, 128)) * 128
    x = x_bm.astype(jnp.bfloat16)
    if (Bp, Mp) != (B, M):
        x = jnp.pad(x, ((0, Bp - B), (0, Mp - M)))
    krp, kip = kr.astype(jnp.bfloat16), ki.astype(jnp.bfloat16)
    if Mp != M:
        krp = jnp.pad(krp, ((0, Mp - M), (0, Mp - M)))
        kip = jnp.pad(kip, ((0, Mp - M), (0, Mp - M)))
    Bt = _pick_tile(Bp, (256, 128, 64, 32, 16, 8))
    Mt = _pick_tile(Mp)
    zr, zi = pl.pallas_call(
        _dft2_fwd_kernel,
        out_shape=(jax.ShapeDtypeStruct((Bp, Mp), jnp.float32),
                   jax.ShapeDtypeStruct((Bp, Mp), jnp.float32)),
        grid_spec=pltpu.PrefetchScalarGridSpec(
            num_scalar_prefetch=0,
            grid=(Bp // Bt, Mp // Mt),
            in_specs=[
                pl.BlockSpec((Bt, Mp), lambda r, c: (r, 0)),
                pl.BlockSpec((Mp, Mt), lambda r, c: (0, c)),
                pl.BlockSpec((Mp, Mt), lambda r, c: (0, c)),
            ],
            out_specs=[pl.BlockSpec((Bt, Mt), lambda r, c: (r, c)),
                       pl.BlockSpec((Bt, Mt), lambda r, c: (r, c))],
        ),
        compiler_params=pltpu.CompilerParams(
            dimension_semantics=("parallel", "parallel")),
    )(x, krp, kip)
    if (Bp, Mp) != (B, M):
        zr, zi = zr[:B, :M], zi[:B, :M]
    return zr, zi


# ----------------------------------------------------------------------------
# Kernel 3: spectral modulation + inverse 2D DFT + magnitude:
#           |ifft2(wmap * (Zr + i*Zi))|,  inverse DFT matrix = conj(K)/(H*W).
# ----------------------------------------------------------------------------
def _dft2_inv_abs_kernel(w_ref, zr_ref, zi_ref, gr_ref, gi_ref, o_ref):
    wm = w_ref[...]
    u = (wm * zr_ref[...]).astype(jnp.bfloat16)
    v = (wm * zi_ref[...]).astype(jnp.bfloat16)
    gr, gi = gr_ref[...], gi_ref[...]
    re = (jnp.dot(u, gr, preferred_element_type=jnp.float32)
          - jnp.dot(v, gi, preferred_element_type=jnp.float32))
    im = (jnp.dot(u, gi, preferred_element_type=jnp.float32)
          + jnp.dot(v, gr, preferred_element_type=jnp.float32))
    o_ref[...] = jnp.sqrt(re * re + im * im)


def dft2_inv_abs(w_bm, zr_bm, zi_bm, gr, gi):
    B, M = w_bm.shape
    Bp = int(pl.cdiv(B, 8)) * 8
    Mp = int(pl.cdiv(M, 128)) * 128

    def padbm(a):
        return a if (Bp, Mp) == (B, M) else jnp.pad(a, ((0, Bp - B), (0, Mp - M)))

    grp, gip = gr.astype(jnp.bfloat16), gi.astype(jnp.bfloat16)
    if Mp != M:
        grp = jnp.pad(grp, ((0, Mp - M), (0, Mp - M)))
        gip = jnp.pad(gip, ((0, Mp - M), (0, Mp - M)))
    Bt = _pick_tile(Bp, (256, 128, 64, 32, 16, 8))
    Mt = _pick_tile(Mp)
    out = pl.pallas_call(
        _dft2_inv_abs_kernel,
        out_shape=jax.ShapeDtypeStruct((Bp, Mp), jnp.float32),
        grid_spec=pltpu.PrefetchScalarGridSpec(
            num_scalar_prefetch=0,
            grid=(Bp // Bt, Mp // Mt),
            in_specs=[
                pl.BlockSpec((Bt, Mp), lambda r, c: (r, 0)),
                pl.BlockSpec((Bt, Mp), lambda r, c: (r, 0)),
                pl.BlockSpec((Bt, Mp), lambda r, c: (r, 0)),
                pl.BlockSpec((Mp, Mt), lambda r, c: (0, c)),
                pl.BlockSpec((Mp, Mt), lambda r, c: (0, c)),
            ],
            out_specs=pl.BlockSpec((Bt, Mt), lambda r, c: (r, c)),
        ),
        compiler_params=pltpu.CompilerParams(
            dimension_semantics=("parallel", "parallel")),
    )(padbm(w_bm), padbm(zr_bm), padbm(zi_bm), grp, gip)
    return out if (Bp, Mp) == (B, M) else out[:B, :M]


# ----------------------------------------------------------------------------
# Kernel 4: fused ChannelAttention + 1x1 "out" conv + residual add.
#   a = sigmoid(fc2(relu(fc1(avgpool(cat)))));  out = Wout @ (cat*a) + b + res
# ----------------------------------------------------------------------------
def _attn_out_kernel(cat_ref, res_ref, f1w_ref, f1b_ref, f2w_ref, f2b_ref,
                     ow_ref, ob_ref, o_ref, *, true_m):
    x = cat_ref[0]                                              # (2C, Mp) f32
    pooled = jnp.sum(x, axis=1, keepdims=True) * (1.0 / true_m)  # (2C, 1)
    a = jnp.dot(f1w_ref[...], pooled,
                preferred_element_type=jnp.float32) + f1b_ref[...]
    a = jnp.maximum(a, 0.0)                                     # (Cq, 1)
    a = jnp.dot(f2w_ref[...], a,
                preferred_element_type=jnp.float32) + f2b_ref[...]
    a = jax.nn.sigmoid(a)                                       # (2C, 1)
    xs = (x * a).astype(jnp.bfloat16)                           # (2C, Mp)
    y = jnp.dot(ow_ref[...], xs,
                preferred_element_type=jnp.float32) + ob_ref[...]
    o_ref[0] = (y + res_ref[0]).astype(o_ref.dtype)


def attn_out(cat_ncm, res_ncm, f1w, f1b, f2w, f2b, ow, ob):
    N, C2, M = cat_ncm.shape
    Cout = res_ncm.shape[1]
    Cq = f1w.shape[0]
    Mp = int(pl.cdiv(M, 128)) * 128
    cat = cat_ncm if Mp == M else jnp.pad(cat_ncm, ((0, 0), (0, 0), (0, Mp - M)))
    res = res_ncm if Mp == M else jnp.pad(res_ncm, ((0, 0), (0, 0), (0, Mp - M)))
    out = pl.pallas_call(
        functools.partial(_attn_out_kernel, true_m=float(M)),
        out_shape=jax.ShapeDtypeStruct((N, Cout, Mp), jnp.float32),
        grid_spec=pltpu.PrefetchScalarGridSpec(
            num_scalar_prefetch=0, grid=(N,),
            in_specs=[
                pl.BlockSpec((1, C2, Mp), lambda n: (n, 0, 0)),
                pl.BlockSpec((1, Cout, Mp), lambda n: (n, 0, 0)),
                pl.BlockSpec((Cq, C2), lambda n: (0, 0)),
                pl.BlockSpec((Cq, 1), lambda n: (0, 0)),
                pl.BlockSpec((C2, Cq), lambda n: (0, 0)),
                pl.BlockSpec((C2, 1), lambda n: (0, 0)),
                pl.BlockSpec((Cout, C2), lambda n: (0, 0)),
                pl.BlockSpec((Cout, 1), lambda n: (0, 0)),
            ],
            out_specs=pl.BlockSpec((1, Cout, Mp), lambda n: (n, 0, 0)),
        ),
        compiler_params=pltpu.CompilerParams(dimension_semantics=("parallel",)),
    )(cat, res,
      f1w.astype(jnp.float32), f1b.reshape(Cq, 1).astype(jnp.float32),
      f2w.astype(jnp.float32), f2b.reshape(C2, 1).astype(jnp.float32),
      ow.astype(jnp.bfloat16), ob.reshape(Cout, 1).astype(jnp.float32))
    return out if Mp == M else out[:, :, :M]


# ----------------------------------------------------------------------------
# Parameters (channels-first weight layout) and the full DFHGB forward.
# ----------------------------------------------------------------------------
def make_params(key, C, Cout):
    ks = iter(jax.random.split(key, 20))

    def w(k, shape, s=0.1):
        return s * jax.random.normal(k, shape, jnp.float32)

    def bn(c):  # eval-mode BN with default init
        return dict(gamma=jnp.ones((c,)), beta=jnp.zeros((c,)),
                    mean=jnp.zeros((c,)), var=jnp.ones((c,)))

    Cq = (2 * C) // 4
    return {
        "conv1_w": w(next(ks), (C, C)),      "conv1_b": w(next(ks), (C,), 0.05),
        "conv1_bn": bn(C),
        "d3_w": w(next(ks), (C, 9 * C)),     "d3_b": w(next(ks), (C,), 0.05),
        "d3_bn": bn(C),
        "d5_w": w(next(ks), (C, 9 * C)),     "d5_b": w(next(ks), (C,), 0.05),
        "d5_bn": bn(C),
        "wgt_w": w(next(ks), (C, 9 * C)),    "wgt_b": w(next(ks), (C,), 0.05),
        "wgt_bn": bn(C),
        "res_w": w(next(ks), (Cout, C)),     "res_b": w(next(ks), (Cout,), 0.05),
        "res_bn": bn(Cout),
        "out_w": w(next(ks), (Cout, 2 * C)), "out_b": w(next(ks), (Cout,), 0.05),
        "fc1_w": w(next(ks), (Cq, 2 * C)),   "fc1_b": w(next(ks), (Cq,), 0.05),
        "fc2_w": w(next(ks), (2 * C, Cq)),   "fc2_b": w(next(ks), (2 * C,), 0.05),
    }


def dfhgb_forward(x_nchw, params):
    p = params
    N, C, H, W = x_nchw.shape
    M = H * W
    x_f = x_nchw.reshape(N, C, M)            # channels-first, flat spatial

    # Fold eval-mode BN into conv weights (glue-time, zero in-kernel cost).
    c1w, c1b = fold_conv_bn(p["conv1_w"], p["conv1_b"], **p["conv1_bn"])
    d3w, d3b = fold_conv_bn(p["d3_w"], p["d3_b"], **p["d3_bn"])
    d5w, d5b = fold_conv_bn(p["d5_w"], p["d5_b"], **p["d5_bn"])
    wgw, wgb = fold_conv_bn(p["wgt_w"], p["wgt_b"], **p["wgt_bn"])
    rsw, rsb = fold_conv_bn(p["res_w"], p["res_b"], **p["res_bn"])

    # conv1: 1x1 + BN + ReLU
    f1_in = conv_cf(x_f, c1w, c1b, "relu")
    # Dconv3 / Dconv5: 3x3, dilation 3 / 5 (padding == dilation), + BN + ReLU
    t = conv_cf(im2col_cf(f1_in.reshape(N, C, H, W).astype(jnp.bfloat16), 3),
                d3w, d3b, "relu")
    f1_s = conv_cf(im2col_cf(t.reshape(N, C, H, W).astype(jnp.bfloat16), 5),
                   d5w, d5b, "relu")

    # fft2(F1_s): one lane-dense Kronecker-DFT matmul over all N*C maps.
    kr, ki = dft_kron_matrices(H, W)
    zr, zi = dft2_fwd(f1_s.reshape(N * C, M), kr, ki)

    # self.weight on Re(fft2(F1_s)): 3x3 conv (pad=1) + BN + ReLU + Sigmoid
    wmap = conv_cf(im2col_cf(zr.reshape(N, C, H, W).astype(jnp.bfloat16), 1),
                   wgw, wgb, "relu_sigmoid")

    # F1_f = |ifft2(wmap * fft2(F1_s))| ; inverse DFT = conj(K)/(H*W)
    f1_f = dft2_inv_abs(wmap.reshape(N * C, M), zr, zi,
                        kr / M, -ki / M).reshape(N, C, M)

    # residual branch: 1x1 conv + BN (no activation)
    res = conv_cf(x_f, rsw, rsb, "none")

    # cat([F1_f, F1_s]) -> ChannelAttention -> 1x1 out conv -> + residual
    cat = jnp.concatenate([f1_f, f1_s], axis=1)          # (N, 2C, M)
    out = attn_out(cat, res, p["fc1_w"], p["fc1_b"], p["fc2_w"], p["fc2_b"],
                   p["out_w"], p["out_b"])
    return out.reshape(N, out.shape[1], H, W)            # NCHW, no transposes


if __name__ == "__main__":
    key = jax.random.PRNGKey(0)
    kx, kp = jax.random.split(key)
    N, C, Cout, H, W = 2, 8, 8, 16, 16
    x = jax.random.normal(kx, (N, C, H, W), jnp.float32)
    params = make_params(kp, C, Cout)

    y = jax.jit(dfhgb_forward)(x, params)
    jax.block_until_ready(y)
    assert y.shape == (N, Cout, H, W)
    assert bool(jnp.all(jnp.isfinite(y)))
    print("KERNEL_OK")
</pallas_src>

<mosaic_0001>
module attributes {stable_mosaic.version = 11 : i64} {
  func.func @_conv_cf_kernel(%arg0: i32, %arg1: i32, %arg2: memref<1x8x256xbf16, #tpu.memory_space<vmem>>, %arg3: memref<8x8xbf16, #tpu.memory_space<vmem>>, %arg4: memref<8x1xf32, #tpu.memory_space<vmem>>, %arg5: memref<1x8x256xf32, #tpu.memory_space<vmem>>) attributes {dimension_semantics = [#tpu.dimension_semantics<parallel>, #tpu.dimension_semantics<parallel>], iteration_bounds = array<i64: 2, 1>, scalar_prefetch = 0 : i64, scratch_operands = 0 : i64, tpu.core_type = #tpu.core_type<tc>, window_params = [{transform_indices = @transform_0, window_bounds = array<i64: 1, 8, 256>}, {pipeline_mode = #tpu.pipeline_mode<synchronous>, transform_indices = @transform_1, window_bounds = array<i64: 8, 8>}, {pipeline_mode = #tpu.pipeline_mode<synchronous>, transform_indices = @transform_2, window_bounds = array<i64: 8, 1>}, {transform_indices = @transform_3, window_bounds = array<i64: 1, 8, 256>}]} {
    %c0 = arith.constant 0 : index
    %c0_0 = arith.constant 0 : index
    %0 = vector.load %arg3[%c0, %c0_0] : memref<8x8xbf16, #tpu.memory_space<vmem>>, vector<8x8xbf16>
    %c0_1 = arith.constant 0 : index
    %c0_2 = arith.constant 0 : index
    %c0_3 = arith.constant 0 : index
    %1 = vector.load %arg2[%c0_1, %c0_2, %c0_3] : memref<1x8x256xbf16, #tpu.memory_space<vmem>>, vector<1x8x256xbf16>
    %2 = vector.shape_cast %1 : vector<1x8x256xbf16> to vector<8x256xbf16>
    %cst = arith.constant dense<0.000000e+00> : vector<8x256xf32>
    %3 = tpu.matmul %0, %2, %cst {dimension_numbers = #tpu.dot_dimension_numbers<[1], [0], [0], [1], [0, 0, 1, 1], [], []>} : vector<8x8xbf16>, vector<8x256xbf16>, vector<8x256xf32> -> vector<8x256xf32>
    %c0_4 = arith.constant 0 : index
    %c0_5 = arith.constant 0 : index
    %4 = vector.load %arg4[%c0_4, %c0_5] : memref<8x1xf32, #tpu.memory_space<vmem>>, vector<8x1xf32>
    %5 = vector.broadcast %4 : vector<8x1xf32> to vector<8x256xf32>
    %6 = arith.addf %3, %5 : vector<8x256xf32>
    %cst_6 = arith.constant 0.000000e+00 : f32
    %7 = vector.broadcast %cst_6 : f32 to vector<8x256xf32>
    %8 = arith.maximumf %6, %7 : vector<8x256xf32>
    %c0_7 = arith.constant 0 : index
    %c0_8 = arith.constant 0 : index
    %c0_9 = arith.constant 0 : index
    %9 = vector.load %arg5[%c0_7, %c0_8, %c0_9] : memref<1x8x256xf32, #tpu.memory_space<vmem>>, vector<1x8x256xf32>
    %10 = vector.shape_cast %9 : vector<1x8x256xf32> to vector<8x256xf32>
    %11 = vector.shape_cast %8 : vector<8x256xf32> to vector<1x8x256xf32>
    tpu.vector_store %arg5[%c0_7, %c0_8, %c0_9], %11 {strides = array<i32>} : memref<1x8x256xf32, #tpu.memory_space<vmem>>, vector<1x8x256xf32>,
    return
  }
  func.func @transform_0(%arg0: i32, %arg1: i32) -> (i32, i32, i32) {
    %c0_i32 = arith.constant 0 : i32
    %c0_i32_0 = arith.constant 0 : i32
    return %arg0, %c0_i32, %arg1 : i32, i32, i32
  }
  func.func @transform_1(%arg0: i32, %arg1: i32) -> (i32, i32) {
    %c0_i32 = arith.constant 0 : i32
    %c0_i32_0 = arith.constant 0 : i32
    %c0_i32_1 = arith.constant 0 : i32
    return %c0_i32, %c0_i32_0 : i32, i32
  }
  func.func @transform_2(%arg0: i32, %arg1: i32) -> (i32, i32) {
    %c0_i32 = arith.constant 0 : i32
    %c0_i32_0 = arith.constant 0 : i32
    %c0_i32_1 = arith.constant 0 : i32
    return %c0_i32, %c0_i32_0 : i32, i32
  }
  func.func @transform_3(%arg0: i32, %arg1: i32) -> (i32, i32, i32) {
    %c0_i32 = arith.constant 0 : i32
    %c0_i32_0 = arith.constant 0 : i32
    return %arg0, %c0_i32, %arg1 : i32, i32, i32
  }
}

module attributes {stable_mosaic.version = 11 : i64} {
  func.func @_conv_cf_kernel(%arg0: i32, %arg1: i32, %arg2: memref<1x72x256xbf16, #tpu.memory_space<vmem>>, %arg3: memref<8x72xbf16, #tpu.memory_space<vmem>>, %arg4: memref<8x1xf32, #tpu.memory_space<vmem>>, %arg5: memref<1x8x256xf32, #tpu.memory_space<vmem>>) attributes {dimension_semantics = [#tpu.dimension_semantics<parallel>, #tpu.dimension_semantics<parallel>], iteration_bounds = array<i64: 2, 1>, scalar_prefetch = 0 : i64, scratch_operands = 0 : i64, tpu.core_type = #tpu.core_type<tc>, window_params = [{transform_indices = @transform_0, window_bounds = array<i64: 1, 72, 256>}, {pipeline_mode = #tpu.pipeline_mode<synchronous>, transform_indices = @transform_1, window_bounds = array<i64: 8, 72>}, {pipeline_mode = #tpu.pipeline_mode<synchronous>, transform_indices = @transform_2, window_bounds = array<i64: 8, 1>}, {transform_indices = @transform_3, window_bounds = array<i64: 1, 8, 256>}]} {
    %c0 = arith.constant 0 : index
    %c0_0 = arith.constant 0 : index
    %0 = vector.load %arg3[%c0, %c0_0] : memref<8x72xbf16, #tpu.memory_space<vmem>>, vector<8x72xbf16>
    %c0_1 = arith.constant 0 : index
    %c0_2 = arith.constant 0 : index
    %c0_3 = arith.constant 0 : index
    %1 = vector.load %arg2[%c0_1, %c0_2, %c0_3] : memref<1x72x256xbf16, #tpu.memory_space<vmem>>, vector<1x72x256xbf16>
    %2 = vector.shape_cast %1 : vector<1x72x256xbf16> to vector<72x256xbf16>
    %cst = arith.constant dense<0.000000e+00> : vector<8x256xf32>
    %3 = tpu.matmul %0, %2, %cst {dimension_numbers = #tpu.dot_dimension_numbers<[1], [0], [0], [1], [0, 0, 1, 1], [], []>} : vector<8x72xbf16>, vector<72x256xbf16>, vector<8x256xf32> -> vector<8x256xf32>
    %c0_4 = arith.constant 0 : index
    %c0_5 = arith.constant 0 : index
    %4 = vector.load %arg4[%c0_4, %c0_5] : memref<8x1xf32, #tpu.memory_space<vmem>>, vector<8x1xf32>
    %5 = vector.broadcast %4 : vector<8x1xf32> to vector<8x256xf32>
    %6 = arith.addf %3, %5 : vector<8x256xf32>
    %cst_6 = arith.constant 0.000000e+00 : f32
    %7 = vector.broadcast %cst_6 : f32 to vector<8x256xf32>
    %8 = arith.maximumf %6, %7 : vector<8x256xf32>
    %c0_7 = arith.constant 0 : index
    %c0_8 = arith.constant 0 : index
    %c0_9 = arith.constant 0 : index
    %9 = vector.load %arg5[%c0_7, %c0_8, %c0_9] : memref<1x8x256xf32, #tpu.memory_space<vmem>>, vector<1x8x256xf32>
    %10 = vector.shape_cast %9 : vector<1x8x256xf32> to vector<8x256xf32>
    %11 = vector.shape_cast %8 : vector<8x256xf32> to vector<1x8x256xf32>
    tpu.vector_store %arg5[%c0_7, %c0_8, %c0_9], %11 {strides = array<i32>} : memref<1x8x256xf32, #tpu.memory_space<vmem>>, vector<1x8x256xf32>,
    return
  }
  func.func @transform_0(%arg0: i32, %arg1: i32) -> (i32, i32, i32) {
    %c0_i32 = arith.constant 0 : i32
    %c0_i32_0 = arith.constant 0 : i32
    return %arg0, %c0_i32, %arg1 : i32, i32, i32
  }
  func.func @transform_1(%arg0: i32, %arg1: i32) -> (i32, i32) {
    %c0_i32 = arith.constant 0 : i32
    %c0_i32_0 = arith.constant 0 : i32
    %c0_i32_1 = arith.constant 0 : i32
    return %c0_i32, %c0_i32_0 : i32, i32
  }
  func.func @transform_2(%arg0: i32, %arg1: i32) -> (i32, i32) {
    %c0_i32 = arith.constant 0 : i32
    %c0_i32_0 = arith.constant 0 : i32
    %c0_i32_1 = arith.constant 0 : i32
    return %c0_i32, %c0_i32_0 : i32, i32
  }
  func.func @transform_3(%arg0: i32, %arg1: i32) -> (i32, i32, i32) {
    %c0_i32 = arith.constant 0 : i32
    %c0_i32_0 = arith.constant 0 : i32
    return %arg0, %c0_i32, %arg1 : i32, i32, i32
  }
}

module attributes {stable_mosaic.version = 11 : i64} {
  func.func @_dft2_fwd_kernel(%arg0: i32, %arg1: i32, %arg2: memref<16x256xbf16, #tpu.memory_space<vmem>>, %arg3: memref<256x256xbf16, #tpu.memory_space<vmem>>, %arg4: memref<256x256xbf16, #tpu.memory_space<vmem>>, %arg5: memref<16x256xf32, #tpu.memory_space<vmem>>, %arg6: memref<16x256xf32, #tpu.memory_space<vmem>>) attributes {dimension_semantics = [#tpu.dimension_semantics<parallel>, #tpu.dimension_semantics<parallel>], iteration_bounds = array<i64: 1, 1>, scalar_prefetch = 0 : i64, scratch_operands = 0 : i64, tpu.core_type = #tpu.core_type<tc>, window_params = [{transform_indices = @transform_0, window_bounds = array<i64: 16, 256>}, {transform_indices = @transform_1, window_bounds = array<i64: 256, 256>}, {transform_indices = @transform_2, window_bounds = array<i64: 256, 256>}, {transform_indices = @transform_3, window_bounds = array<i64: 16, 256>}, {transform_indices = @transform_4, window_bounds = array<i64: 16, 256>}]} {
    %c0 = arith.constant 0 : index
    %c0_0 = arith.constant 0 : index
    %0 = vector.load %arg2[%c0, %c0_0] : memref<16x256xbf16, #tpu.memory_space<vmem>>, vector<16x256xbf16>
    %c0_1 = arith.constant 0 : index
    %c0_2 = arith.constant 0 : index
    %1 = vector.load %arg3[%c0_1, %c0_2] : memref<256x256xbf16, #tpu.memory_space<vmem>>, vector<256x256xbf16>
    %cst = arith.constant dense<0.000000e+00> : vector<16x256xf32>
    %2 = tpu.matmul %0, %1, %cst {dimension_numbers = #tpu.dot_dimension_numbers<[1], [0], [0], [1], [0, 0, 1, 1], [], []>} : vector<16x256xbf16>, vector<256x256xbf16>, vector<16x256xf32> -> vector<16x256xf32>
    %c0_3 = arith.constant 0 : index
    %c0_4 = arith.constant 0 : index
    %3 = vector.load %arg5[%c0_3, %c0_4] : memref<16x256xf32, #tpu.memory_space<vmem>>, vector<16x256xf32>
    tpu.vector_store %arg5[%c0_3, %c0_4], %2 {strides = array<i32>} : memref<16x256xf32, #tpu.memory_space<vmem>>, vector<16x256xf32>,
    %c0_5 = arith.constant 0 : index
    %c0_6 = arith.constant 0 : index
    %4 = vector.load %arg4[%c0_5, %c0_6] : memref<256x256xbf16, #tpu.memory_space<vmem>>, vector<256x256xbf16>
    %cst_7 = arith.constant dense<0.000000e+00> : vector<16x256xf32>
    %5 = tpu.matmul %0, %4, %cst_7 {dimension_numbers = #tpu.dot_dimension_numbers<[1], [0], [0], [1], [0, 0, 1, 1], [], []>} : vector<16x256xbf16>, vector<256x256xbf16>, vector<16x256xf32> -> vector<16x256xf32>
    %c0_8 = arith.constant 0 : index
    %c0_9 = arith.constant 0 : index
    %6 = vector.load %arg6[%c0_8, %c0_9] : memref<16x256xf32, #tpu.memory_space<vmem>>, vector<16x256xf32>
    tpu.vector_store %arg6[%c0_8, %c0_9], %5 {strides = array<i32>} : memref<16x256xf32, #tpu.memory_space<vmem>>, vector<16x256xf32>,
    return
  }
  func.func @transform_0(%arg0: i32, %arg1: i32) -> (i32, i32) {
    %c0_i32 = arith.constant 0 : i32
    %c0_i32_0 = arith.constant 0 : i32
    return %arg0, %c0_i32 : i32, i32
  }
  func.func @transform_1(%arg0: i32, %arg1: i32) -> (i32, i32) {
    %c0_i32 = arith.constant 0 : i32
    %c0_i32_0 = arith.constant 0 : i32
    return %c0_i32, %arg1 : i32, i32
  }
  func.func @transform_2(%arg0: i32, %arg1: i32) -> (i32, i32) {
    %c0_i32 = arith.constant 0 : i32
    %c0_i32_0 = arith.constant 0 : i32
    return %c0_i32, %arg1 : i32, i32
  }
  func.func @transform_3(%arg0: i32, %arg1: i32) -> (i32, i32) {
    %c0_i32 = arith.constant 0 : i32
    return %arg0, %arg1 : i32, i32
  }
  func.func @transform_4(%arg0: i32, %arg1: i32) -> (i32, i32) {
    %c0_i32 = arith.constant 0 : i32
    return %arg0, %arg1 : i32, i32
  }
}

module attributes {stable_mosaic.version = 11 : i64} {
  func.func @_conv_cf_kernel(%arg0: i32, %arg1: i32, %arg2: memref<1x72x256xbf16, #tpu.memory_space<vmem>>, %arg3: memref<8x72xbf16, #tpu.memory_space<vmem>>, %arg4: memref<8x1xf32, #tpu.memory_space<vmem>>, %arg5: memref<1x8x256xf32, #tpu.memory_space<vmem>>) attributes {dimension_semantics = [#tpu.dimension_semantics<parallel>, #tpu.dimension_semantics<parallel>], iteration_bounds = array<i64: 2, 1>, scalar_prefetch = 0 : i64, scratch_operands = 0 : i64, tpu.core_type = #tpu.core_type<tc>, window_params = [{transform_indices = @transform_0, window_bounds = array<i64: 1, 72, 256>}, {pipeline_mode = #tpu.pipeline_mode<synchronous>, transform_indices = @transform_1, window_bounds = array<i64: 8, 72>}, {pipeline_mode = #tpu.pipeline_mode<synchronous>, transform_indices = @transform_2, window_bounds = array<i64: 8, 1>}, {transform_indices = @transform_3, window_bounds = array<i64: 1, 8, 256>}]} {
    %c0 = arith.constant 0 : index
    %c0_0 = arith.constant 0 : index
    %0 = vector.load %arg3[%c0, %c0_0] : memref<8x72xbf16, #tpu.memory_space<vmem>>, vector<8x72xbf16>
    %c0_1 = arith.constant 0 : index
    %c0_2 = arith.constant 0 : index
    %c0_3 = arith.constant 0 : index
    %1 = vector.load %arg2[%c0_1, %c0_2, %c0_3] : memref<1x72x256xbf16, #tpu.memory_space<vmem>>, vector<1x72x256xbf16>
    %2 = vector.shape_cast %1 : vector<1x72x256xbf16> to vector<72x256xbf16>
    %cst = arith.constant dense<0.000000e+00> : vector<8x256xf32>
    %3 = tpu.matmul %0, %2, %cst {dimension_numbers = #tpu.dot_dimension_numbers<[1], [0], [0], [1], [0, 0, 1, 1], [], []>} : vector<8x72xbf16>, vector<72x256xbf16>, vector<8x256xf32> -> vector<8x256xf32>
    %c0_4 = arith.constant 0 : index
    %c0_5 = arith.constant 0 : index
    %4 = vector.load %arg4[%c0_4, %c0_5] : memref<8x1xf32, #tpu.memory_space<vmem>>, vector<8x1xf32>
    %5 = vector.broadcast %4 : vector<8x1xf32> to vector<8x256xf32>
    %6 = arith.addf %3, %5 : vector<8x256xf32>
    %cst_6 = arith.constant 0.000000e+00 : f32
    %7 = vector.broadcast %cst_6 : f32 to vector<8x256xf32>
    %8 = arith.maximumf %6, %7 : vector<8x256xf32>
    %9 = arith.negf %8 : vector<8x256xf32>
    %10 = math.exp %9 : vector<8x256xf32>
    %cst_7 = arith.constant 1.000000e+00 : f32
    %11 = vector.broadcast %cst_7 : f32 to vector<8x256xf32>
    %12 = arith.addf %11, %10 : vector<8x256xf32>
    %13 = arith.divf %11, %12 : vector<8x256xf32>
    %c0_8 = arith.constant 0 : index
    %c0_9 = arith.constant 0 : index
    %c0_10 = arith.constant 0 : index
    %14 = vector.load %arg5[%c0_8, %c0_9, %c0_10] : memref<1x8x256xf32, #tpu.memory_space<vmem>>, vector<1x8x256xf32>
    %15 = vector.shape_cast %14 : vector<1x8x256xf32> to vector<8x256xf32>
    %16 = vector.shape_cast %13 : vector<8x256xf32> to vector<1x8x256xf32>
    tpu.vector_store %arg5[%c0_8, %c0_9, %c0_10], %16 {strides = array<i32>} : memref<1x8x256xf32, #tpu.memory_space<vmem>>, vector<1x8x256xf32>,
    return
  }
  func.func @transform_0(%arg0: i32, %arg1: i32) -> (i32, i32, i32) {
    %c0_i32 = arith.constant 0 : i32
    %c0_i32_0 = arith.constant 0 : i32
    return %arg0, %c0_i32, %arg1 : i32, i32, i32
  }
  func.func @transform_1(%arg0: i32, %arg1: i32) -> (i32, i32) {
    %c0_i32 = arith.constant 0 : i32
    %c0_i32_0 = arith.constant 0 : i32
    %c0_i32_1 = arith.constant 0 : i32
    return %c0_i32, %c0_i32_0 : i32, i32
  }
  func.func @transform_2(%arg0: i32, %arg1: i32) -> (i32, i32) {
    %c0_i32 = arith.constant 0 : i32
    %c0_i32_0 = arith.constant 0 : i32
    %c0_i32_1 = arith.constant 0 : i32
    return %c0_i32, %c0_i32_0 : i32, i32
  }
  func.func @transform_3(%arg0: i32, %arg1: i32) -> (i32, i32, i32) {
    %c0_i32 = arith.constant 0 : i32
    %c0_i32_0 = arith.constant 0 : i32
    return %arg0, %c0_i32, %arg1 : i32, i32, i32
  }
}

module attributes {stable_mosaic.version = 11 : i64} {
  func.func @_dft2_inv_abs_kernel(%arg0: i32, %arg1: i32, %arg2: memref<16x256xf32, #tpu.memory_space<vmem>>, %arg3: memref<16x256xf32, #tpu.memory_space<vmem>>, %arg4: memref<16x256xf32, #tpu.memory_space<vmem>>, %arg5: memref<256x256xbf16, #tpu.memory_space<vmem>>, %arg6: memref<256x256xbf16, #tpu.memory_space<vmem>>, %arg7: memref<16x256xf32, #tpu.memory_space<vmem>>) attributes {dimension_semantics = [#tpu.dimension_semantics<parallel>, #tpu.dimension_semantics<parallel>], iteration_bounds = array<i64: 1, 1>, scalar_prefetch = 0 : i64, scratch_operands = 0 : i64, tpu.core_type = #tpu.core_type<tc>, window_params = [{transform_indices = @transform_0, window_bounds = array<i64: 16, 256>}, {transform_indices = @transform_1, window_bounds = array<i64: 16, 256>}, {transform_indices = @transform_2, window_bounds = array<i64: 16, 256>}, {transform_indices = @transform_3, window_bounds = array<i64: 256, 256>}, {transform_indices = @transform_4, window_bounds = array<i64: 256, 256>}, {transform_indices = @transform_5, window_bounds = array<i64: 16, 256>}]} {
    %c0 = arith.constant 0 : index
    %c0_0 = arith.constant 0 : index
    %0 = vector.load %arg2[%c0, %c0_0] : memref<16x256xf32, #tpu.memory_space<vmem>>, vector<16x256xf32>
    %c0_1 = arith.constant 0 : index
    %c0_2 = arith.constant 0 : index
    %1 = vector.load %arg3[%c0_1, %c0_2] : memref<16x256xf32, #tpu.memory_space<vmem>>, vector<16x256xf32>
    %2 = arith.mulf %0, %1 : vector<16x256xf32>
    %3 = arith.truncf %2 : vector<16x256xf32> to vector<16x256xbf16>
    %c0_3 = arith.constant 0 : index
    %c0_4 = arith.constant 0 : index
    %4 = vector.load %arg4[%c0_3, %c0_4] : memref<16x256xf32, #tpu.memory_space<vmem>>, vector<16x256xf32>
    %5 = arith.mulf %0, %4 : vector<16x256xf32>
    %6 = arith.truncf %5 : vector<16x256xf32> to vector<16x256xbf16>
    %c0_5 = arith.constant 0 : index
    %c0_6 = arith.constant 0 : index
    %7 = vector.load %arg5[%c0_5, %c0_6] : memref<256x256xbf16, #tpu.memory_space<vmem>>, vector<256x256xbf16>
    %c0_7 = arith.constant 0 : index
    %c0_8 = arith.constant 0 : index
    %8 = vector.load %arg6[%c0_7, %c0_8] : memref<256x256xbf16, #tpu.memory_space<vmem>>, vector<256x256xbf16>
    %cst = arith.constant dense<0.000000e+00> : vector<16x256xf32>
    %9 = tpu.matmul %3, %7, %cst {dimension_numbers = #tpu.dot_dimension_numbers<[1], [0], [0], [1], [0, 0, 1, 1], [], []>} : vector<16x256xbf16>, vector<256x256xbf16>, vector<16x256xf32> -> vector<16x256xf32>
    %cst_9 = arith.constant dense<0.000000e+00> : vector<16x256xf32>
    %10 = tpu.matmul %6, %8, %cst_9 {dimension_numbers = #tpu.dot_dimension_numbers<[1], [0], [0], [1], [0, 0, 1, 1], [], []>} : vector<16x256xbf16>, vector<256x256xbf16>, vector<16x256xf32> -> vector<16x256xf32>
    %11 = arith.subf %9, %10 : vector<16x256xf32>
    %cst_10 = arith.constant dense<0.000000e+00> : vector<16x256xf32>
    %12 = tpu.matmul %3, %8, %cst_10 {dimension_numbers = #tpu.dot_dimension_numbers<[1], [0], [0], [1], [0, 0, 1, 1], [], []>} : vector<16x256xbf16>, vector<256x256xbf16>, vector<16x256xf32> -> vector<16x256xf32>
    %cst_11 = arith.constant dense<0.000000e+00> : vector<16x256xf32>
    %13 = tpu.matmul %6, %7, %cst_11 {dimension_numbers = #tpu.dot_dimension_numbers<[1], [0], [0], [1], [0, 0, 1, 1], [], []>} : vector<16x256xbf16>, vector<256x256xbf16>, vector<16x256xf32> -> vector<16x256xf32>
    %14 = arith.addf %12, %13 : vector<16x256xf32>
    %15 = arith.mulf %11, %11 : vector<16x256xf32>
    %16 = arith.mulf %14, %14 : vector<16x256xf32>
    %17 = arith.addf %15, %16 : vector<16x256xf32>
    %18 = math.sqrt %17 : vector<16x256xf32>
    %c0_12 = arith.constant 0 : index
    %c0_13 = arith.constant 0 : index
    %19 = vector.load %arg7[%c0_12, %c0_13] : memref<16x256xf32, #tpu.memory_space<vmem>>, vector<16x256xf32>
    tpu.vector_store %arg7[%c0_12, %c0_13], %18 {strides = array<i32>} : memref<16x256xf32, #tpu.memory_space<vmem>>, vector<16x256xf32>,
    return
  }
  func.func @transform_0(%arg0: i32, %arg1: i32) -> (i32, i32) {
    %c0_i32 = arith.constant 0 : i32
    %c0_i32_0 = arith.constant 0 : i32
    return %arg0, %c0_i32 : i32, i32
  }
  func.func @transform_1(%arg0: i32, %arg1: i32) -> (i32, i32) {
    %c0_i32 = arith.constant 0 : i32
    %c0_i32_0 = arith.constant 0 : i32
    return %arg0, %c0_i32 : i32, i32
  }
  func.func @transform_2(%arg0: i32, %arg1: i32) -> (i32, i32) {
    %c0_i32 = arith.constant 0 : i32
    %c0_i32_0 = arith.constant 0 : i32
    return %arg0, %c0_i32 : i32, i32
  }
  func.func @transform_3(%arg0: i32, %arg1: i32) -> (i32, i32) {
    %c0_i32 = arith.constant 0 : i32
    %c0_i32_0 = arith.constant 0 : i32
    return %c0_i32, %arg1 : i32, i32
  }
  func.func @transform_4(%arg0: i32, %arg1: i32) -> (i32, i32) {
    %c0_i32 = arith.constant 0 : i32
    %c0_i32_0 = arith.constant 0 : i32
    return %c0_i32, %arg1 : i32, i32
  }
  func.func @transform_5(%arg0: i32, %arg1: i32) -> (i32, i32) {
    %c0_i32 = arith.constant 0 : i32
    return %arg0, %arg1 : i32, i32
  }
}

module attributes {stable_mosaic.version = 11 : i64} {
  func.func @_conv_cf_kernel(%arg0: i32, %arg1: i32, %arg2: memref<1x8x256xbf16, #tpu.memory_space<vmem>>, %arg3: memref<8x8xbf16, #tpu.memory_space<vmem>>, %arg4: memref<8x1xf32, #tpu.memory_space<vmem>>, %arg5: memref<1x8x256xf32, #tpu.memory_space<vmem>>) attributes {dimension_semantics = [#tpu.dimension_semantics<parallel>, #tpu.dimension_semantics<parallel>], iteration_bounds = array<i64: 2, 1>, scalar_prefetch = 0 : i64, scratch_operands = 0 : i64, tpu.core_type = #tpu.core_type<tc>, window_params = [{transform_indices = @transform_0, window_bounds = array<i64: 1, 8, 256>}, {pipeline_mode = #tpu.pipeline_mode<synchronous>, transform_indices = @transform_1, window_bounds = array<i64: 8, 8>}, {pipeline_mode = #tpu.pipeline_mode<synchronous>, transform_indices = @transform_2, window_bounds = array<i64: 8, 1>}, {transform_indices = @transform_3, window_bounds = array<i64: 1, 8, 256>}]} {
    %c0 = arith.constant 0 : index
    %c0_0 = arith.constant 0 : index
    %0 = vector.load %arg3[%c0, %c0_0] : memref<8x8xbf16, #tpu.memory_space<vmem>>, vector<8x8xbf16>
    %c0_1 = arith.constant 0 : index
    %c0_2 = arith.constant 0 : index
    %c0_3 = arith.constant 0 : index
    %1 = vector.load %arg2[%c0_1, %c0_2, %c0_3] : memref<1x8x256xbf16, #tpu.memory_space<vmem>>, vector<1x8x256xbf16>
    %2 = vector.shape_cast %1 : vector<1x8x256xbf16> to vector<8x256xbf16>
    %cst = arith.constant dense<0.000000e+00> : vector<8x256xf32>
    %3 = tpu.matmul %0, %2, %cst {dimension_numbers = #tpu.dot_dimension_numbers<[1], [0], [0], [1], [0, 0, 1, 1], [], []>} : vector<8x8xbf16>, vector<8x256xbf16>, vector<8x256xf32> -> vector<8x256xf32>
    %c0_4 = arith.constant 0 : index
    %c0_5 = arith.constant 0 : index
    %4 = vector.load %arg4[%c0_4, %c0_5] : memref<8x1xf32, #tpu.memory_space<vmem>>, vector<8x1xf32>
    %5 = vector.broadcast %4 : vector<8x1xf32> to vector<8x256xf32>
    %6 = arith.addf %3, %5 : vector<8x256xf32>
    %c0_6 = arith.constant 0 : index
    %c0_7 = arith.constant 0 : index
    %c0_8 = arith.constant 0 : index
    %7 = vector.load %arg5[%c0_6, %c0_7, %c0_8] : memref<1x8x256xf32, #tpu.memory_space<vmem>>, vector<1x8x256xf32>
    %8 = vector.shape_cast %7 : vector<1x8x256xf32> to vector<8x256xf32>
    %9 = vector.shape_cast %6 : vector<8x256xf32> to vector<1x8x256xf32>
    tpu.vector_store %arg5[%c0_6, %c0_7, %c0_8], %9 {strides = array<i32>} : memref<1x8x256xf32, #tpu.memory_space<vmem>>, vector<1x8x256xf32>,
    return
  }
  func.func @transform_0(%arg0: i32, %arg1: i32) -> (i32, i32, i32) {
    %c0_i32 = arith.constant 0 : i32
    %c0_i32_0 = arith.constant 0 : i32
    return %arg0, %c0_i32, %arg1 : i32, i32, i32
  }
  func.func @transform_1(%arg0: i32, %arg1: i32) -> (i32, i32) {
    %c0_i32 = arith.constant 0 : i32
    %c0_i32_0 = arith.constant 0 : i32
    %c0_i32_1 = arith.constant 0 : i32
    return %c0_i32, %c0_i32_0 : i32, i32
  }
  func.func @transform_2(%arg0: i32, %arg1: i32) -> (i32, i32) {
    %c0_i32 = arith.constant 0 : i32
    %c0_i32_0 = arith.constant 0 : i32
    %c0_i32_1 = arith.constant 0 : i32
    return %c0_i32, %c0_i32_0 : i32, i32
  }
  func.func @transform_3(%arg0: i32, %arg1: i32) -> (i32, i32, i32) {
    %c0_i32 = arith.constant 0 : i32
    %c0_i32_0 = arith.constant 0 : i32
    return %arg0, %c0_i32, %arg1 : i32, i32, i32
  }
}

module attributes {stable_mosaic.version = 11 : i64} {
  func.func @_attn_out_kernel(%arg0: i32, %arg1: memref<1x16x256xf32, #tpu.memory_space<vmem>>, %arg2: memref<1x8x256xf32, #tpu.memory_space<vmem>>, %arg3: memref<4x16xf32, #tpu.memory_space<vmem>>, %arg4: memref<4x1xf32, #tpu.memory_space<vmem>>, %arg5: memref<16x4xf32, #tpu.memory_space<vmem>>, %arg6: memref<16x1xf32, #tpu.memory_space<vmem>>, %arg7: memref<8x16xbf16, #tpu.memory_space<vmem>>, %arg8: memref<8x1xf32, #tpu.memory_space<vmem>>, %arg9: memref<1x8x256xf32, #tpu.memory_space<vmem>>) attributes {dimension_semantics = [#tpu.dimension_semantics<parallel>], iteration_bounds = array<i64: 2>, scalar_prefetch = 0 : i64, scratch_operands = 0 : i64, tpu.core_type = #tpu.core_type<tc>, window_params = [{transform_indices = @transform_0, window_bounds = array<i64: 1, 16, 256>}, {transform_indices = @transform_1, window_bounds = array<i64: 1, 8, 256>}, {pipeline_mode = #tpu.pipeline_mode<synchronous>, transform_indices = @transform_2, window_bounds = array<i64: 4, 16>}, {pipeline_mode = #tpu.pipeline_mode<synchronous>, transform_indices = @transform_3, window_bounds = array<i64: 4, 1>}, {pipeline_mode = #tpu.pipeline_mode<synchronous>, transform_indices = @transform_4, window_bounds = array<i64: 16, 4>}, {pipeline_mode = #tpu.pipeline_mode<synchronous>, transform_indices = @transform_5, window_bounds = array<i64: 16, 1>}, {pipeline_mode = #tpu.pipeline_mode<synchronous>, transform_indices = @transform_6, window_bounds = array<i64: 8, 16>}, {pipeline_mode = #tpu.pipeline_mode<synchronous>, transform_indices = @transform_7, window_bounds = array<i64: 8, 1>}, {transform_indices = @transform_8, window_bounds = array<i64: 1, 8, 256>}]} {
    %c0 = arith.constant 0 : index
    %c0_0 = arith.constant 0 : index
    %c0_1 = arith.constant 0 : index
    %0 = vector.load %arg1[%c0, %c0_0, %c0_1] : memref<1x16x256xf32, #tpu.memory_space<vmem>>, vector<1x16x256xf32>
    %1 = vector.shape_cast %0 : vector<1x16x256xf32> to vector<16x256xf32>
    %cst = arith.constant dense<0.000000e+00> : vector<16xf32>
    %2 = vector.multi_reduction <add>, %1, %cst [1] : vector<16x256xf32> to vector<16xf32>
    %3 = vector.shape_cast %2 : vector<16xf32> to vector<16x1xf32>
    %cst_2 = arith.constant 3.906250e-03 : f32
    %4 = vector.broadcast %cst_2 : f32 to vector<16x1xf32>
    %5 = arith.mulf %3, %4 : vector<16x1xf32>
    %c0_3 = arith.constant 0 : index
    %c0_4 = arith.constant 0 : index
    %6 = vector.load %arg3[%c0_3, %c0_4] : memref<4x16xf32, #tpu.memory_space<vmem>>, vector<4x16xf32>
    %cst_5 = arith.constant dense<0.000000e+00> : vector<4x1xf32>
    %7 = tpu.matmul %6, %5, %cst_5 {dimension_numbers = #tpu.dot_dimension_numbers<[1], [0], [0], [1], [0, 0, 1, 1], [], []>} : vector<4x16xf32>, vector<16x1xf32>, vector<4x1xf32> -> vector<4x1xf32>
    %c0_6 = arith.constant 0 : index
    %c0_7 = arith.constant 0 : index
    %8 = vector.load %arg4[%c0_6, %c0_7] : memref<4x1xf32, #tpu.memory_space<vmem>>, vector<4x1xf32>
    %9 = arith.addf %7, %8 : vector<4x1xf32>
    %cst_8 = arith.constant 0.000000e+00 : f32
    %10 = vector.broadcast %cst_8 : f32 to vector<4x1xf32>
    %11 = arith.maximumf %9, %10 : vector<4x1xf32>
    %c0_9 = arith.constant 0 : index
    %c0_10 = arith.constant 0 : index
    %12 = vector.load %arg5[%c0_9, %c0_10] : memref<16x4xf32, #tpu.memory_space<vmem>>, vector<16x4xf32>
    %cst_11 = arith.constant dense<0.000000e+00> : vector<16x1xf32>
    %13 = tpu.matmul %12, %11, %cst_11 {dimension_numbers = #tpu.dot_dimension_numbers<[1], [0], [0], [1], [0, 0, 1, 1], [], []>} : vector<16x4xf32>, vector<4x1xf32>, vector<16x1xf32> -> vector<16x1xf32>
    %c0_12 = arith.constant 0 : index
    %c0_13 = arith.constant 0 : index
    %14 = vector.load %arg6[%c0_12, %c0_13] : memref<16x1xf32, #tpu.memory_space<vmem>>, vector<16x1xf32>
    %15 = arith.addf %13, %14 : vector<16x1xf32>
    %16 = arith.negf %15 : vector<16x1xf32>
    %17 = math.exp %16 : vector<16x1xf32>
    %cst_14 = arith.constant 1.000000e+00 : f32
    %18 = vector.broadcast %cst_14 : f32 to vector<16x1xf32>
    %19 = arith.addf %18, %17 : vector<16x1xf32>
    %20 = arith.divf %18, %19 : vector<16x1xf32>
    %21 = vector.broadcast %20 : vector<16x1xf32> to vector<16x256xf32>
    %22 = arith.mulf %1, %21 : vector<16x256xf32>
    %23 = arith.truncf %22 : vector<16x256xf32> to vector<16x256xbf16>
    %c0_15 = arith.constant 0 : index
    %c0_16 = arith.constant 0 : index
    %24 = vector.load %arg7[%c0_15, %c0_16] : memref<8x16xbf16, #tpu.memory_space<vmem>>, vector<8x16xbf16>
    %cst_17 = arith.constant dense<0.000000e+00> : vector<8x256xf32>
    %25 = tpu.matmul %24, %23, %cst_17 {dimension_numbers = #tpu.dot_dimension_numbers<[1], [0], [0], [1], [0, 0, 1, 1], [], []>} : vector<8x16xbf16>, vector<16x256xbf16>, vector<8x256xf32> -> vector<8x256xf32>
    %c0_18 = arith.constant 0 : index
    %c0_19 = arith.constant 0 : index
    %26 = vector.load %arg8[%c0_18, %c0_19] : memref<8x1xf32, #tpu.memory_space<vmem>>, vector<8x1xf32>
    %27 = vector.broadcast %26 : vector<8x1xf32> to vector<8x256xf32>
    %28 = arith.addf %25, %27 : vector<8x256xf32>
    %c0_20 = arith.constant 0 : index
    %c0_21 = arith.constant 0 : index
    %c0_22 = arith.constant 0 : index
    %29 = vector.load %arg2[%c0_20, %c0_21, %c0_22] : memref<1x8x256xf32, #tpu.memory_space<vmem>>, vector<1x8x256xf32>
    %30 = vector.shape_cast %29 : vector<1x8x256xf32> to vector<8x256xf32>
    %31 = arith.addf %28, %30 : vector<8x256xf32>
    %c0_23 = arith.constant 0 : index
    %c0_24 = arith.constant 0 : index
    %c0_25 = arith.constant 0 : index
    %32 = vector.load %arg9[%c0_23, %c0_24, %c0_25] : memref<1x8x256xf32, #tpu.memory_space<vmem>>, vector<1x8x256xf32>
    %33 = vector.shape_cast %32 : vector<1x8x256xf32> to vector<8x256xf32>
    %34 = vector.shape_cast %31 : vector<8x256xf32> to vector<1x8x256xf32>
    tpu.vector_store %arg9[%c0_23, %c0_24, %c0_25], %34 {strides = array<i32>} : memref<1x8x256xf32, #tpu.memory_space<vmem>>, vector<1x8x256xf32>,
    return
  }
  func.func @transform_0(%arg0: i32) -> (i32, i32, i32) {
    %c0_i32 = arith.constant 0 : i32
    %c0_i32_0 = arith.constant 0 : i32
    %c0_i32_1 = arith.constant 0 : i32
    return %arg0, %c0_i32, %c0_i32_0 : i32, i32, i32
  }
  func.func @transform_1(%arg0: i32) -> (i32, i32, i32) {
    %c0_i32 = arith.constant 0 : i32
    %c0_i32_0 = arith.constant 0 : i32
    %c0_i32_1 = arith.constant 0 : i32
    return %arg0, %c0_i32, %c0_i32_0 : i32, i32, i32
  }
  func.func @transform_2(%arg0: i32) -> (i32, i32) {
    %c0_i32 = arith.constant 0 : i32
    %c0_i32_0 = arith.constant 0 : i32
    %c0_i32_1 = arith.constant 0 : i32
    return %c0_i32, %c0_i32_0 : i32, i32
  }
  func.func @transform_3(%arg0: i32) -> (i32, i32) {
    %c0_i32 = arith.constant 0 : i32
    %c0_i32_0 = arith.constant 0 : i32
    %c0_i32_1 = arith.constant 0 : i32
    return %c0_i32, %c0_i32_0 : i32, i32
  }
  func.func @transform_4(%arg0: i32) -> (i32, i32) {
    %c0_i32 = arith.constant 0 : i32
    %c0_i32_0 = arith.constant 0 : i32
    %c0_i32_1 = arith.constant 0 : i32
    return %c0_i32, %c0_i32_0 : i32, i32
  }
  func.func @transform_5(%arg0: i32) -> (i32, i32) {
    %c0_i32 = arith.constant 0 : i32
    %c0_i32_0 = arith.constant 0 : i32
    %c0_i32_1 = arith.constant 0 : i32
    return %c0_i32, %c0_i32_0 : i32, i32
  }
  func.func @transform_6(%arg0: i32) -> (i32, i32) {
    %c0_i32 = arith.constant 0 : i32
    %c0_i32_0 = arith.constant 0 : i32
    %c0_i32_1 = arith.constant 0 : i32
    return %c0_i32, %c0_i32_0 : i32, i32
  }
  func.func @transform_7(%arg0: i32) -> (i32, i32) {
    %c0_i32 = arith.constant 0 : i32
    %c0_i32_0 = arith.constant 0 : i32
    %c0_i32_1 = arith.constant 0 : i32
    return %c0_i32, %c0_i32_0 : i32, i32
  }
  func.func @transform_8(%arg0: i32) -> (i32, i32, i32) {
    %c0_i32 = arith.constant 0 : i32
    %c0_i32_0 = arith.constant 0 : i32
    %c0_i32_1 = arith.constant 0 : i32
    return %arg0, %c0_i32, %c0_i32_0 : i32, i32, i32
  }
}

</mosaic_0001>

<llo_original>
// kernel: dfhgb_forward.8
$region0: #{dfhgb_forward.8}
  #allocation0 [shape = 'u32[]', space=smem, size = 0x4, offset = 0x4, fixed_abs, tag = 'smem constant byte address 0x4 - core index']
  #allocation1 [shape = 'u32[72,128]{1,0:T(1,128)}', space=vmem, size = 0x9000, scoped, tag = 'internal scratch']
  %s0 = inlined_call_operand.vmem [shape: bf16[2,8,256], index: 0, kind: input, shape index: {}]
  %s1 = inlined_call_operand.vmem [shape: bf16[8,8], index: 1, kind: input, shape index: {}]
  %s2 = inlined_call_operand.vmem [shape: f32[8,1], index: 2, kind: input, shape index: {}]
  %s3 = inlined_call_operand.vmem [shape: f32[2,8,256], index: 3, kind: output, shape index: {}]
  %s4 = sld [smem:[#allocation0]]
  $region45: #{dfhgb_forward.8} parent=0
    _
  %s6 = ssub.s32 1, %s4
  %s7 = scalar_select 0, %s6, %s4
  loop: start=0, step=1, limit=4
  $region2: #{dfhgb_forward.8} parent=0 // loop_pre_header
    _
  $region3: #{dfhgb_forward.8} parent=0 // loop_header
    %s9 = sphi 0, %s13
    %p10 = scmp.ge.s32.totalorder %s9, 4
    %s16 = sphi 0, %s28
    %s17 = sphi 0, %s24
    %s18 = sphi 0, %s16
    %s19 = sphi 0, %s17
    %s20 = sphi 0, %s18
    %s21 = sphi 0, %s19
    %s33 = sphi 0, %s35
    %s36 = sphi 0, %s33
    %s37 = sphi 0, %s36
    %s53 = sphi 0, %s37
    %s57 = sphi 0, %s57
    %s59 = sphi 0, %s57
    %s60 = sphi 0, %s59
    %s74 = sphi 0, %s60
    %s78 = sphi 0, %s78
    %s80 = sphi 0, %s78
    %s81 = sphi 0, %s80
    %s95 = sphi 0, %s81
    %s103 = sphi 0, %s105
    %s106 = sphi 0, %s103
    %s107 = sphi 0, %s106
    %s123 = sphi 0, %s107
  $region4: #{dfhgb_forward.8} parent=0 // loop_header_branch
    %12 = sbr.rel (%p10) target = $region8
  $region5: #{dfhgb_forward.8} parent=0 // loop_body
    %s14 = ssub.s32 %s9, 1
    %s15 = ssub.s32 %s9, 2
    %s22 = sadd.s32 1, %s17
    %p23 = scmp.ge.s32.totalorder %s22, 1
    %s24 = scalar_select %p23, 0, %s22
    %s25 = sadd.s32 1, %s16
    %s26 = scalar_select %p23, %s25, %s16
    %p27 = scmp.ge.s32.totalorder %s26, 2
    %s28 = scalar_select %p27, 0, %s26
    %s29 = ssub.s32 %s16, %s28
    %s30 = ssub.s32 %s17, %s24
    %s31 = sor.u32 %s29, %s30
    %p32 = scmp.eq.s32.totalorder %s31, 0
    %s34 = sadd.s32 %s33, 1
    %s35 = scalar_select %p32, %s33, %s34
    %p38 = pneg %p32
    %p39 = scmp.eq.s32.totalorder %s9, 1
    %p40 = por %p38, %p39
    %p41 = scmp.ne.s32.totalorder %s33, %s36
    %p42 = scmp.eq.s32.totalorder %s9, 0
    %p43 = por %p41, %p42
    %p44 = scmp.ne.s32.totalorder %s33, %s36
    %p45 = scmp.eq.s32.totalorder %s14, 1
    %p46 = por %p44, %p45
    %p47 = scmp.ne.s32.totalorder %s36, %s37
    %p48 = scmp.eq.s32.totalorder %s14, 0
    %p49 = por %p47, %p48
    %p50 = scmp.ne.s32.totalorder %s36, %s37
    %p51 = scmp.eq.s32.totalorder %s15, 1
    %p52 = por %p50, %p51
    %p54 = scmp.ne.s32.totalorder %s37, %s53
    %p55 = scmp.eq.s32.totalorder %s15, 0
    %p56 = por %p54, %p55
    %s58 = sadd.s32 %s57, 1
    %p61 = scmp.eq.s32.totalorder %s9, 1
    %p62 = scmp.ne.s32.totalorder %s57, %s59
    %p63 = scmp.eq.s32.totalorder %s9, 0
    %p64 = por %p62, %p63
    %p65 = scmp.ne.s32.totalorder %s57, %s59
    %p66 = scmp.eq.s32.totalorder %s14, 1
    %p67 = por %p65, %p66
    %p68 = scmp.ne.s32.totalorder %s59, %s60
    %p69 = scmp.eq.s32.totalorder %s14, 0
    %p70 = por %p68, %p69
    %p71 = scmp.ne.s32.totalorder %s59, %s60
    %p72 = scmp.eq.s32.totalorder %s15, 1
    %p73 = por %p71, %p72
    %p75 = scmp.ne.s32.totalorder %s60, %s74
    %p76 = scmp.eq.s32.totalorder %s15, 0
    %p77 = por %p75, %p76
    %s79 = sadd.s32 %s78, 1
    %p82 = scmp.eq.s32.totalorder %s9, 1
    %p83 = scmp.ne.s32.totalorder %s78, %s80
    %p84 = scmp.eq.s32.totalorder %s9, 0
    %p85 = por %p83, %p84
    %p86 = scmp.ne.s32.totalorder %s78, %s80
    %p87 = scmp.eq.s32.totalorder %s14, 1
    %p88 = por %p86, %p87
    %p89 = scmp.ne.s32.totalorder %s80, %s81
    %p90 = scmp.eq.s32.totalorder %s14, 0
    %p91 = por %p89, %p90
    %p92 = scmp.ne.s32.totalorder %s80, %s81
    %p93 = scmp.eq.s32.totalorder %s15, 1
    %p94 = por %p92, %p93
    %p96 = scmp.ne.s32.totalorder %s81, %s95
    %p97 = scmp.eq.s32.totalorder %s15, 0
    %p98 = por %p96, %p97
    %s99 = ssub.s32 %s16, %s28
    %s100 = ssub.s32 %s17, %s24
    %s101 = sor.u32 %s99, %s100
    %p102 = scmp.eq.s32.totalorder %s101, 0
    %s104 = sadd.s32 %s103, 1
    %s105 = scalar_select %p102, %s103, %s104
    %p108 = pneg %p102
    %p109 = scmp.eq.s32.totalorder %s9, 1
    %p110 = por %p108, %p109
    %p111 = scmp.ne.s32.totalorder %s103, %s106
    %p112 = scmp.eq.s32.totalorder %s9, 0
    %p113 = por %p111, %p112
    %p114 = scmp.ne.s32.totalorder %s103, %s106
    %p115 = scmp.eq.s32.totalorder %s14, 1
    %p116 = por %p114, %p115
    %p117 = scmp.ne.s32.totalorder %s106, %s107
    %p118 = scmp.eq.s32.totalorder %s14, 0
    %p119 = por %p117, %p118
    %p120 = scmp.ne.s32.totalorder %s106, %s107
    %p121 = scmp.eq.s32.totalorder %s15, 1
    %p122 = por %p120, %p121
    %p124 = scmp.ne.s32.totalorder %s107, %s123
    %p125 = scmp.eq.s32.totalorder %s15, 0
    %p126 = por %p124, %p125
    %p127 = scmp.le.s32.totalorder 1, %s9
    %p128 = scmp.lt.s32.totalorder %s9, 3
    %p129 = pnand %p127, %p128
    %p130 = pneg %p129
    // Predicated region
    $region9: #{dfhgb_forward.8} parent=5 // pred_check
      _
    $region10: #{dfhgb_forward.8} parent=5 // pred_check_branch
      %132 = sbr.rel (%p129) target = $region12
    $region11: #{dfhgb_forward.8} parent=5 // pred_region
      %s133 = ssub.s32 %s9, 1
      // Predicated region
      $region13: #{dfhgb_forward.8} parent=11 // pred_check
        %p134 = pneg %p70
      $region14: #{dfhgb_forward.8} parent=11 // pred_check_branch
        %136 = sbr.rel (%p134) target = $region16
      $region15: #{dfhgb_forward.8} parent=11 // pred_region
        _
      $region16: #{dfhgb_forward.8} parent=11 // pred_fallthru
        _
      // Predicated region
      $region17: #{dfhgb_forward.8} parent=11 // pred_check
        %p137 = pneg %p91
      $region18: #{dfhgb_forward.8} parent=11 // pred_check_branch
        %139 = sbr.rel (%p137) target = $region20
      $region19: #{dfhgb_forward.8} parent=11 // pred_region
        _
      $region20: #{dfhgb_forward.8} parent=11 // pred_fallthru
        _
    $region12: #{dfhgb_forward.8} parent=5 // pred_fallthru
      _
    %p140 = scmp.lt.s32.totalorder %s9, 2
    // Predicated region
    $region21: #{dfhgb_forward.8} parent=5 // pred_check
      %p141 = pneg %p140
    $region22: #{dfhgb_forward.8} parent=5 // pred_check_branch
      %143 = sbr.rel (%p141) target = $region24
    $region23: #{dfhgb_forward.8} parent=5 // pred_region
      // Predicated region
      $region25: #{dfhgb_forward.8} parent=23 // pred_check
        %p144 = pneg %p43
      $region26: #{dfhgb_forward.8} parent=23 // pred_check_branch
        %146 = sbr.rel (%p144) target = $region28
      $region27: #{dfhgb_forward.8} parent=23 // pred_region
        %s147 = smul.u32 2, %s17
        %p148 = scmp.lt.s32.totalorder %s16, 1
        %s149 = scalar_select %p148, %s16, 1
        %p150 = scmp.lt.s32.totalorder %s147, 1
        %s151 = scalar_select %p150, %s147, 1
        %s152 = smul.addr %s149, 2
        %s153 = sadd.s32 %s151, %s152
        %s154 = smul.addr %s153, 4
        %s155 = scalar_lea.vmem %s0, %s154
        %s156 = smul.u32 2, %s17
      $region28: #{dfhgb_forward.8} parent=23 // pred_fallthru
        _
    $region24: #{dfhgb_forward.8} parent=5 // pred_fallthru
      _
    %p157 = scmp.le.s32.totalorder 1, %s9
    %p158 = scmp.lt.s32.totalorder %s9, 3
    %p159 = pnand %p157, %p158
    %p160 = pneg %p159
    // Predicated region
    $region29: #{dfhgb_forward.8} parent=5 // pred_check
      _
    $region30: #{dfhgb_forward.8} parent=5 // pred_check_branch
      %162 = sbr.rel (%p159) target = $region32
    $region31: #{dfhgb_forward.8} parent=5 // pred_region
      %s163 = ssub.s32 %s9, 1
      %s164 = smul.u32 2, %s19
      %p165 = scmp.lt.s32.totalorder %s18, 1
      %s166 = scalar_select %p165, %s18, 1
      %p167 = scmp.lt.s32.totalorder %s164, 1
      %s168 = scalar_select %p167, %s164, 1
      %s169 = smul.addr %s166, 2
      %s170 = sadd.s32 %s168, %s169
      %s171 = smul.addr %s170, 4
      %s172 = scalar_lea.vmem %s0, %s171
      %p173 = pneg %p49
      %p174 = pneg %p46
      %p175 = pneg %p70
      %p176 = pneg %p67
      %p177 = pneg %p91
      %p178 = pneg %p88
      %p179 = pneg %p119
      %p180 = pneg %p116
      %s181 = smul.u32 2, %s19
      %p182 = scmp.lt.s32.totalorder %s18, 1
      %s183 = scalar_select %p182, %s18, 1
      %p184 = scmp.lt.s32.totalorder %s181, 1
      %s185 = scalar_select %p184, %s181, 1
      %s186 = smul.addr %s183, 2
      %s187 = sadd.s32 %s185, %s186
      %s188 = smul.addr %s187, 8
      %s189 = scalar_lea.vmem %s3, %s188
      %s190 = smul.u32 2, %s19
      %p191 = scmp.lt.s32.totalorder %s18, 1
      %s192 = scalar_select %p191, %s18, 1
      %p193 = scmp.lt.s32.totalorder %s190, 1
      %s194 = scalar_select %p193, %s190, 1
      %s195 = smul.addr %s192, 2
      %s196 = sadd.s32 %s194, %s195
      %s197 = smul.addr %s196, 4
      %s198 = scalar_lea.vmem %s0, %s197
      %s199 = smul.u32 2, %s19
      %s200 = smul.u32 2, %s19
      %p201 = scmp.lt.s32.totalorder %s18, 1
      %s202 = scalar_select %p201, %s18, 1
      %p203 = scmp.lt.s32.totalorder %s200, 1
      %s204 = scalar_select %p203, %s200, 1
      %s205 = smul.addr %s202, 2
      %s206 = sadd.s32 %s204, %s205
      %s207 = smul.addr %s206, 8
      %s208 = scalar_lea.vmem %s3, %s207
      %s209 = smul.u32 2, %s19
      %v211 = vld [vmem:[%s1] sm:$0xf]
      %v212 = vld [vmem:[%s198] sm:$0xff]
      %v213 = vld [vmem:[%s2] sm:$0xff]
      %215 = vset.pattern.permute.xlu0 0
      %216 = vperm.xlu0 %215, %v213
      %v217 = vpop.permute.xlu0 %216
      %v220 = vunpack.c.l.b16 %v212
      %v221 = vunpack.c.h.b16 %v212
      %v222 = vpack.c.b16 %v220, %v220
      %v223 = vpack.c.b16 %v221, %v221
      %vm224 = vcmask 64512
      %v226 = vsel %vm224, %v211, 0
      %vm228 = vcmask 1043456
      %v230 = vsel %vm228, %v222, 0
      %v233 = vsel %vm228, %v223, 0
      %235 = vmatpush.bf16.msra.mxu0 0
      %236 = vmatpush.bf16.msra.mxu0 0
      %237 = vmatpush.bf16.msra.mxu0 0
      %238 = vmatpush.bf16.msra.mxu0 0
      %239 = vmatpush.bf16.msra.mxu0 0
      %240 = vmatpush.bf16.msra.mxu0 0
      %241 = vmatpush.bf16.msra.mxu0 0
      %242 = vmatpush.bf16.msra.mxu0 %v230
      %243 = vmatmul.bf16.gmra.mxu0 %v226
      %v244 = vpop.f32.mrf.mxu0
      %v245 = vadd.f32 %v217, %v244
      %v246 = vpop.f32.mrf.mxu0
      %247 = vdwg.mxu0
      %248 = vmatpush.bf16.msra.mxu0 0
      %249 = vmatpush.bf16.msra.mxu0 0
      %250 = vmatpush.bf16.msra.mxu0 0
      %251 = vmatpush.bf16.msra.mxu0 0
      %252 = vmatpush.bf16.msra.mxu0 0
      %253 = vmatpush.bf16.msra.mxu0 0
      %254 = vmatpush.bf16.msra.mxu0 0
      %255 = vmatpush.bf16.msra.mxu0 %v233
      %256 = vmatmul.bf16.gmra.mxu0 %v226
      %v257 = vpop.f32.mrf.mxu0
      %v258 = vadd.f32 %v217, %v257
      %v259 = vpop.f32.mrf.mxu0
      %260 = vdwg.mxu0
      %v261 = vmax.f32 %v245, 0.0
      %v262 = vmax.f32 %v258, 0.0
      %263 = vst [vmem:[%s208] sm:$0xff] %v261
      %264 = vst [vmem:[%s208 + $0x8] sm:$0xff] %v262
      %s265 = smul.u32 2, %s19
      %p266 = scmp.lt.s32.totalorder %s18, 1
      %s267 = scalar_select %p266, %s18, 1
      %p268 = scmp.lt.s32.totalorder %s265, 1
      %s269 = scalar_select %p268, %s265, 1
      %s270 = smul.addr %s267, 2
      %s271 = sadd.s32 %s269, %s270
      %s272 = smul.addr %s271, 8
      %s273 = scalar_lea.vmem %s3, %s272
      // Predicated region
      $region33: #{dfhgb_forward.8} parent=31 // pred_check
        %p274 = pneg %p116
      $region34: #{dfhgb_forward.8} parent=31 // pred_check_branch
        %276 = sbr.rel (%p274) target = $region36
      $region35: #{dfhgb_forward.8} parent=31 // pred_region
        %s277 = smul.u32 2, %s19
      $region36: #{dfhgb_forward.8} parent=31 // pred_fallthru
        _
    $region32: #{dfhgb_forward.8} parent=5 // pred_fallthru
      _
    %p278 = scmp.le.s32.totalorder 2, %s9
    // Predicated region
    $region37: #{dfhgb_forward.8} parent=5 // pred_check
      %p279 = pneg %p278
    $region38: #{dfhgb_forward.8} parent=5 // pred_check_branch
      %281 = sbr.rel (%p279) target = $region40
    $region39: #{dfhgb_forward.8} parent=5 // pred_region
      %s282 = ssub.s32 %s9, 2
      // Predicated region
      $region41: #{dfhgb_forward.8} parent=39 // pred_check
        %p283 = pneg %p122
      $region42: #{dfhgb_forward.8} parent=39 // pred_check_branch
        %285 = sbr.rel (%p283) target = $region44
      $region43: #{dfhgb_forward.8} parent=39 // pred_region
        %s286 = smul.u32 2, %s21
        %p287 = scmp.lt.s32.totalorder %s20, 1
        %s288 = scalar_select %p287, %s20, 1
        %p289 = scmp.lt.s32.totalorder %s286, 1
        %s290 = scalar_select %p289, %s286, 1
        %s291 = smul.addr %s288, 2
        %s292 = sadd.s32 %s290, %s291
        %s293 = smul.addr %s292, 8
        %s294 = scalar_lea.vmem %s3, %s293
      $region44: #{dfhgb_forward.8} parent=39 // pred_fallthru
        _
    $region40: #{dfhgb_forward.8} parent=5 // pred_fallthru
      _
  $region6: #{dfhgb_forward.8} parent=0 // loop_footer
    %s13 = sadd.s32 1, %s9
  $region7: #{dfhgb_forward.8} parent=0 // loop_footer_branch
    %8 = sbr.rel target = $region3
  $region8: #{dfhgb_forward.8} parent=0 // loop_exit
    _

// kernel: dfhgb_forward.9
$region0: #{dfhgb_forward.9}
  #allocation0 [shape = 'u32[]', space=smem, size = 0x4, offset = 0x4, fixed_abs, tag = 'smem constant byte address 0x4 - core index']
  #allocation1 [shape = 'u32[72,128]{1,0:T(1,128)}', space=vmem, size = 0x9000, scoped, tag = 'internal scratch']
  %s0 = inlined_call_operand.vmem [shape: bf16[2,72,256], index: 0, kind: input, shape index: {}]
  %s1 = inlined_call_operand.vmem [shape: bf16[8,72], index: 1, kind: input, shape index: {}]
  %s2 = inlined_call_operand.vmem [shape: f32[8,1], index: 2, kind: input, shape index: {}]
  %s3 = inlined_call_operand.vmem [shape: f32[2,8,256], index: 3, kind: output, shape index: {}]
  %s4 = sld [smem:[#allocation0]]
  $region45: #{dfhgb_forward.9} parent=0
    _
  %s6 = ssub.s32 1, %s4
  %s7 = scalar_select 0, %s6, %s4
  loop: start=0, step=1, limit=4
  $region2: #{dfhgb_forward.9} parent=0 // loop_pre_header
    _
  $region3: #{dfhgb_forward.9} parent=0 // loop_header
    %s9 = sphi 0, %s13
    %p10 = scmp.ge.s32.totalorder %s9, 4
    %s16 = sphi 0, %s28
    %s17 = sphi 0, %s24
    %s18 = sphi 0, %s16
    %s19 = sphi 0, %s17
    %s20 = sphi 0, %s18
    %s21 = sphi 0, %s19
    %s33 = sphi 0, %s35
    %s36 = sphi 0, %s33
    %s37 = sphi 0, %s36
    %s53 = sphi 0, %s37
    %s57 = sphi 0, %s57
    %s59 = sphi 0, %s57
    %s60 = sphi 0, %s59
    %s74 = sphi 0, %s60
    %s78 = sphi 0, %s78
    %s80 = sphi 0, %s78
    %s81 = sphi 0, %s80
    %s95 = sphi 0, %s81
    %s103 = sphi 0, %s105
    %s106 = sphi 0, %s103
    %s107 = sphi 0, %s106
    %s123 = sphi 0, %s107
  $region4: #{dfhgb_forward.9} parent=0 // loop_header_branch
    %12 = sbr.rel (%p10) target = $region8
  $region5: #{dfhgb_forward.9} parent=0 // loop_body
    %s14 = ssub.s32 %s9, 1
    %s15 = ssub.s32 %s9, 2
    %s22 = sadd.s32 1, %s17
    %p23 = scmp.ge.s32.totalorder %s22, 1
    %s24 = scalar_select %p23, 0, %s22
    %s25 = sadd.s32 1, %s16
    %s26 = scalar_select %p23, %s25, %s16
    %p27 = scmp.ge.s32.totalorder %s26, 2
    %s28 = scalar_select %p27, 0, %s26
    %s29 = ssub.s32 %s16, %s28
    %s30 = ssub.s32 %s17, %s24
    %s31 = sor.u32 %s29, %s30
    %p32 = scmp.eq.s32.totalorder %s31, 0
    %s34 = sadd.s32 %s33, 1
    %s35 = scalar_select %p32, %s33, %s34
    %p38 = pneg %p32
    %p39 = scmp.eq.s32.totalorder %s9, 1
    %p40 = por %p38, %p39
    %p41 = scmp.ne.s32.totalorder %s33, %s36
    %p42 = scmp.eq.s32.totalorder %s9, 0
    %p43 = por %p41, %p42
    %p44 = scmp.ne.s32.totalorder %s33, %s36
    %p45 = scmp.eq.s32.totalorder %s14, 1
    %p46 = por %p44, %p45
    %p47 = scmp.ne.s32.totalorder %s36, %s37
    %p48 = scmp.eq.s32.totalorder %s14, 0
    %p49 = por %p47, %p48
    %p50 = scmp.ne.s32.totalorder %s36, %s37
    %p51 = scmp.eq.s32.totalorder %s15, 1
    %p52 = por %p50, %p51
    %p54 = scmp.ne.s32.totalorder %s37, %s53
    %p55 = scmp.eq.s32.totalorder %s15, 0
    %p56 = por %p54, %p55
    %s58 = sadd.s32 %s57, 1
    %p61 = scmp.eq.s32.totalorder %s9, 1
    %p62 = scmp.ne.s32.totalorder %s57, %s59
    %p63 = scmp.eq.s32.totalorder %s9, 0
    %p64 = por %p62, %p63
    %p65 = scmp.ne.s32.totalorder %s57, %s59
    %p66 = scmp.eq.s32.totalorder %s14, 1
    %p67 = por %p65, %p66
    %p68 = scmp.ne.s32.totalorder %s59, %s60
    %p69 = scmp.eq.s32.totalorder %s14, 0
    %p70 = por %p68, %p69
    %p71 = scmp.ne.s32.totalorder %s59, %s60
    %p72 = scmp.eq.s32.totalorder %s15, 1
    %p73 = por %p71, %p72
    %p75 = scmp.ne.s32.totalorder %s60, %s74
    %p76 = scmp.eq.s32.totalorder %s15, 0
    %p77 = por %p75, %p76
    %s79 = sadd.s32 %s78, 1
    %p82 = scmp.eq.s32.totalorder %s9, 1
    %p83 = scmp.ne.s32.totalorder %s78, %s80
    %p84 = scmp.eq.s32.totalorder %s9, 0
    %p85 = por %p83, %p84
    %p86 = scmp.ne.s32.totalorder %s78, %s80
    %p87 = scmp.eq.s32.totalorder %s14, 1
    %p88 = por %p86, %p87
    %p89 = scmp.ne.s32.totalorder %s80, %s81
    %p90 = scmp.eq.s32.totalorder %s14, 0
    %p91 = por %p89, %p90
    %p92 = scmp.ne.s32.totalorder %s80, %s81
    %p93 = scmp.eq.s32.totalorder %s15, 1
    %p94 = por %p92, %p93
    %p96 = scmp.ne.s32.totalorder %s81, %s95
    %p97 = scmp.eq.s32.totalorder %s15, 0
    %p98 = por %p96, %p97
    %s99 = ssub.s32 %s16, %s28
    %s100 = ssub.s32 %s17, %s24
    %s101 = sor.u32 %s99, %s100
    %p102 = scmp.eq.s32.totalorder %s101, 0
    %s104 = sadd.s32 %s103, 1
    %s105 = scalar_select %p102, %s103, %s104
    %p108 = pneg %p102
    %p109 = scmp.eq.s32.totalorder %s9, 1
    %p110 = por %p108, %p109
    %p111 = scmp.ne.s32.totalorder %s103, %s106
    %p112 = scmp.eq.s32.totalorder %s9, 0
    %p113 = por %p111, %p112
    %p114 = scmp.ne.s32.totalorder %s103, %s106
    %p115 = scmp.eq.s32.totalorder %s14, 1
    %p116 = por %p114, %p115
    %p117 = scmp.ne.s32.totalorder %s106, %s107
    %p118 = scmp.eq.s32.totalorder %s14, 0
    %p119 = por %p117, %p118
    %p120 = scmp.ne.s32.totalorder %s106, %s107
    %p121 = scmp.eq.s32.totalorder %s15, 1
    %p122 = por %p120, %p121
    %p124 = scmp.ne.s32.totalorder %s107, %s123
    %p125 = scmp.eq.s32.totalorder %s15, 0
    %p126 = por %p124, %p125
    %p127 = scmp.le.s32.totalorder 1, %s9
    %p128 = scmp.lt.s32.totalorder %s9, 3
    %p129 = pnand %p127, %p128
    %p130 = pneg %p129
    // Predicated region
    $region9: #{dfhgb_forward.9} parent=5 // pred_check
      _
    $region10: #{dfhgb_forward.9} parent=5 // pred_check_branch
      %132 = sbr.rel (%p129) target = $region12
    $region11: #{dfhgb_forward.9} parent=5 // pred_region
      %s133 = ssub.s32 %s9, 1
      // Predicated region
      $region13: #{dfhgb_forward.9} parent=11 // pred_check
        %p134 = pneg %p70
      $region14: #{dfhgb_forward.9} parent=11 // pred_check_branch
        %136 = sbr.rel (%p134) target = $region16
      $region15: #{dfhgb_forward.9} parent=11 // pred_region
        _
      $region16: #{dfhgb_forward.9} parent=11 // pred_fallthru
        _
      // Predicated region
      $region17: #{dfhgb_forward.9} parent=11 // pred_check
        %p137 = pneg %p91
      $region18: #{dfhgb_forward.9} parent=11 // pred_check_branch
        %139 = sbr.rel (%p137) target = $region20
      $region19: #{dfhgb_forward.9} parent=11 // pred_region
        _
      $region20: #{dfhgb_forward.9} parent=11 // pred_fallthru
        _
    $region12: #{dfhgb_forward.9} parent=5 // pred_fallthru
      _
    %p140 = scmp.lt.s32.totalorder %s9, 2
    // Predicated region
    $region21: #{dfhgb_forward.9} parent=5 // pred_check
      %p141 = pneg %p140
    $region22: #{dfhgb_forward.9} parent=5 // pred_check_branch
      %143 = sbr.rel (%p141) target = $region24
    $region23: #{dfhgb_forward.9} parent=5 // pred_region
      // Predicated region
      $region25: #{dfhgb_forward.9} parent=23 // pred_check
        %p144 = pneg %p43
      $region26: #{dfhgb_forward.9} parent=23 // pred_check_branch
        %146 = sbr.rel (%p144) target = $region28
      $region27: #{dfhgb_forward.9} parent=23 // pred_region
        %s147 = smul.u32 2, %s17
        %p148 = scmp.lt.s32.totalorder %s16, 1
        %s149 = scalar_select %p148, %s16, 1
        %p150 = scmp.lt.s32.totalorder %s147, 1
        %s151 = scalar_select %p150, %s147, 1
        %s152 = smul.addr %s149, 18
        %s153 = sadd.s32 %s151, %s152
        %s154 = smul.addr %s153, 4
        %s155 = scalar_lea.vmem %s0, %s154
        %s156 = smul.u32 2, %s17
      $region28: #{dfhgb_forward.9} parent=23 // pred_fallthru
        _
    $region24: #{dfhgb_forward.9} parent=5 // pred_fallthru
      _
    %p157 = scmp.le.s32.totalorder 1, %s9
    %p158 = scmp.lt.s32.totalorder %s9, 3
    %p159 = pnand %p157, %p158
    %p160 = pneg %p159
    // Predicated region
    $region29: #{dfhgb_forward.9} parent=5 // pred_check
      _
    $region30: #{dfhgb_forward.9} parent=5 // pred_check_branch
      %162 = sbr.rel (%p159) target = $region32
    $region31: #{dfhgb_forward.9} parent=5 // pred_region
      %s163 = ssub.s32 %s9, 1
      %s164 = smul.u32 2, %s19
      %p165 = scmp.lt.s32.totalorder %s18, 1
      %s166 = scalar_select %p165, %s18, 1
      %p167 = scmp.lt.s32.totalorder %s164, 1
      %s168 = scalar_select %p167, %s164, 1
      %s169 = smul.addr %s166, 18
      %s170 = sadd.s32 %s168, %s169
      %s171 = smul.addr %s170, 4
      %s172 = scalar_lea.vmem %s0, %s171
      %p173 = pneg %p49
      %p174 = pneg %p46
      %p175 = pneg %p70
      %p176 = pneg %p67
      %p177 = pneg %p91
      %p178 = pneg %p88
      %p179 = pneg %p119
      %p180 = pneg %p116
      %s181 = smul.u32 2, %s19
      %p182 = scmp.lt.s32.totalorder %s18, 1
      %s183 = scalar_select %p182, %s18, 1
      %p184 = scmp.lt.s32.totalorder %s181, 1
      %s185 = scalar_select %p184, %s181, 1
      %s186 = smul.addr %s183, 2
      %s187 = sadd.s32 %s185, %s186
      %s188 = smul.addr %s187, 8
      %s189 = scalar_lea.vmem %s3, %s188
      %s190 = smul.u32 2, %s19
      %p191 = scmp.lt.s32.totalorder %s18, 1
      %s192 = scalar_select %p191, %s18, 1
      %p193 = scmp.lt.s32.totalorder %s190, 1
      %s194 = scalar_select %p193, %s190, 1
      %s195 = smul.addr %s192, 18
      %s196 = sadd.s32 %s194, %s195
      %s197 = smul.addr %s196, 4
      %s198 = scalar_lea.vmem %s0, %s197
      %s199 = smul.u32 2, %s19
      %s200 = smul.u32 2, %s19
      %p201 = scmp.lt.s32.totalorder %s18, 1
      %s202 = scalar_select %p201, %s18, 1
      %p203 = scmp.lt.s32.totalorder %s200, 1
      %s204 = scalar_select %p203, %s200, 1
      %s205 = smul.addr %s202, 2
      %s206 = sadd.s32 %s204, %s205
      %s207 = smul.addr %s206, 8
      %s208 = scalar_lea.vmem %s3, %s207
      %s209 = smul.u32 2, %s19
      %v211 = vld [vmem:[%s1] sm:$0xf]
      %v212 = vld [vmem:[%s198] sm:$0xff]
      %v213 = vld [vmem:[%s198 + $0x8] sm:$0xff]
      %v214 = vld [vmem:[%s198 + $0x10] sm:$0xff]
      %v215 = vld [vmem:[%s198 + $0x18] sm:$0xff]
      %v216 = vld [vmem:[%s198 + $0x20] sm:$0xff]
      %v217 = vld [vmem:[%s198 + $0x28] sm:$0xff]
      %v218 = vld [vmem:[%s198 + $0x30] sm:$0xff]
      %v219 = vld [vmem:[%s198 + $0x38] sm:$0xff]
      %v220 = vld [vmem:[%s198 + $0x40] sm:$0xff]
      %v221 = vld [vmem:[%s2] sm:$0xff]
      %223 = vset.pattern.permute.xlu0 0
      %224 = vperm.xlu0 %223, %v221
      %v225 = vpop.permute.xlu0 %224
      %v236 = vunpack.c.l.b16 %v212
      %v237 = vunpack.c.h.b16 %v212
      %v238 = vunpack.c.l.b16 %v213
      %v239 = vunpack.c.h.b16 %v213
      %v240 = vunpack.c.l.b16 %v214
      %v241 = vunpack.c.h.b16 %v214
      %v242 = vunpack.c.l.b16 %v215
      %v243 = vunpack.c.h.b16 %v215
      %v244 = vunpack.c.l.b16 %v216
      %v245 = vunpack.c.h.b16 %v216
      %v246 = vunpack.c.l.b16 %v217
      %v247 = vunpack.c.h.b16 %v217
      %v248 = vunpack.c.l.b16 %v218
      %v249 = vunpack.c.h.b16 %v218
      %v250 = vunpack.c.l.b16 %v219
      %v251 = vunpack.c.h.b16 %v219
      %v252 = vunpack.c.l.b16 %v220
      %v253 = vunpack.c.h.b16 %v220
      %v254 = vpack.c.b16 %v238, %v236
      %v255 = vpack.c.b16 %v239, %v237
      %v256 = vpack.c.b16 %v242, %v240
      %v257 = vpack.c.b16 %v243, %v241
      %v258 = vpack.c.b16 %v246, %v244
      %v259 = vpack.c.b16 %v247, %v245
      %v260 = vpack.c.b16 %v250, %v248
      %v261 = vpack.c.b16 %v251, %v249
      %v262 = vpack.c.b16 %v252, %v252
      %v263 = vpack.c.b16 %v253, %v253
      %vm272 = vcmask 588800
      %v274 = vsel %vm272, %v211, 0
      %vm276 = vcmask 1043456
      %v278 = vsel %vm276, %v262, 0
      %v281 = vsel %vm276, %v263, 0
      %283 = vmatpush.bf16.msra.mxu0 0
      %284 = vmatpush.bf16.msra.mxu0 0
      %285 = vmatpush.bf16.msra.mxu0 0
      %286 = vmatpush.bf16.msra.mxu0 %v278
      %287 = vmatpush.bf16.msra.mxu0 %v260
      %288 = vmatpush.bf16.msra.mxu0 %v258
      %289 = vmatpush.bf16.msra.mxu0 %v256
      %290 = vmatpush.bf16.msra.mxu0 %v254
      %291 = vmatmul.bf16.gmra.mxu0 %v274
      %v292 = vpop.f32.mrf.mxu0
      %v293 = vadd.f32 %v225, %v292
      %v294 = vpop.f32.mrf.mxu0
      %295 = vdwg.mxu0
      %296 = vmatpush.bf16.msra.mxu0 0
      %297 = vmatpush.bf16.msra.mxu0 0
      %298 = vmatpush.bf16.msra.mxu0 0
      %299 = vmatpush.bf16.msra.mxu0 %v281
      %300 = vmatpush.bf16.msra.mxu0 %v261
      %301 = vmatpush.bf16.msra.mxu0 %v259
      %302 = vmatpush.bf16.msra.mxu0 %v257
      %303 = vmatpush.bf16.msra.mxu0 %v255
      %304 = vmatmul.bf16.gmra.mxu0 %v274
      %v305 = vpop.f32.mrf.mxu0
      %v306 = vadd.f32 %v225, %v305
      %v307 = vpop.f32.mrf.mxu0
      %308 = vdwg.mxu0
      %v309 = vmax.f32 %v293, 0.0
      %v310 = vmax.f32 %v306, 0.0
      %311 = vst [vmem:[%s208] sm:$0xff] %v309
      %312 = vst [vmem:[%s208 + $0x8] sm:$0xff] %v310
      %s313 = smul.u32 2, %s19
      %p314 = scmp.lt.s32.totalorder %s18, 1
      %s315 = scalar_select %p314, %s18, 1
      %p316 = scmp.lt.s32.totalorder %s313, 1
      %s317 = scalar_select %p316, %s313, 1
      %s318 = smul.addr %s315, 2
      %s319 = sadd.s32 %s317, %s318
      %s320 = smul.addr %s319, 8
      %s321 = scalar_lea.vmem %s3, %s320
      // Predicated region
      $region33: #{dfhgb_forward.9} parent=31 // pred_check
        %p322 = pneg %p116
      $region34: #{dfhgb_forward.9} parent=31 // pred_check_branch
        %324 = sbr.rel (%p322) target = $region36
      $region35: #{dfhgb_forward.9} parent=31 // pred_region
        %s325 = smul.u32 2, %s19
      $region36: #{dfhgb_forward.9} parent=31 // pred_fallthru
        _
    $region32: #{dfhgb_forward.9} parent=5 // pred_fallthru
      _
    %p326 = scmp.le.s32.totalorder 2, %s9
    // Predicated region
    $region37: #{dfhgb_forward.9} parent=5 // pred_check
      %p327 = pneg %p326
    $region38: #{dfhgb_forward.9} parent=5 // pred_check_branch
      %329 = sbr.rel (%p327) target = $region40
    $region39: #{dfhgb_forward.9} parent=5 // pred_region
      %s330 = ssub.s32 %s9, 2
      // Predicated region
      $region41: #{dfhgb_forward.9} parent=39 // pred_check
        %p331 = pneg %p122
      $region42: #{dfhgb_forward.9} parent=39 // pred_check_branch
        %333 = sbr.rel (%p331) target = $region44
      $region43: #{dfhgb_forward.9} parent=39 // pred_region
        %s334 = smul.u32 2, %s21
        %p335 = scmp.lt.s32.totalorder %s20, 1
        %s336 = scalar_select %p335, %s20, 1
        %p337 = scmp.lt.s32.totalorder %s334, 1
        %s338 = scalar_select %p337, %s334, 1
        %s339 = smul.addr %s336, 2
        %s340 = sadd.s32 %s338, %s339
        %s341 = smul.addr %s340, 8
        %s342 = scalar_lea.vmem %s3, %s341
      $region44: #{dfhgb_forward.9} parent=39 // pred_fallthru
        _
    $region40: #{dfhgb_forward.9} parent=5 // pred_fallthru
      _
  $region6: #{dfhgb_forward.9} parent=0 // loop_footer
    %s13 = sadd.s32 1, %s9
  $region7: #{dfhgb_forward.9} parent=0 // loop_footer_branch
    %8 = sbr.rel target = $region3
  $region8: #{dfhgb_forward.9} parent=0 // loop_exit
    _

// kernel: dfhgb_forward.11
$region0: #{dfhgb_forward.11}
  #allocation0 [shape = 'u32[]', space=smem, size = 0x4, offset = 0x4, fixed_abs, tag = 'smem constant byte address 0x4 - core index']
  #allocation1 [shape = 'u32[72,128]{1,0:T(1,128)}', space=vmem, size = 0x9000, scoped, tag = 'internal scratch']
  %s0 = inlined_call_operand.vmem [shape: bf16[16,256], index: 0, kind: input, shape index: {}]
  %s1 = inlined_call_operand.vmem [shape: bf16[256,256], index: 1, kind: input, shape index: {}]
  %s2 = inlined_call_operand.vmem [shape: bf16[256,256], index: 2, kind: input, shape index: {}]
  %s3 = inlined_call_operand.vmem [shape: f32[16,256], index: 3, kind: output, shape index: {0}]
  %s4 = inlined_call_operand.vmem [shape: f32[16,256], index: 4, kind: output, shape index: {1}]
  %5 = xla_tuple %s3, %s4
  %s6 = sld [smem:[#allocation0]]
  $region30: #{dfhgb_forward.11} parent=0
    _
  %s8 = ssub.s32 1, %s6
  %s9 = scalar_select 0, %s8, %s6
  // Predicated region
  $region2: #{dfhgb_forward.11} parent=0 // pred_check
    _
  $region3: #{dfhgb_forward.11} parent=0 // pred_check_branch
    %11 = sbr.rel (0) target = $region5
  $region4: #{dfhgb_forward.11} parent=0 // pred_region
    _
  $region5: #{dfhgb_forward.11} parent=0 // pred_fallthru
    _
  // Predicated region
  $region6: #{dfhgb_forward.11} parent=0 // pred_check
    _
  $region7: #{dfhgb_forward.11} parent=0 // pred_check_branch
    %13 = sbr.rel (0) target = $region9
  $region8: #{dfhgb_forward.11} parent=0 // pred_region
    _
  $region9: #{dfhgb_forward.11} parent=0 // pred_fallthru
    _
  // Predicated region
  $region10: #{dfhgb_forward.11} parent=0 // pred_check
    _
  $region11: #{dfhgb_forward.11} parent=0 // pred_check_branch
    %15 = sbr.rel (0) target = $region13
  $region12: #{dfhgb_forward.11} parent=0 // pred_region
    _
  $region13: #{dfhgb_forward.11} parent=0 // pred_fallthru
    _
  %v16 = vld [vmem:[%s0] sm:$0xff]
  %v17 = vld [vmem:[%s0 + $0x8] sm:$0xff]
  %v18 = vld [vmem:[%s1] sm:$0xff]
  %v19 = vld [vmem:[%s1 + $0x8] sm:$0xff]
  %v20 = vld [vmem:[%s1 + $0x10] sm:$0xff]
  %v21 = vld [vmem:[%s1 + $0x18] sm:$0xff]
  %v22 = vld [vmem:[%s1 + $0x20] sm:$0xff]
  %v23 = vld [vmem:[%s1 + $0x28] sm:$0xff]
  %v24 = vld [vmem:[%s1 + $0x30] sm:$0xff]
  %v25 = vld [vmem:[%s1 + $0x38] sm:$0xff]
  %v26 = vld [vmem:[%s1 + $0x40] sm:$0xff]
  %v27 = vld [vmem:[%s1 + $0x48] sm:$0xff]
  %v28 = vld [vmem:[%s1 + $0x50] sm:$0xff]
  %v29 = vld [vmem:[%s1 + $0x58] sm:$0xff]
  %v30 = vld [vmem:[%s1 + $0x60] sm:$0xff]
  %v31 = vld [vmem:[%s1 + $0x68] sm:$0xff]
  %v32 = vld [vmem:[%s1 + $0x70] sm:$0xff]
  %v33 = vld [vmem:[%s1 + $0x78] sm:$0xff]
  %v34 = vld [vmem:[%s1 + $0x80] sm:$0xff]
  %v35 = vld [vmem:[%s1 + $0x88] sm:$0xff]
  %v36 = vld [vmem:[%s1 + $0x90] sm:$0xff]
  %v37 = vld [vmem:[%s1 + $0x98] sm:$0xff]
  %v38 = vld [vmem:[%s1 + $0xa0] sm:$0xff]
  %v39 = vld [vmem:[%s1 + $0xa8] sm:$0xff]
  %v40 = vld [vmem:[%s1 + $0xb0] sm:$0xff]
  %v41 = vld [vmem:[%s1 + $0xb8] sm:$0xff]
  %v42 = vld [vmem:[%s1 + $0xc0] sm:$0xff]
  %v43 = vld [vmem:[%s1 + $0xc8] sm:$0xff]
  %v44 = vld [vmem:[%s1 + $0xd0] sm:$0xff]
  %v45 = vld [vmem:[%s1 + $0xd8] sm:$0xff]
  %v46 = vld [vmem:[%s1 + $0xe0] sm:$0xff]
  %v47 = vld [vmem:[%s1 + $0xe8] sm:$0xff]
  %v48 = vld [vmem:[%s1 + $0xf0] sm:$0xff]
  %v49 = vld [vmem:[%s1 + $0xf8] sm:$0xff]
  %v52 = vunpack.c.l.b16 %v16
  %v53 = vunpack.c.h.b16 %v16
  %v54 = vunpack.c.l.b16 %v17
  %v55 = vunpack.c.h.b16 %v17
  %v56 = vpack.c.b16 %v54, %v52
  %v57 = vpack.c.b16 %v55, %v53
  %v92 = vunpack.c.l.b16 %v18
  %v93 = vunpack.c.h.b16 %v18
  %v94 = vunpack.c.l.b16 %v19
  %v95 = vunpack.c.h.b16 %v19
  %v96 = vunpack.c.l.b16 %v20
  %v97 = vunpack.c.h.b16 %v20
  %v98 = vunpack.c.l.b16 %v21
  %v99 = vunpack.c.h.b16 %v21
  %v100 = vunpack.c.l.b16 %v22
  %v101 = vunpack.c.h.b16 %v22
  %v102 = vunpack.c.l.b16 %v23
  %v103 = vunpack.c.h.b16 %v23
  %v104 = vunpack.c.l.b16 %v24
  %v105 = vunpack.c.h.b16 %v24
  %v106 = vunpack.c.l.b16 %v25
  %v107 = vunpack.c.h.b16 %v25
  %v108 = vunpack.c.l.b16 %v26
  %v109 = vunpack.c.h.b16 %v26
  %v110 = vunpack.c.l.b16 %v27
  %v111 = vunpack.c.h.b16 %v27
  %v112 = vunpack.c.l.b16 %v28
  %v113 = vunpack.c.h.b16 %v28
  %v114 = vunpack.c.l.b16 %v29
  %v115 = vunpack.c.h.b16 %v29
  %v116 = vunpack.c.l.b16 %v30
  %v117 = vunpack.c.h.b16 %v30
  %v118 = vunpack.c.l.b16 %v31
  %v119 = vunpack.c.h.b16 %v31
  %v120 = vunpack.c.l.b16 %v32
  %v121 = vunpack.c.h.b16 %v32
  %v122 = vunpack.c.l.b16 %v33
  %v123 = vunpack.c.h.b16 %v33
  %v124 = vunpack.c.l.b16 %v34
  %v125 = vunpack.c.h.b16 %v34
  %v126 = vunpack.c.l.b16 %v35
  %v127 = vunpack.c.h.b16 %v35
  %v128 = vunpack.c.l.b16 %v36
  %v129 = vunpack.c.h.b16 %v36
  %v130 = vunpack.c.l.b16 %v37
  %v131 = vunpack.c.h.b16 %v37
  %v132 = vunpack.c.l.b16 %v38
  %v133 = vunpack.c.h.b16 %v38
  %v134 = vunpack.c.l.b16 %v39
  %v135 = vunpack.c.h.b16 %v39
  %v136 = vunpack.c.l.b16 %v40
  %v137 = vunpack.c.h.b16 %v40
  %v138 = vunpack.c.l.b16 %v41
  %v139 = vunpack.c.h.b16 %v41
  %v140 = vunpack.c.l.b16 %v42
  %v141 = vunpack.c.h.b16 %v42
  %v142 = vunpack.c.l.b16 %v43
  %v143 = vunpack.c.h.b16 %v43
  %v144 = vunpack.c.l.b16 %v44
  %v145 = vunpack.c.h.b16 %v44
  %v146 = vunpack.c.l.b16 %v45
  %v147 = vunpack.c.h.b16 %v45
  %v148 = vunpack.c.l.b16 %v46
  %v149 = vunpack.c.h.b16 %v46
  %v150 = vunpack.c.l.b16 %v47
  %v151 = vunpack.c.h.b16 %v47
  %v152 = vunpack.c.l.b16 %v48
  %v153 = vunpack.c.h.b16 %v48
  %v154 = vunpack.c.l.b16 %v49
  %v155 = vunpack.c.h.b16 %v49
  %v156 = vpack.c.b16 %v94, %v92
  %v157 = vpack.c.b16 %v95, %v93
  %v158 = vpack.c.b16 %v98, %v96
  %v159 = vpack.c.b16 %v99, %v97
  %v160 = vpack.c.b16 %v102, %v100
  %v161 = vpack.c.b16 %v103, %v101
  %v162 = vpack.c.b16 %v106, %v104
  %v163 = vpack.c.b16 %v107, %v105
  %v164 = vpack.c.b16 %v110, %v108
  %v165 = vpack.c.b16 %v111, %v109
  %v166 = vpack.c.b16 %v114, %v112
  %v167 = vpack.c.b16 %v115, %v113
  %v168 = vpack.c.b16 %v118, %v116
  %v169 = vpack.c.b16 %v119, %v117
  %v170 = vpack.c.b16 %v122, %v120
  %v171 = vpack.c.b16 %v123, %v121
  %v172 = vpack.c.b16 %v126, %v124
  %v173 = vpack.c.b16 %v127, %v125
  %v174 = vpack.c.b16 %v130, %v128
  %v175 = vpack.c.b16 %v131, %v129
  %v176 = vpack.c.b16 %v134, %v132
  %v177 = vpack.c.b16 %v135, %v133
  %v178 = vpack.c.b16 %v138, %v136
  %v179 = vpack.c.b16 %v139, %v137
  %v180 = vpack.c.b16 %v142, %v140
  %v181 = vpack.c.b16 %v143, %v141
  %v182 = vpack.c.b16 %v146, %v144
  %v183 = vpack.c.b16 %v147, %v145
  %v184 = vpack.c.b16 %v150, %v148
  %v185 = vpack.c.b16 %v151, %v149
  %v186 = vpack.c.b16 %v154, %v152
  %v187 = vpack.c.b16 %v155, %v153
  %220 = vmatpush.bf16.msra.mxu0 %v170
  %221 = vmatpush.bf16.msra.mxu0 %v168
  %222 = vmatpush.bf16.msra.mxu0 %v166
  %223 = vmatpush.bf16.msra.mxu0 %v164
  %224 = vmatpush.bf16.msra.mxu0 %v162
  %225 = vmatpush.bf16.msra.mxu0 %v160
  %226 = vmatpush.bf16.msra.mxu0 %v158
  %227 = vmatpush.bf16.msra.mxu0 %v156
  %228 = vmatmul.bf16.gmra.mxu0 %v56
  %v229 = vpop.f32.mrf.mxu0
  %v230 = vadd.f32 0.0, %v229
  %v231 = vpop.f32.mrf.mxu0
  %v232 = vadd.f32 0.0, %v231
  %233 = vdwg.mxu0
  %234 = vmatpush.bf16.msra.mxu0 %v186
  %235 = vmatpush.bf16.msra.mxu0 %v184
  %236 = vmatpush.bf16.msra.mxu0 %v182
  %237 = vmatpush.bf16.msra.mxu0 %v180
  %238 = vmatpush.bf16.msra.mxu0 %v178
  %239 = vmatpush.bf16.msra.mxu0 %v176
  %240 = vmatpush.bf16.msra.mxu0 %v174
  %241 = vmatpush.bf16.msra.mxu0 %v172
  %242 = vmatmul.bf16.gmra.mxu0 %v57
  %v243 = vpop.f32.mrf.mxu0
  %v244 = vadd.f32 %v230, %v243
  %v245 = vpop.f32.mrf.mxu0
  %v246 = vadd.f32 %v232, %v245
  %247 = vdwg.mxu0
  %248 = vmatpush.bf16.msra.mxu0 %v171
  %249 = vmatpush.bf16.msra.mxu0 %v169
  %250 = vmatpush.bf16.msra.mxu0 %v167
  %251 = vmatpush.bf16.msra.mxu0 %v165
  %252 = vmatpush.bf16.msra.mxu0 %v163
  %253 = vmatpush.bf16.msra.mxu0 %v161
  %254 = vmatpush.bf16.msra.mxu0 %v159
  %255 = vmatpush.bf16.msra.mxu0 %v157
  %256 = vmatmul.bf16.gmra.mxu0 %v56
  %v257 = vpop.f32.mrf.mxu0
  %v258 = vadd.f32 0.0, %v257
  %v259 = vpop.f32.mrf.mxu0
  %v260 = vadd.f32 0.0, %v259
  %261 = vdwg.mxu0
  %262 = vmatpush.bf16.msra.mxu0 %v187
  %263 = vmatpush.bf16.msra.mxu0 %v185
  %264 = vmatpush.bf16.msra.mxu0 %v183
  %265 = vmatpush.bf16.msra.mxu0 %v181
  %266 = vmatpush.bf16.msra.mxu0 %v179
  %267 = vmatpush.bf16.msra.mxu0 %v177
  %268 = vmatpush.bf16.msra.mxu0 %v175
  %269 = vmatpush.bf16.msra.mxu0 %v173
  %270 = vmatmul.bf16.gmra.mxu0 %v57
  %v271 = vpop.f32.mrf.mxu0
  %v272 = vadd.f32 %v258, %v271
  %v273 = vpop.f32.mrf.mxu0
  %v274 = vadd.f32 %v260, %v273
  %275 = vdwg.mxu0
  %276 = vst [vmem:[%s3] sm:$0xff] %v244
  %277 = vst [vmem:[%s3 + $0x8] sm:$0xff] %v272
  %278 = vst [vmem:[%s3 + $0x10] sm:$0xff] %v246
  %279 = vst [vmem:[%s3 + $0x18] sm:$0xff] %v274
  %v280 = vld [vmem:[%s2] sm:$0xff]
  %v281 = vld [vmem:[%s2 + $0x8] sm:$0xff]
  %v282 = vld [vmem:[%s2 + $0x10] sm:$0xff]
  %v283 = vld [vmem:[%s2 + $0x18] sm:$0xff]
  %v284 = vld [vmem:[%s2 + $0x20] sm:$0xff]
  %v285 = vld [vmem:[%s2 + $0x28] sm:$0xff]
  %v286 = vld [vmem:[%s2 + $0x30] sm:$0xff]
  %v287 = vld [vmem:[%s2 + $0x38] sm:$0xff]
  %v288 = vld [vmem:[%s2 + $0x40] sm:$0xff]
  %v289 = vld [vmem:[%s2 + $0x48] sm:$0xff]
  %v290 = vld [vmem:[%s2 + $0x50] sm:$0xff]
  %v291 = vld [vmem:[%s2 + $0x58] sm:$0xff]
  %v292 = vld [vmem:[%s2 + $0x60] sm:$0xff]
  %v293 = vld [vmem:[%s2 + $0x68] sm:$0xff]
  %v294 = vld [vmem:[%s2 + $0x70] sm:$0xff]
  %v295 = vld [vmem:[%s2 + $0x78] sm:$0xff]
  %v296 = vld [vmem:[%s2 + $0x80] sm:$0xff]
  %v297 = vld [vmem:[%s2 + $0x88] sm:$0xff]
  %v298 = vld [vmem:[%s2 + $0x90] sm:$0xff]
  %v299 = vld [vmem:[%s2 + $0x98] sm:$0xff]
  %v300 = vld [vmem:[%s2 + $0xa0] sm:$0xff]
  %v301 = vld [vmem:[%s2 + $0xa8] sm:$0xff]
  %v302 = vld [vmem:[%s2 + $0xb0] sm:$0xff]
  %v303 = vld [vmem:[%s2 + $0xb8] sm:$0xff]
  %v304 = vld [vmem:[%s2 + $0xc0] sm:$0xff]
  %v305 = vld [vmem:[%s2 + $0xc8] sm:$0xff]
  %v306 = vld [vmem:[%s2 + $0xd0] sm:$0xff]
  %v307 = vld [vmem:[%s2 + $0xd8] sm:$0xff]
  %v308 = vld [vmem:[%s2 + $0xe0] sm:$0xff]
  %v309 = vld [vmem:[%s2 + $0xe8] sm:$0xff]
  %v310 = vld [vmem:[%s2 + $0xf0] sm:$0xff]
  %v311 = vld [vmem:[%s2 + $0xf8] sm:$0xff]
  %v344 = vunpack.c.l.b16 %v280
  %v345 = vunpack.c.h.b16 %v280
  %v346 = vunpack.c.l.b16 %v281
  %v347 = vunpack.c.h.b16 %v281
  %v348 = vunpack.c.l.b16 %v282
  %v349 = vunpack.c.h.b16 %v282
  %v350 = vunpack.c.l.b16 %v283
  %v351 = vunpack.c.h.b16 %v283
  %v352 = vunpack.c.l.b16 %v284
  %v353 = vunpack.c.h.b16 %v284
  %v354 = vunpack.c.l.b16 %v285
  %v355 = vunpack.c.h.b16 %v285
  %v356 = vunpack.c.l.b16 %v286
  %v357 = vunpack.c.h.b16 %v286
  %v358 = vunpack.c.l.b16 %v287
  %v359 = vunpack.c.h.b16 %v287
  %v360 = vunpack.c.l.b16 %v288
  %v361 = vunpack.c.h.b16 %v288
  %v362 = vunpack.c.l.b16 %v289
  %v363 = vunpack.c.h.b16 %v289
  %v364 = vunpack.c.l.b16 %v290
  %v365 = vunpack.c.h.b16 %v290
  %v366 = vunpack.c.l.b16 %v291
  %v367 = vunpack.c.h.b16 %v291
  %v368 = vunpack.c.l.b16 %v292
  %v369 = vunpack.c.h.b16 %v292
  %v370 = vunpack.c.l.b16 %v293
  %v371 = vunpack.c.h.b16 %v293
  %v372 = vunpack.c.l.b16 %v294
  %v373 = vunpack.c.h.b16 %v294
  %v374 = vunpack.c.l.b16 %v295
  %v375 = vunpack.c.h.b16 %v295
  %v376 = vunpack.c.l.b16 %v296
  %v377 = vunpack.c.h.b16 %v296
  %v378 = vunpack.c.l.b16 %v297
  %v379 = vunpack.c.h.b16 %v297
  %v380 = vunpack.c.l.b16 %v298
  %v381 = vunpack.c.h.b16 %v298
  %v382 = vunpack.c.l.b16 %v299
  %v383 = vunpack.c.h.b16 %v299
  %v384 = vunpack.c.l.b16 %v300
  %v385 = vunpack.c.h.b16 %v300
  %v386 = vunpack.c.l.b16 %v301
  %v387 = vunpack.c.h.b16 %v301
  %v388 = vunpack.c.l.b16 %v302
  %v389 = vunpack.c.h.b16 %v302
  %v390 = vunpack.c.l.b16 %v303
  %v391 = vunpack.c.h.b16 %v303
  %v392 = vunpack.c.l.b16 %v304
  %v393 = vunpack.c.h.b16 %v304
  %v394 = vunpack.c.l.b16 %v305
  %v395 = vunpack.c.h.b16 %v305
  %v396 = vunpack.c.l.b16 %v306
  %v397 = vunpack.c.h.b16 %v306
  %v398 = vunpack.c.l.b16 %v307
  %v399 = vunpack.c.h.b16 %v307
  %v400 = vunpack.c.l.b16 %v308
  %v401 = vunpack.c.h.b16 %v308
  %v402 = vunpack.c.l.b16 %v309
  %v403 = vunpack.c.h.b16 %v309
  %v404 = vunpack.c.l.b16 %v310
  %v405 = vunpack.c.h.b16 %v310
  %v406 = vunpack.c.l.b16 %v311
  %v407 = vunpack.c.h.b16 %v311
  %v408 = vpack.c.b16 %v346, %v344
  %v409 = vpack.c.b16 %v347, %v345
  %v410 = vpack.c.b16 %v350, %v348
  %v411 = vpack.c.b16 %v351, %v349
  %v412 = vpack.c.b16 %v354, %v352
  %v413 = vpack.c.b16 %v355, %v353
  %v414 = vpack.c.b16 %v358, %v356
  %v415 = vpack.c.b16 %v359, %v357
  %v416 = vpack.c.b16 %v362, %v360
  %v417 = vpack.c.b16 %v363, %v361
  %v418 = vpack.c.b16 %v366, %v364
  %v419 = vpack.c.b16 %v367, %v365
  %v420 = vpack.c.b16 %v370, %v368
  %v421 = vpack.c.b16 %v371, %v369
  %v422 = vpack.c.b16 %v374, %v372
  %v423 = vpack.c.b16 %v375, %v373
  %v424 = vpack.c.b16 %v378, %v376
  %v425 = vpack.c.b16 %v379, %v377
  %v426 = vpack.c.b16 %v382, %v380
  %v427 = vpack.c.b16 %v383, %v381
  %v428 = vpack.c.b16 %v386, %v384
  %v429 = vpack.c.b16 %v387, %v385
  %v430 = vpack.c.b16 %v390, %v388
  %v431 = vpack.c.b16 %v391, %v389
  %v432 = vpack.c.b16 %v394, %v392
  %v433 = vpack.c.b16 %v395, %v393
  %v434 = vpack.c.b16 %v398, %v396
  %v435 = vpack.c.b16 %v399, %v397
  %v436 = vpack.c.b16 %v402, %v400
  %v437 = vpack.c.b16 %v403, %v401
  %v438 = vpack.c.b16 %v406, %v404
  %v439 = vpack.c.b16 %v407, %v405
  %472 = vmatpush.bf16.msra.mxu0 %v422
  %473 = vmatpush.bf16.msra.mxu0 %v420
  %474 = vmatpush.bf16.msra.mxu0 %v418
  %475 = vmatpush.bf16.msra.mxu0 %v416
  %476 = vmatpush.bf16.msra.mxu0 %v414
  %477 = vmatpush.bf16.msra.mxu0 %v412
  %478 = vmatpush.bf16.msra.mxu0 %v410
  %479 = vmatpush.bf16.msra.mxu0 %v408
  %480 = vmatmul.bf16.gmra.mxu0 %v56
  %v481 = vpop.f32.mrf.mxu0
  %v482 = vadd.f32 0.0, %v481
  %v483 = vpop.f32.mrf.mxu0
  %v484 = vadd.f32 0.0, %v483
  %485 = vdwg.mxu0
  %486 = vmatpush.bf16.msra.mxu0 %v438
  %487 = vmatpush.bf16.msra.mxu0 %v436
  %488 = vmatpush.bf16.msra.mxu0 %v434
  %489 = vmatpush.bf16.msra.mxu0 %v432
  %490 = vmatpush.bf16.msra.mxu0 %v430
  %491 = vmatpush.bf16.msra.mxu0 %v428
  %492 = vmatpush.bf16.msra.mxu0 %v426
  %493 = vmatpush.bf16.msra.mxu0 %v424
  %494 = vmatmul.bf16.gmra.mxu0 %v57
  %v495 = vpop.f32.mrf.mxu0
  %v496 = vadd.f32 %v482, %v495
  %v497 = vpop.f32.mrf.mxu0
  %v498 = vadd.f32 %v484, %v497
  %499 = vdwg.mxu0
  %500 = vmatpush.bf16.msra.mxu0 %v423
  %501 = vmatpush.bf16.msra.mxu0 %v421
  %502 = vmatpush.bf16.msra.mxu0 %v419
  %503 = vmatpush.bf16.msra.mxu0 %v417
  %504 = vmatpush.bf16.msra.mxu0 %v415
  %505 = vmatpush.bf16.msra.mxu0 %v413
  %506 = vmatpush.bf16.msra.mxu0 %v411
  %507 = vmatpush.bf16.msra.mxu0 %v409
  %508 = vmatmul.bf16.gmra.mxu0 %v56
  %v509 = vpop.f32.mrf.mxu0
  %v510 = vadd.f32 0.0, %v509
  %v511 = vpop.f32.mrf.mxu0
  %v512 = vadd.f32 0.0, %v511
  %513 = vdwg.mxu0
  %514 = vmatpush.bf16.msra.mxu0 %v439
  %515 = vmatpush.bf16.msra.mxu0 %v437
  %516 = vmatpush.bf16.msra.mxu0 %v435
  %517 = vmatpush.bf16.msra.mxu0 %v433
  %518 = vmatpush.bf16.msra.mxu0 %v431
  %519 = vmatpush.bf16.msra.mxu0 %v429
  %520 = vmatpush.bf16.msra.mxu0 %v427
  %521 = vmatpush.bf16.msra.mxu0 %v425
  %522 = vmatmul.bf16.gmra.mxu0 %v57
  %v523 = vpop.f32.mrf.mxu0
  %v524 = vadd.f32 %v510, %v523
  %v525 = vpop.f32.mrf.mxu0
  %v526 = vadd.f32 %v512, %v525
  %527 = vdwg.mxu0
  %528 = vst [vmem:[%s4] sm:$0xff] %v496
  %529 = vst [vmem:[%s4 + $0x8] sm:$0xff] %v524
  %530 = vst [vmem:[%s4 + $0x10] sm:$0xff] %v498
  %531 = vst [vmem:[%s4 + $0x18] sm:$0xff] %v526
  // Predicated region
  $region14: #{dfhgb_forward.11} parent=0 // pred_check
    _
  $region15: #{dfhgb_forward.11} parent=0 // pred_check_branch
    %533 = sbr.rel (0) target = $region17
  $region16: #{dfhgb_forward.11} parent=0 // pred_region
    _
  $region17: #{dfhgb_forward.11} parent=0 // pred_fallthru
    _
  // Predicated region
  $region18: #{dfhgb_forward.11} parent=0 // pred_check
    _
  $region19: #{dfhgb_forward.11} parent=0 // pred_check_branch
    %535 = sbr.rel (0) target = $region21
  $region20: #{dfhgb_forward.11} parent=0 // pred_region
    _
  $region21: #{dfhgb_forward.11} parent=0 // pred_fallthru
    _
  // Predicated region
  $region22: #{dfhgb_forward.11} parent=0 // pred_check
    _
  $region23: #{dfhgb_forward.11} parent=0 // pred_check_branch
    %537 = sbr.rel (0) target = $region25
  $region24: #{dfhgb_forward.11} parent=0 // pred_region
    _
  $region25: #{dfhgb_forward.11} parent=0 // pred_fallthru
    _
  // Predicated region
  $region26: #{dfhgb_forward.11} parent=0 // pred_check
    _
  $region27: #{dfhgb_forward.11} parent=0 // pred_check_branch
    %539 = sbr.rel (0) target = $region29
  $region28: #{dfhgb_forward.11} parent=0 // pred_region
    _
  $region29: #{dfhgb_forward.11} parent=0 // pred_fallthru
    _

// kernel: dfhgb_forward.12
$region0: #{dfhgb_forward.12}
  #allocation0 [shape = 'u32[]', space=smem, size = 0x4, offset = 0x4, fixed_abs, tag = 'smem constant byte address 0x4 - core index']
  #allocation1 [shape = 'u32[72,128]{1,0:T(1,128)}', space=vmem, size = 0x9000, scoped, tag = 'internal scratch']
  %s0 = inlined_call_operand.vmem [shape: bf16[2,72,256], index: 0, kind: input, shape index: {}]
  %s1 = inlined_call_operand.vmem [shape: bf16[8,72], index: 1, kind: input, shape index: {}]
  %s2 = inlined_call_operand.vmem [shape: f32[8,1], index: 2, kind: input, shape index: {}]
  %s3 = inlined_call_operand.vmem [shape: f32[2,8,256], index: 3, kind: output, shape index: {}]
  %s4 = sld [smem:[#allocation0]]
  $region45: #{dfhgb_forward.12} parent=0
    _
  %s6 = ssub.s32 1, %s4
  %s7 = scalar_select 0, %s6, %s4
  loop: start=0, step=1, limit=4
  $region2: #{dfhgb_forward.12} parent=0 // loop_pre_header
    _
  $region3: #{dfhgb_forward.12} parent=0 // loop_header
    %s9 = sphi 0, %s13
    %p10 = scmp.ge.s32.totalorder %s9, 4
    %s16 = sphi 0, %s28
    %s17 = sphi 0, %s24
    %s18 = sphi 0, %s16
    %s19 = sphi 0, %s17
    %s20 = sphi 0, %s18
    %s21 = sphi 0, %s19
    %s33 = sphi 0, %s35
    %s36 = sphi 0, %s33
    %s37 = sphi 0, %s36
    %s53 = sphi 0, %s37
    %s57 = sphi 0, %s57
    %s59 = sphi 0, %s57
    %s60 = sphi 0, %s59
    %s74 = sphi 0, %s60
    %s78 = sphi 0, %s78
    %s80 = sphi 0, %s78
    %s81 = sphi 0, %s80
    %s95 = sphi 0, %s81
    %s103 = sphi 0, %s105
    %s106 = sphi 0, %s103
    %s107 = sphi 0, %s106
    %s123 = sphi 0, %s107
  $region4: #{dfhgb_forward.12} parent=0 // loop_header_branch
    %12 = sbr.rel (%p10) target = $region8
  $region5: #{dfhgb_forward.12} parent=0 // loop_body
    %s14 = ssub.s32 %s9, 1
    %s15 = ssub.s32 %s9, 2
    %s22 = sadd.s32 1, %s17
    %p23 = scmp.ge.s32.totalorder %s22, 1
    %s24 = scalar_select %p23, 0, %s22
    %s25 = sadd.s32 1, %s16
    %s26 = scalar_select %p23, %s25, %s16
    %p27 = scmp.ge.s32.totalorder %s26, 2
    %s28 = scalar_select %p27, 0, %s26
    %s29 = ssub.s32 %s16, %s28
    %s30 = ssub.s32 %s17, %s24
    %s31 = sor.u32 %s29, %s30
    %p32 = scmp.eq.s32.totalorder %s31, 0
    %s34 = sadd.s32 %s33, 1
    %s35 = scalar_select %p32, %s33, %s34
    %p38 = pneg %p32
    %p39 = scmp.eq.s32.totalorder %s9, 1
    %p40 = por %p38, %p39
    %p41 = scmp.ne.s32.totalorder %s33, %s36
    %p42 = scmp.eq.s32.totalorder %s9, 0
    %p43 = por %p41, %p42
    %p44 = scmp.ne.s32.totalorder %s33, %s36
    %p45 = scmp.eq.s32.totalorder %s14, 1
    %p46 = por %p44, %p45
    %p47 = scmp.ne.s32.totalorder %s36, %s37
    %p48 = scmp.eq.s32.totalorder %s14, 0
    %p49 = por %p47, %p48
    %p50 = scmp.ne.s32.totalorder %s36, %s37
    %p51 = scmp.eq.s32.totalorder %s15, 1
    %p52 = por %p50, %p51
    %p54 = scmp.ne.s32.totalorder %s37, %s53
    %p55 = scmp.eq.s32.totalorder %s15, 0
    %p56 = por %p54, %p55
    %s58 = sadd.s32 %s57, 1
    %p61 = scmp.eq.s32.totalorder %s9, 1
    %p62 = scmp.ne.s32.totalorder %s57, %s59
    %p63 = scmp.eq.s32.totalorder %s9, 0
    %p64 = por %p62, %p63
    %p65 = scmp.ne.s32.totalorder %s57, %s59
    %p66 = scmp.eq.s32.totalorder %s14, 1
    %p67 = por %p65, %p66
    %p68 = scmp.ne.s32.totalorder %s59, %s60
    %p69 = scmp.eq.s32.totalorder %s14, 0
    %p70 = por %p68, %p69
    %p71 = scmp.ne.s32.totalorder %s59, %s60
    %p72 = scmp.eq.s32.totalorder %s15, 1
    %p73 = por %p71, %p72
    %p75 = scmp.ne.s32.totalorder %s60, %s74
    %p76 = scmp.eq.s32.totalorder %s15, 0
    %p77 = por %p75, %p76
    %s79 = sadd.s32 %s78, 1
    %p82 = scmp.eq.s32.totalorder %s9, 1
    %p83 = scmp.ne.s32.totalorder %s78, %s80
    %p84 = scmp.eq.s32.totalorder %s9, 0
    %p85 = por %p83, %p84
    %p86 = scmp.ne.s32.totalorder %s78, %s80
    %p87 = scmp.eq.s32.totalorder %s14, 1
    %p88 = por %p86, %p87
    %p89 = scmp.ne.s32.totalorder %s80, %s81
    %p90 = scmp.eq.s32.totalorder %s14, 0
    %p91 = por %p89, %p90
    %p92 = scmp.ne.s32.totalorder %s80, %s81
    %p93 = scmp.eq.s32.totalorder %s15, 1
    %p94 = por %p92, %p93
    %p96 = scmp.ne.s32.totalorder %s81, %s95
    %p97 = scmp.eq.s32.totalorder %s15, 0
    %p98 = por %p96, %p97
    %s99 = ssub.s32 %s16, %s28
    %s100 = ssub.s32 %s17, %s24
    %s101 = sor.u32 %s99, %s100
    %p102 = scmp.eq.s32.totalorder %s101, 0
    %s104 = sadd.s32 %s103, 1
    %s105 = scalar_select %p102, %s103, %s104
    %p108 = pneg %p102
    %p109 = scmp.eq.s32.totalorder %s9, 1
    %p110 = por %p108, %p109
    %p111 = scmp.ne.s32.totalorder %s103, %s106
    %p112 = scmp.eq.s32.totalorder %s9, 0
    %p113 = por %p111, %p112
    %p114 = scmp.ne.s32.totalorder %s103, %s106
    %p115 = scmp.eq.s32.totalorder %s14, 1
    %p116 = por %p114, %p115
    %p117 = scmp.ne.s32.totalorder %s106, %s107
    %p118 = scmp.eq.s32.totalorder %s14, 0
    %p119 = por %p117, %p118
    %p120 = scmp.ne.s32.totalorder %s106, %s107
    %p121 = scmp.eq.s32.totalorder %s15, 1
    %p122 = por %p120, %p121
    %p124 = scmp.ne.s32.totalorder %s107, %s123
    %p125 = scmp.eq.s32.totalorder %s15, 0
    %p126 = por %p124, %p125
    %p127 = scmp.le.s32.totalorder 1, %s9
    %p128 = scmp.lt.s32.totalorder %s9, 3
    %p129 = pnand %p127, %p128
    %p130 = pneg %p129
    // Predicated region
    $region9: #{dfhgb_forward.12} parent=5 // pred_check
      _
    $region10: #{dfhgb_forward.12} parent=5 // pred_check_branch
      %132 = sbr.rel (%p129) target = $region12
    $region11: #{dfhgb_forward.12} parent=5 // pred_region
      %s133 = ssub.s32 %s9, 1
      // Predicated region
      $region13: #{dfhgb_forward.12} parent=11 // pred_check
        %p134 = pneg %p70
      $region14: #{dfhgb_forward.12} parent=11 // pred_check_branch
        %136 = sbr.rel (%p134) target = $region16
      $region15: #{dfhgb_forward.12} parent=11 // pred_region
        _
      $region16: #{dfhgb_forward.12} parent=11 // pred_fallthru
        _
      // Predicated region
      $region17: #{dfhgb_forward.12} parent=11 // pred_check
        %p137 = pneg %p91
      $region18: #{dfhgb_forward.12} parent=11 // pred_check_branch
        %139 = sbr.rel (%p137) target = $region20
      $region19: #{dfhgb_forward.12} parent=11 // pred_region
        _
      $region20: #{dfhgb_forward.12} parent=11 // pred_fallthru
        _
    $region12: #{dfhgb_forward.12} parent=5 // pred_fallthru
      _
    %p140 = scmp.lt.s32.totalorder %s9, 2
    // Predicated region
    $region21: #{dfhgb_forward.12} parent=5 // pred_check
      %p141 = pneg %p140
    $region22: #{dfhgb_forward.12} parent=5 // pred_check_branch
      %143 = sbr.rel (%p141) target = $region24
    $region23: #{dfhgb_forward.12} parent=5 // pred_region
      // Predicated region
      $region25: #{dfhgb_forward.12} parent=23 // pred_check
        %p144 = pneg %p43
      $region26: #{dfhgb_forward.12} parent=23 // pred_check_branch
        %146 = sbr.rel (%p144) target = $region28
      $region27: #{dfhgb_forward.12} parent=23 // pred_region
        %s147 = smul.u32 2, %s17
        %p148 = scmp.lt.s32.totalorder %s16, 1
        %s149 = scalar_select %p148, %s16, 1
        %p150 = scmp.lt.s32.totalorder %s147, 1
        %s151 = scalar_select %p150, %s147, 1
        %s152 = smul.addr %s149, 18
        %s153 = sadd.s32 %s151, %s152
        %s154 = smul.addr %s153, 4
        %s155 = scalar_lea.vmem %s0, %s154
        %s156 = smul.u32 2, %s17
      $region28: #{dfhgb_forward.12} parent=23 // pred_fallthru
        _
    $region24: #{dfhgb_forward.12} parent=5 // pred_fallthru
      _
    %p157 = scmp.le.s32.totalorder 1, %s9
    %p158 = scmp.lt.s32.totalorder %s9, 3
    %p159 = pnand %p157, %p158
    %p160 = pneg %p159
    // Predicated region
    $region29: #{dfhgb_forward.12} parent=5 // pred_check
      _
    $region30: #{dfhgb_forward.12} parent=5 // pred_check_branch
      %162 = sbr.rel (%p159) target = $region32
    $region31: #{dfhgb_forward.12} parent=5 // pred_region
      %s163 = ssub.s32 %s9, 1
      %s164 = smul.u32 2, %s19
      %p165 = scmp.lt.s32.totalorder %s18, 1
      %s166 = scalar_select %p165, %s18, 1
      %p167 = scmp.lt.s32.totalorder %s164, 1
      %s168 = scalar_select %p167, %s164, 1
      %s169 = smul.addr %s166, 18
      %s170 = sadd.s32 %s168, %s169
      %s171 = smul.addr %s170, 4
      %s172 = scalar_lea.vmem %s0, %s171
      %p173 = pneg %p49
      %p174 = pneg %p46
      %p175 = pneg %p70
      %p176 = pneg %p67
      %p177 = pneg %p91
      %p178 = pneg %p88
      %p179 = pneg %p119
      %p180 = pneg %p116
      %s181 = smul.u32 2, %s19
      %p182 = scmp.lt.s32.totalorder %s18, 1
      %s183 = scalar_select %p182, %s18, 1
      %p184 = scmp.lt.s32.totalorder %s181, 1
      %s185 = scalar_select %p184, %s181, 1
      %s186 = smul.addr %s183, 2
      %s187 = sadd.s32 %s185, %s186
      %s188 = smul.addr %s187, 8
      %s189 = scalar_lea.vmem %s3, %s188
      %s190 = smul.u32 2, %s19
      %p191 = scmp.lt.s32.totalorder %s18, 1
      %s192 = scalar_select %p191, %s18, 1
      %p193 = scmp.lt.s32.totalorder %s190, 1
      %s194 = scalar_select %p193, %s190, 1
      %s195 = smul.addr %s192, 18
      %s196 = sadd.s32 %s194, %s195
      %s197 = smul.addr %s196, 4
      %s198 = scalar_lea.vmem %s0, %s197
      %s199 = smul.u32 2, %s19
      %s200 = smul.u32 2, %s19
      %p201 = scmp.lt.s32.totalorder %s18, 1
      %s202 = scalar_select %p201, %s18, 1
      %p203 = scmp.lt.s32.totalorder %s200, 1
      %s204 = scalar_select %p203, %s200, 1
      %s205 = smul.addr %s202, 2
      %s206 = sadd.s32 %s204, %s205
      %s207 = smul.addr %s206, 8
      %s208 = scalar_lea.vmem %s3, %s207
      %s209 = smul.u32 2, %s19
      %v211 = vld [vmem:[%s1] sm:$0xf]
      %v212 = vld [vmem:[%s198] sm:$0xff]
      %v213 = vld [vmem:[%s198 + $0x8] sm:$0xff]
      %v214 = vld [vmem:[%s198 + $0x10] sm:$0xff]
      %v215 = vld [vmem:[%s198 + $0x18] sm:$0xff]
      %v216 = vld [vmem:[%s198 + $0x20] sm:$0xff]
      %v217 = vld [vmem:[%s198 + $0x28] sm:$0xff]
      %v218 = vld [vmem:[%s198 + $0x30] sm:$0xff]
      %v219 = vld [vmem:[%s198 + $0x38] sm:$0xff]
      %v220 = vld [vmem:[%s198 + $0x40] sm:$0xff]
      %v221 = vld [vmem:[%s2] sm:$0xff]
      %223 = vset.pattern.permute.xlu0 0
      %224 = vperm.xlu0 %223, %v221
      %v225 = vpop.permute.xlu0 %224
      %v236 = vunpack.c.l.b16 %v212
      %v237 = vunpack.c.h.b16 %v212
      %v238 = vunpack.c.l.b16 %v213
      %v239 = vunpack.c.h.b16 %v213
      %v240 = vunpack.c.l.b16 %v214
      %v241 = vunpack.c.h.b16 %v214
      %v242 = vunpack.c.l.b16 %v215
      %v243 = vunpack.c.h.b16 %v215
      %v244 = vunpack.c.l.b16 %v216
      %v245 = vunpack.c.h.b16 %v216
      %v246 = vunpack.c.l.b16 %v217
      %v247 = vunpack.c.h.b16 %v217
      %v248 = vunpack.c.l.b16 %v218
      %v249 = vunpack.c.h.b16 %v218
      %v250 = vunpack.c.l.b16 %v219
      %v251 = vunpack.c.h.b16 %v219
      %v252 = vunpack.c.l.b16 %v220
      %v253 = vunpack.c.h.b16 %v220
      %v254 = vpack.c.b16 %v238, %v236
      %v255 = vpack.c.b16 %v239, %v237
      %v256 = vpack.c.b16 %v242, %v240
      %v257 = vpack.c.b16 %v243, %v241
      %v258 = vpack.c.b16 %v246, %v244
      %v259 = vpack.c.b16 %v247, %v245
      %v260 = vpack.c.b16 %v250, %v248
      %v261 = vpack.c.b16 %v251, %v249
      %v262 = vpack.c.b16 %v252, %v252
      %v263 = vpack.c.b16 %v253, %v253
      %vm272 = vcmask 588800
      %v274 = vsel %vm272, %v211, 0
      %vm276 = vcmask 1043456
      %v278 = vsel %vm276, %v262, 0
      %v281 = vsel %vm276, %v263, 0
      %283 = vmatpush.bf16.msra.mxu0 0
      %284 = vmatpush.bf16.msra.mxu0 0
      %285 = vmatpush.bf16.msra.mxu0 0
      %286 = vmatpush.bf16.msra.mxu0 %v278
      %287 = vmatpush.bf16.msra.mxu0 %v260
      %288 = vmatpush.bf16.msra.mxu0 %v258
      %289 = vmatpush.bf16.msra.mxu0 %v256
      %290 = vmatpush.bf16.msra.mxu0 %v254
      %291 = vmatmul.bf16.gmra.mxu0 %v274
      %v292 = vpop.f32.mrf.mxu0
      %v293 = vadd.f32 %v225, %v292
      %v294 = vpop.f32.mrf.mxu0
      %295 = vdwg.mxu0
      %296 = vmatpush.bf16.msra.mxu0 0
      %297 = vmatpush.bf16.msra.mxu0 0
      %298 = vmatpush.bf16.msra.mxu0 0
      %299 = vmatpush.bf16.msra.mxu0 %v281
      %300 = vmatpush.bf16.msra.mxu0 %v261
      %301 = vmatpush.bf16.msra.mxu0 %v259
      %302 = vmatpush.bf16.msra.mxu0 %v257
      %303 = vmatpush.bf16.msra.mxu0 %v255
      %304 = vmatmul.bf16.gmra.mxu0 %v274
      %v305 = vpop.f32.mrf.mxu0
      %v306 = vadd.f32 %v225, %v305
      %v307 = vpop.f32.mrf.mxu0
      %308 = vdwg.mxu0
      %v309 = vmax.f32 %v293, 0.0
      %v310 = vmax.f32 %v306, 0.0
      %v311 = vxor.u32 %v309, 2147483648
      %v312 = vxor.u32 %v310, 2147483648
      %v313 = vmul.f32 %v311, 1.442695
      %v314 = vpow.pop %v313
      %v315 = vmul.f32 %v312, 1.442695
      %v316 = vpow.pop %v315
      %v317 = vadd.f32 %v314, 1.0
      %v318 = vadd.f32 %v316, 1.0
      %v319 = vrcp.pop %v317
      %v320 = vmul.f32 %v317, %v319
      %v321 = vsub.f32 1.0, %v320
      %v322 = vmul.f32 %v319, %v321
      %v323 = vadd.f32 %v319, %v322
      %vm324 = vweird.f32 %v317
      %vm325 = vweird.f32 %v319
      %vm326 = vmor %vm324, %vm325
      %v327 = vsel %vm326, %v319, %v323
      %v328 = vand.u32 2147483647, %v317
      %vm329 = vcmp.eq.f32.partialorder %v328, 8.507059e+37
      %v330 = vand.u32 %v317, 2147483648
      %v331 = vor.u32 1.1754944e-38, %v330
      %v332 = vsel %vm329, %v331, %v327
      %v333 = vmul.f32 1.0, %v332
      %v334 = vrcp.pop %v318
      %v335 = vmul.f32 %v318, %v334
      %v336 = vsub.f32 1.0, %v335
      %v337 = vmul.f32 %v334, %v336
      %v338 = vadd.f32 %v334, %v337
      %vm339 = vweird.f32 %v318
      %vm340 = vweird.f32 %v334
      %vm341 = vmor %vm339, %vm340
      %v342 = vsel %vm341, %v334, %v338
      %v343 = vand.u32 2147483647, %v318
      %vm344 = vcmp.eq.f32.partialorder %v343, 8.507059e+37
      %v345 = vand.u32 %v318, 2147483648
      %v346 = vor.u32 1.1754944e-38, %v345
      %v347 = vsel %vm344, %v346, %v342
      %v348 = vmul.f32 1.0, %v347
      %349 = vst [vmem:[%s208] sm:$0xff] %v333
      %350 = vst [vmem:[%s208 + $0x8] sm:$0xff] %v348
      %s351 = smul.u32 2, %s19
      %p352 = scmp.lt.s32.totalorder %s18, 1
      %s353 = scalar_select %p352, %s18, 1
      %p354 = scmp.lt.s32.totalorder %s351, 1
      %s355 = scalar_select %p354, %s351, 1
      %s356 = smul.addr %s353, 2
      %s357 = sadd.s32 %s355, %s356
      %s358 = smul.addr %s357, 8
      %s359 = scalar_lea.vmem %s3, %s358
      // Predicated region
      $region33: #{dfhgb_forward.12} parent=31 // pred_check
        %p360 = pneg %p116
      $region34: #{dfhgb_forward.12} parent=31 // pred_check_branch
        %362 = sbr.rel (%p360) target = $region36
      $region35: #{dfhgb_forward.12} parent=31 // pred_region
        %s363 = smul.u32 2, %s19
      $region36: #{dfhgb_forward.12} parent=31 // pred_fallthru
        _
    $region32: #{dfhgb_forward.12} parent=5 // pred_fallthru
      _
    %p364 = scmp.le.s32.totalorder 2, %s9
    // Predicated region
    $region37: #{dfhgb_forward.12} parent=5 // pred_check
      %p365 = pneg %p364
    $region38: #{dfhgb_forward.12} parent=5 // pred_check_branch
      %367 = sbr.rel (%p365) target = $region40
    $region39: #{dfhgb_forward.12} parent=5 // pred_region
      %s368 = ssub.s32 %s9, 2
      // Predicated region
      $region41: #{dfhgb_forward.12} parent=39 // pred_check
        %p369 = pneg %p122
      $region42: #{dfhgb_forward.12} parent=39 // pred_check_branch
        %371 = sbr.rel (%p369) target = $region44
      $region43: #{dfhgb_forward.12} parent=39 // pred_region
        %s372 = smul.u32 2, %s21
        %p373 = scmp.lt.s32.totalorder %s20, 1
        %s374 = scalar_select %p373, %s20, 1
        %p375 = scmp.lt.s32.totalorder %s372, 1
        %s376 = scalar_select %p375, %s372, 1
        %s377 = smul.addr %s374, 2
        %s378 = sadd.s32 %s376, %s377
        %s379 = smul.addr %s378, 8
        %s380 = scalar_lea.vmem %s3, %s379
      $region44: #{dfhgb_forward.12} parent=39 // pred_fallthru
        _
    $region40: #{dfhgb_forward.12} parent=5 // pred_fallthru
      _
  $region6: #{dfhgb_forward.12} parent=0 // loop_footer
    %s13 = sadd.s32 1, %s9
  $region7: #{dfhgb_forward.12} parent=0 // loop_footer_branch
    %8 = sbr.rel target = $region3
  $region8: #{dfhgb_forward.12} parent=0 // loop_exit
    _

// kernel: dfhgb_forward.13
$region0: #{dfhgb_forward.13}
  #allocation0 [shape = 'u32[]', space=smem, size = 0x4, offset = 0x4, fixed_abs, tag = 'smem constant byte address 0x4 - core index']
  #allocation1 [shape = 'u32[72,128]{1,0:T(1,128)}', space=vmem, size = 0x9000, scoped, tag = 'internal scratch']
  %s0 = inlined_call_operand.vmem [shape: f32[16,256], index: 0, kind: input, shape index: {}]
  %s1 = inlined_call_operand.vmem [shape: f32[16,256], index: 1, kind: input, shape index: {}]
  %s2 = inlined_call_operand.vmem [shape: f32[16,256], index: 2, kind: input, shape index: {}]
  %s3 = inlined_call_operand.vmem [shape: bf16[256,256], index: 3, kind: input, shape index: {}]
  %s4 = inlined_call_operand.vmem [shape: bf16[256,256], index: 4, kind: input, shape index: {}]
  %s5 = inlined_call_operand.vmem [shape: f32[16,256], index: 5, kind: output, shape index: {}]
  %s6 = sld [smem:[#allocation0]]
  $region30: #{dfhgb_forward.13} parent=0
    _
  %s8 = ssub.s32 1, %s6
  %s9 = scalar_select 0, %s8, %s6
  // Predicated region
  $region2: #{dfhgb_forward.13} parent=0 // pred_check
    _
  $region3: #{dfhgb_forward.13} parent=0 // pred_check_branch
    %11 = sbr.rel (0) target = $region5
  $region4: #{dfhgb_forward.13} parent=0 // pred_region
    _
  $region5: #{dfhgb_forward.13} parent=0 // pred_fallthru
    _
  // Predicated region
  $region6: #{dfhgb_forward.13} parent=0 // pred_check
    _
  $region7: #{dfhgb_forward.13} parent=0 // pred_check_branch
    %13 = sbr.rel (0) target = $region9
  $region8: #{dfhgb_forward.13} parent=0 // pred_region
    _
  $region9: #{dfhgb_forward.13} parent=0 // pred_fallthru
    _
  // Predicated region
  $region10: #{dfhgb_forward.13} parent=0 // pred_check
    _
  $region11: #{dfhgb_forward.13} parent=0 // pred_check_branch
    %15 = sbr.rel (0) target = $region13
  $region12: #{dfhgb_forward.13} parent=0 // pred_region
    _
  $region13: #{dfhgb_forward.13} parent=0 // pred_fallthru
    _
  // Predicated region
  $region14: #{dfhgb_forward.13} parent=0 // pred_check
    _
  $region15: #{dfhgb_forward.13} parent=0 // pred_check_branch
    %17 = sbr.rel (0) target = $region17
  $region16: #{dfhgb_forward.13} parent=0 // pred_region
    _
  $region17: #{dfhgb_forward.13} parent=0 // pred_fallthru
    _
  // Predicated region
  $region18: #{dfhgb_forward.13} parent=0 // pred_check
    _
  $region19: #{dfhgb_forward.13} parent=0 // pred_check_branch
    %19 = sbr.rel (0) target = $region21
  $region20: #{dfhgb_forward.13} parent=0 // pred_region
    _
  $region21: #{dfhgb_forward.13} parent=0 // pred_fallthru
    _
  %v20 = vld [vmem:[%s0] sm:$0xff]
  %v21 = vld [vmem:[%s0 + $0x8] sm:$0xff]
  %v22 = vld [vmem:[%s0 + $0x10] sm:$0xff]
  %v23 = vld [vmem:[%s0 + $0x18] sm:$0xff]
  %v24 = vld [vmem:[%s1] sm:$0xff]
  %v25 = vld [vmem:[%s1 + $0x8] sm:$0xff]
  %v26 = vld [vmem:[%s1 + $0x10] sm:$0xff]
  %v27 = vld [vmem:[%s1 + $0x18] sm:$0xff]
  %v28 = vmul.f32 %v20, %v24
  %v29 = vmul.f32 %v21, %v25
  %v30 = vmul.f32 %v22, %v26
  %v31 = vmul.f32 %v23, %v27
  %v32 = vpack.c.bf16 %v30, %v28
  %v33 = vpack.c.bf16 %v31, %v29
  %v34 = vld [vmem:[%s2] sm:$0xff]
  %v35 = vld [vmem:[%s2 + $0x8] sm:$0xff]
  %v36 = vld [vmem:[%s2 + $0x10] sm:$0xff]
  %v37 = vld [vmem:[%s2 + $0x18] sm:$0xff]
  %v38 = vmul.f32 %v20, %v34
  %v39 = vmul.f32 %v21, %v35
  %v40 = vmul.f32 %v22, %v36
  %v41 = vmul.f32 %v23, %v37
  %v42 = vpack.c.bf16 %v40, %v38
  %v43 = vpack.c.bf16 %v41, %v39
  %v44 = vld [vmem:[%s3] sm:$0xff]
  %v45 = vld [vmem:[%s3 + $0x8] sm:$0xff]
  %v46 = vld [vmem:[%s3 + $0x10] sm:$0xff]
  %v47 = vld [vmem:[%s3 + $0x18] sm:$0xff]
  %v48 = vld [vmem:[%s3 + $0x20] sm:$0xff]
  %v49 = vld [vmem:[%s3 + $0x28] sm:$0xff]
  %v50 = vld [vmem:[%s3 + $0x30] sm:$0xff]
  %v51 = vld [vmem:[%s3 + $0x38] sm:$0xff]
  %v52 = vld [vmem:[%s3 + $0x40] sm:$0xff]
  %v53 = vld [vmem:[%s3 + $0x48] sm:$0xff]
  %v54 = vld [vmem:[%s3 + $0x50] sm:$0xff]
  %v55 = vld [vmem:[%s3 + $0x58] sm:$0xff]
  %v56 = vld [vmem:[%s3 + $0x60] sm:$0xff]
  %v57 = vld [vmem:[%s3 + $0x68] sm:$0xff]
  %v58 = vld [vmem:[%s3 + $0x70] sm:$0xff]
  %v59 = vld [vmem:[%s3 + $0x78] sm:$0xff]
  %v60 = vld [vmem:[%s3 + $0x80] sm:$0xff]
  %v61 = vld [vmem:[%s3 + $0x88] sm:$0xff]
  %v62 = vld [vmem:[%s3 + $0x90] sm:$0xff]
  %v63 = vld [vmem:[%s3 + $0x98] sm:$0xff]
  %v64 = vld [vmem:[%s3 + $0xa0] sm:$0xff]
  %v65 = vld [vmem:[%s3 + $0xa8] sm:$0xff]
  %v66 = vld [vmem:[%s3 + $0xb0] sm:$0xff]
  %v67 = vld [vmem:[%s3 + $0xb8] sm:$0xff]
  %v68 = vld [vmem:[%s3 + $0xc0] sm:$0xff]
  %v69 = vld [vmem:[%s3 + $0xc8] sm:$0xff]
  %v70 = vld [vmem:[%s3 + $0xd0] sm:$0xff]
  %v71 = vld [vmem:[%s3 + $0xd8] sm:$0xff]
  %v72 = vld [vmem:[%s3 + $0xe0] sm:$0xff]
  %v73 = vld [vmem:[%s3 + $0xe8] sm:$0xff]
  %v74 = vld [vmem:[%s3 + $0xf0] sm:$0xff]
  %v75 = vld [vmem:[%s3 + $0xf8] sm:$0xff]
  %v76 = vld [vmem:[%s4] sm:$0xff]
  %v77 = vld [vmem:[%s4 + $0x8] sm:$0xff]
  %v78 = vld [vmem:[%s4 + $0x10] sm:$0xff]
  %v79 = vld [vmem:[%s4 + $0x18] sm:$0xff]
  %v80 = vld [vmem:[%s4 + $0x20] sm:$0xff]
  %v81 = vld [vmem:[%s4 + $0x28] sm:$0xff]
  %v82 = vld [vmem:[%s4 + $0x30] sm:$0xff]
  %v83 = vld [vmem:[%s4 + $0x38] sm:$0xff]
  %v84 = vld [vmem:[%s4 + $0x40] sm:$0xff]
  %v85 = vld [vmem:[%s4 + $0x48] sm:$0xff]
  %v86 = vld [vmem:[%s4 + $0x50] sm:$0xff]
  %v87 = vld [vmem:[%s4 + $0x58] sm:$0xff]
  %v88 = vld [vmem:[%s4 + $0x60] sm:$0xff]
  %v89 = vld [vmem:[%s4 + $0x68] sm:$0xff]
  %v90 = vld [vmem:[%s4 + $0x70] sm:$0xff]
  %v91 = vld [vmem:[%s4 + $0x78] sm:$0xff]
  %v92 = vld [vmem:[%s4 + $0x80] sm:$0xff]
  %v93 = vld [vmem:[%s4 + $0x88] sm:$0xff]
  %v94 = vld [vmem:[%s4 + $0x90] sm:$0xff]
  %v95 = vld [vmem:[%s4 + $0x98] sm:$0xff]
  %v96 = vld [vmem:[%s4 + $0xa0] sm:$0xff]
  %v97 = vld [vmem:[%s4 + $0xa8] sm:$0xff]
  %v98 = vld [vmem:[%s4 + $0xb0] sm:$0xff]
  %v99 = vld [vmem:[%s4 + $0xb8] sm:$0xff]
  %v100 = vld [vmem:[%s4 + $0xc0] sm:$0xff]
  %v101 = vld [vmem:[%s4 + $0xc8] sm:$0xff]
  %v102 = vld [vmem:[%s4 + $0xd0] sm:$0xff]
  %v103 = vld [vmem:[%s4 + $0xd8] sm:$0xff]
  %v104 = vld [vmem:[%s4 + $0xe0] sm:$0xff]
  %v105 = vld [vmem:[%s4 + $0xe8] sm:$0xff]
  %v106 = vld [vmem:[%s4 + $0xf0] sm:$0xff]
  %v107 = vld [vmem:[%s4 + $0xf8] sm:$0xff]
  %v140 = vunpack.c.l.b16 %v44
  %v141 = vunpack.c.h.b16 %v44
  %v142 = vunpack.c.l.b16 %v45
  %v143 = vunpack.c.h.b16 %v45
  %v144 = vunpack.c.l.b16 %v46
  %v145 = vunpack.c.h.b16 %v46
  %v146 = vunpack.c.l.b16 %v47
  %v147 = vunpack.c.h.b16 %v47
  %v148 = vunpack.c.l.b16 %v48
  %v149 = vunpack.c.h.b16 %v48
  %v150 = vunpack.c.l.b16 %v49
  %v151 = vunpack.c.h.b16 %v49
  %v152 = vunpack.c.l.b16 %v50
  %v153 = vunpack.c.h.b16 %v50
  %v154 = vunpack.c.l.b16 %v51
  %v155 = vunpack.c.h.b16 %v51
  %v156 = vunpack.c.l.b16 %v52
  %v157 = vunpack.c.h.b16 %v52
  %v158 = vunpack.c.l.b16 %v53
  %v159 = vunpack.c.h.b16 %v53
  %v160 = vunpack.c.l.b16 %v54
  %v161 = vunpack.c.h.b16 %v54
  %v162 = vunpack.c.l.b16 %v55
  %v163 = vunpack.c.h.b16 %v55
  %v164 = vunpack.c.l.b16 %v56
  %v165 = vunpack.c.h.b16 %v56
  %v166 = vunpack.c.l.b16 %v57
  %v167 = vunpack.c.h.b16 %v57
  %v168 = vunpack.c.l.b16 %v58
  %v169 = vunpack.c.h.b16 %v58
  %v170 = vunpack.c.l.b16 %v59
  %v171 = vunpack.c.h.b16 %v59
  %v172 = vunpack.c.l.b16 %v60
  %v173 = vunpack.c.h.b16 %v60
  %v174 = vunpack.c.l.b16 %v61
  %v175 = vunpack.c.h.b16 %v61
  %v176 = vunpack.c.l.b16 %v62
  %v177 = vunpack.c.h.b16 %v62
  %v178 = vunpack.c.l.b16 %v63
  %v179 = vunpack.c.h.b16 %v63
  %v180 = vunpack.c.l.b16 %v64
  %v181 = vunpack.c.h.b16 %v64
  %v182 = vunpack.c.l.b16 %v65
  %v183 = vunpack.c.h.b16 %v65
  %v184 = vunpack.c.l.b16 %v66
  %v185 = vunpack.c.h.b16 %v66
  %v186 = vunpack.c.l.b16 %v67
  %v187 = vunpack.c.h.b16 %v67
  %v188 = vunpack.c.l.b16 %v68
  %v189 = vunpack.c.h.b16 %v68
  %v190 = vunpack.c.l.b16 %v69
  %v191 = vunpack.c.h.b16 %v69
  %v192 = vunpack.c.l.b16 %v70
  %v193 = vunpack.c.h.b16 %v70
  %v194 = vunpack.c.l.b16 %v71
  %v195 = vunpack.c.h.b16 %v71
  %v196 = vunpack.c.l.b16 %v72
  %v197 = vunpack.c.h.b16 %v72
  %v198 = vunpack.c.l.b16 %v73
  %v199 = vunpack.c.h.b16 %v73
  %v200 = vunpack.c.l.b16 %v74
  %v201 = vunpack.c.h.b16 %v74
  %v202 = vunpack.c.l.b16 %v75
  %v203 = vunpack.c.h.b16 %v75
  %v204 = vpack.c.b16 %v142, %v140
  %v205 = vpack.c.b16 %v143, %v141
  %v206 = vpack.c.b16 %v146, %v144
  %v207 = vpack.c.b16 %v147, %v145
  %v208 = vpack.c.b16 %v150, %v148
  %v209 = vpack.c.b16 %v151, %v149
  %v210 = vpack.c.b16 %v154, %v152
  %v211 = vpack.c.b16 %v155, %v153
  %v212 = vpack.c.b16 %v158, %v156
  %v213 = vpack.c.b16 %v159, %v157
  %v214 = vpack.c.b16 %v162, %v160
  %v215 = vpack.c.b16 %v163, %v161
  %v216 = vpack.c.b16 %v166, %v164
  %v217 = vpack.c.b16 %v167, %v165
  %v218 = vpack.c.b16 %v170, %v168
  %v219 = vpack.c.b16 %v171, %v169
  %v220 = vpack.c.b16 %v174, %v172
  %v221 = vpack.c.b16 %v175, %v173
  %v222 = vpack.c.b16 %v178, %v176
  %v223 = vpack.c.b16 %v179, %v177
  %v224 = vpack.c.b16 %v182, %v180
  %v225 = vpack.c.b16 %v183, %v181
  %v226 = vpack.c.b16 %v186, %v184
  %v227 = vpack.c.b16 %v187, %v185
  %v228 = vpack.c.b16 %v190, %v188
  %v229 = vpack.c.b16 %v191, %v189
  %v230 = vpack.c.b16 %v194, %v192
  %v231 = vpack.c.b16 %v195, %v193
  %v232 = vpack.c.b16 %v198, %v196
  %v233 = vpack.c.b16 %v199, %v197
  %v234 = vpack.c.b16 %v202, %v200
  %v235 = vpack.c.b16 %v203, %v201
  %268 = vmatpush.bf16.msra.mxu0 %v218
  %269 = vmatpush.bf16.msra.mxu0 %v216
  %270 = vmatpush.bf16.msra.mxu0 %v214
  %271 = vmatpush.bf16.msra.mxu0 %v212
  %272 = vmatpush.bf16.msra.mxu0 %v210
  %273 = vmatpush.bf16.msra.mxu0 %v208
  %274 = vmatpush.bf16.msra.mxu0 %v206
  %275 = vmatpush.bf16.msra.mxu0 %v204
  %276 = vmatmul.bf16.gmra.mxu0 %v32
  %v277 = vpop.f32.mrf.mxu0
  %v278 = vadd.f32 0.0, %v277
  %v279 = vpop.f32.mrf.mxu0
  %v280 = vadd.f32 0.0, %v279
  %281 = vdwg.mxu0
  %282 = vmatpush.bf16.msra.mxu0 %v234
  %283 = vmatpush.bf16.msra.mxu0 %v232
  %284 = vmatpush.bf16.msra.mxu0 %v230
  %285 = vmatpush.bf16.msra.mxu0 %v228
  %286 = vmatpush.bf16.msra.mxu0 %v226
  %287 = vmatpush.bf16.msra.mxu0 %v224
  %288 = vmatpush.bf16.msra.mxu0 %v222
  %289 = vmatpush.bf16.msra.mxu0 %v220
  %290 = vmatmul.bf16.gmra.mxu0 %v33
  %v291 = vpop.f32.mrf.mxu0
  %v292 = vadd.f32 %v278, %v291
  %v293 = vpop.f32.mrf.mxu0
  %v294 = vadd.f32 %v280, %v293
  %295 = vdwg.mxu0
  %296 = vmatpush.bf16.msra.mxu0 %v219
  %297 = vmatpush.bf16.msra.mxu0 %v217
  %298 = vmatpush.bf16.msra.mxu0 %v215
  %299 = vmatpush.bf16.msra.mxu0 %v213
  %300 = vmatpush.bf16.msra.mxu0 %v211
  %301 = vmatpush.bf16.msra.mxu0 %v209
  %302 = vmatpush.bf16.msra.mxu0 %v207
  %303 = vmatpush.bf16.msra.mxu0 %v205
  %304 = vmatmul.bf16.gmra.mxu0 %v32
  %v305 = vpop.f32.mrf.mxu0
  %v306 = vadd.f32 0.0, %v305
  %v307 = vpop.f32.mrf.mxu0
  %v308 = vadd.f32 0.0, %v307
  %309 = vdwg.mxu0
  %310 = vmatpush.bf16.msra.mxu0 %v235
  %311 = vmatpush.bf16.msra.mxu0 %v233
  %312 = vmatpush.bf16.msra.mxu0 %v231
  %313 = vmatpush.bf16.msra.mxu0 %v229
  %314 = vmatpush.bf16.msra.mxu0 %v227
  %315 = vmatpush.bf16.msra.mxu0 %v225
  %316 = vmatpush.bf16.msra.mxu0 %v223
  %317 = vmatpush.bf16.msra.mxu0 %v221
  %318 = vmatmul.bf16.gmra.mxu0 %v33
  %v319 = vpop.f32.mrf.mxu0
  %v320 = vadd.f32 %v306, %v319
  %v321 = vpop.f32.mrf.mxu0
  %v322 = vadd.f32 %v308, %v321
  %323 = vdwg.mxu0
  %v356 = vunpack.c.l.b16 %v76
  %v357 = vunpack.c.h.b16 %v76
  %v358 = vunpack.c.l.b16 %v77
  %v359 = vunpack.c.h.b16 %v77
  %v360 = vunpack.c.l.b16 %v78
  %v361 = vunpack.c.h.b16 %v78
  %v362 = vunpack.c.l.b16 %v79
  %v363 = vunpack.c.h.b16 %v79
  %v364 = vunpack.c.l.b16 %v80
  %v365 = vunpack.c.h.b16 %v80
  %v366 = vunpack.c.l.b16 %v81
  %v367 = vunpack.c.h.b16 %v81
  %v368 = vunpack.c.l.b16 %v82
  %v369 = vunpack.c.h.b16 %v82
  %v370 = vunpack.c.l.b16 %v83
  %v371 = vunpack.c.h.b16 %v83
  %v372 = vunpack.c.l.b16 %v84
  %v373 = vunpack.c.h.b16 %v84
  %v374 = vunpack.c.l.b16 %v85
  %v375 = vunpack.c.h.b16 %v85
  %v376 = vunpack.c.l.b16 %v86
  %v377 = vunpack.c.h.b16 %v86
  %v378 = vunpack.c.l.b16 %v87
  %v379 = vunpack.c.h.b16 %v87
  %v380 = vunpack.c.l.b16 %v88
  %v381 = vunpack.c.h.b16 %v88
  %v382 = vunpack.c.l.b16 %v89
  %v383 = vunpack.c.h.b16 %v89
  %v384 = vunpack.c.l.b16 %v90
  %v385 = vunpack.c.h.b16 %v90
  %v386 = vunpack.c.l.b16 %v91
  %v387 = vunpack.c.h.b16 %v91
  %v388 = vunpack.c.l.b16 %v92
  %v389 = vunpack.c.h.b16 %v92
  %v390 = vunpack.c.l.b16 %v93
  %v391 = vunpack.c.h.b16 %v93
  %v392 = vunpack.c.l.b16 %v94
  %v393 = vunpack.c.h.b16 %v94
  %v394 = vunpack.c.l.b16 %v95
  %v395 = vunpack.c.h.b16 %v95
  %v396 = vunpack.c.l.b16 %v96
  %v397 = vunpack.c.h.b16 %v96
  %v398 = vunpack.c.l.b16 %v97
  %v399 = vunpack.c.h.b16 %v97
  %v400 = vunpack.c.l.b16 %v98
  %v401 = vunpack.c.h.b16 %v98
  %v402 = vunpack.c.l.b16 %v99
  %v403 = vunpack.c.h.b16 %v99
  %v404 = vunpack.c.l.b16 %v100
  %v405 = vunpack.c.h.b16 %v100
  %v406 = vunpack.c.l.b16 %v101
  %v407 = vunpack.c.h.b16 %v101
  %v408 = vunpack.c.l.b16 %v102
  %v409 = vunpack.c.h.b16 %v102
  %v410 = vunpack.c.l.b16 %v103
  %v411 = vunpack.c.h.b16 %v103
  %v412 = vunpack.c.l.b16 %v104
  %v413 = vunpack.c.h.b16 %v104
  %v414 = vunpack.c.l.b16 %v105
  %v415 = vunpack.c.h.b16 %v105
  %v416 = vunpack.c.l.b16 %v106
  %v417 = vunpack.c.h.b16 %v106
  %v418 = vunpack.c.l.b16 %v107
  %v419 = vunpack.c.h.b16 %v107
  %v420 = vpack.c.b16 %v358, %v356
  %v421 = vpack.c.b16 %v359, %v357
  %v422 = vpack.c.b16 %v362, %v360
  %v423 = vpack.c.b16 %v363, %v361
  %v424 = vpack.c.b16 %v366, %v364
  %v425 = vpack.c.b16 %v367, %v365
  %v426 = vpack.c.b16 %v370, %v368
  %v427 = vpack.c.b16 %v371, %v369
  %v428 = vpack.c.b16 %v374, %v372
  %v429 = vpack.c.b16 %v375, %v373
  %v430 = vpack.c.b16 %v378, %v376
  %v431 = vpack.c.b16 %v379, %v377
  %v432 = vpack.c.b16 %v382, %v380
  %v433 = vpack.c.b16 %v383, %v381
  %v434 = vpack.c.b16 %v386, %v384
  %v435 = vpack.c.b16 %v387, %v385
  %v436 = vpack.c.b16 %v390, %v388
  %v437 = vpack.c.b16 %v391, %v389
  %v438 = vpack.c.b16 %v394, %v392
  %v439 = vpack.c.b16 %v395, %v393
  %v440 = vpack.c.b16 %v398, %v396
  %v441 = vpack.c.b16 %v399, %v397
  %v442 = vpack.c.b16 %v402, %v400
  %v443 = vpack.c.b16 %v403, %v401
  %v444 = vpack.c.b16 %v406, %v404
  %v445 = vpack.c.b16 %v407, %v405
  %v446 = vpack.c.b16 %v410, %v408
  %v447 = vpack.c.b16 %v411, %v409
  %v448 = vpack.c.b16 %v414, %v412
  %v449 = vpack.c.b16 %v415, %v413
  %v450 = vpack.c.b16 %v418, %v416
  %v451 = vpack.c.b16 %v419, %v417
  %484 = vmatpush.bf16.msra.mxu0 %v434
  %485 = vmatpush.bf16.msra.mxu0 %v432
  %486 = vmatpush.bf16.msra.mxu0 %v430
  %487 = vmatpush.bf16.msra.mxu0 %v428
  %488 = vmatpush.bf16.msra.mxu0 %v426
  %489 = vmatpush.bf16.msra.mxu0 %v424
  %490 = vmatpush.bf16.msra.mxu0 %v422
  %491 = vmatpush.bf16.msra.mxu0 %v420
  %492 = vmatmul.bf16.gmra.mxu0 %v42
  %v493 = vpop.f32.mrf.mxu0
  %v494 = vadd.f32 0.0, %v493
  %v495 = vpop.f32.mrf.mxu0
  %v496 = vadd.f32 0.0, %v495
  %497 = vdwg.mxu0
  %498 = vmatpush.bf16.msra.mxu0 %v450
  %499 = vmatpush.bf16.msra.mxu0 %v448
  %500 = vmatpush.bf16.msra.mxu0 %v446
  %501 = vmatpush.bf16.msra.mxu0 %v444
  %502 = vmatpush.bf16.msra.mxu0 %v442
  %503 = vmatpush.bf16.msra.mxu0 %v440
  %504 = vmatpush.bf16.msra.mxu0 %v438
  %505 = vmatpush.bf16.msra.mxu0 %v436
  %506 = vmatmul.bf16.gmra.mxu0 %v43
  %v507 = vpop.f32.mrf.mxu0
  %v508 = vadd.f32 %v494, %v507
  %v509 = vpop.f32.mrf.mxu0
  %v510 = vadd.f32 %v496, %v509
  %511 = vdwg.mxu0
  %512 = vmatpush.bf16.msra.mxu0 %v435
  %513 = vmatpush.bf16.msra.mxu0 %v433
  %514 = vmatpush.bf16.msra.mxu0 %v431
  %515 = vmatpush.bf16.msra.mxu0 %v429
  %516 = vmatpush.bf16.msra.mxu0 %v427
  %517 = vmatpush.bf16.msra.mxu0 %v425
  %518 = vmatpush.bf16.msra.mxu0 %v423
  %519 = vmatpush.bf16.msra.mxu0 %v421
  %520 = vmatmul.bf16.gmra.mxu0 %v42
  %v521 = vpop.f32.mrf.mxu0
  %v522 = vadd.f32 0.0, %v521
  %v523 = vpop.f32.mrf.mxu0
  %v524 = vadd.f32 0.0, %v523
  %525 = vdwg.mxu0
  %526 = vmatpush.bf16.msra.mxu0 %v451
  %527 = vmatpush.bf16.msra.mxu0 %v449
  %528 = vmatpush.bf16.msra.mxu0 %v447
  %529 = vmatpush.bf16.msra.mxu0 %v445
  %530 = vmatpush.bf16.msra.mxu0 %v443
  %531 = vmatpush.bf16.msra.mxu0 %v441
  %532 = vmatpush.bf16.msra.mxu0 %v439
  %533 = vmatpush.bf16.msra.mxu0 %v437
  %534 = vmatmul.bf16.gmra.mxu0 %v43
  %v535 = vpop.f32.mrf.mxu0
  %v536 = vadd.f32 %v522, %v535
  %v537 = vpop.f32.mrf.mxu0
  %v538 = vadd.f32 %v524, %v537
  %539 = vdwg.mxu0
  %v540 = vsub.f32 %v292, %v508
  %v541 = vsub.f32 %v320, %v536
  %v542 = vsub.f32 %v294, %v510
  %v543 = vsub.f32 %v322, %v538
  %544 = vmatpush.bf16.msra.mxu0 %v218
  %545 = vmatpush.bf16.msra.mxu0 %v216
  %546 = vmatpush.bf16.msra.mxu0 %v214
  %547 = vmatpush.bf16.msra.mxu0 %v212
  %548 = vmatpush.bf16.msra.mxu0 %v210
  %549 = vmatpush.bf16.msra.mxu0 %v208
  %550 = vmatpush.bf16.msra.mxu0 %v206
  %551 = vmatpush.bf16.msra.mxu0 %v204
  %552 = vmatmul.bf16.gmra.mxu0 %v42
  %v553 = vpop.f32.mrf.mxu0
  %v554 = vadd.f32 0.0, %v553
  %v555 = vpop.f32.mrf.mxu0
  %v556 = vadd.f32 0.0, %v555
  %557 = vdwg.mxu0
  %558 = vmatpush.bf16.msra.mxu0 %v234
  %559 = vmatpush.bf16.msra.mxu0 %v232
  %560 = vmatpush.bf16.msra.mxu0 %v230
  %561 = vmatpush.bf16.msra.mxu0 %v228
  %562 = vmatpush.bf16.msra.mxu0 %v226
  %563 = vmatpush.bf16.msra.mxu0 %v224
  %564 = vmatpush.bf16.msra.mxu0 %v222
  %565 = vmatpush.bf16.msra.mxu0 %v220
  %566 = vmatmul.bf16.gmra.mxu0 %v43
  %v567 = vpop.f32.mrf.mxu0
  %v568 = vadd.f32 %v554, %v567
  %v569 = vpop.f32.mrf.mxu0
  %v570 = vadd.f32 %v556, %v569
  %571 = vdwg.mxu0
  %572 = vmatpush.bf16.msra.mxu0 %v219
  %573 = vmatpush.bf16.msra.mxu0 %v217
  %574 = vmatpush.bf16.msra.mxu0 %v215
  %575 = vmatpush.bf16.msra.mxu0 %v213
  %576 = vmatpush.bf16.msra.mxu0 %v211
  %577 = vmatpush.bf16.msra.mxu0 %v209
  %578 = vmatpush.bf16.msra.mxu0 %v207
  %579 = vmatpush.bf16.msra.mxu0 %v205
  %580 = vmatmul.bf16.gmra.mxu0 %v42
  %v581 = vpop.f32.mrf.mxu0
  %v582 = vadd.f32 0.0, %v581
  %v583 = vpop.f32.mrf.mxu0
  %v584 = vadd.f32 0.0, %v583
  %585 = vdwg.mxu0
  %586 = vmatpush.bf16.msra.mxu0 %v235
  %587 = vmatpush.bf16.msra.mxu0 %v233
  %588 = vmatpush.bf16.msra.mxu0 %v231
  %589 = vmatpush.bf16.msra.mxu0 %v229
  %590 = vmatpush.bf16.msra.mxu0 %v227
  %591 = vmatpush.bf16.msra.mxu0 %v225
  %592 = vmatpush.bf16.msra.mxu0 %v223
  %593 = vmatpush.bf16.msra.mxu0 %v221
  %594 = vmatmul.bf16.gmra.mxu0 %v43
  %v595 = vpop.f32.mrf.mxu0
  %v596 = vadd.f32 %v582, %v595
  %v597 = vpop.f32.mrf.mxu0
  %v598 = vadd.f32 %v584, %v597
  %599 = vdwg.mxu0
  %600 = vmatpush.bf16.msra.mxu0 %v434
  %601 = vmatpush.bf16.msra.mxu0 %v432
  %602 = vmatpush.bf16.msra.mxu0 %v430
  %603 = vmatpush.bf16.msra.mxu0 %v428
  %604 = vmatpush.bf16.msra.mxu0 %v426
  %605 = vmatpush.bf16.msra.mxu0 %v424
  %606 = vmatpush.bf16.msra.mxu0 %v422
  %607 = vmatpush.bf16.msra.mxu0 %v420
  %608 = vmatmul.bf16.gmra.mxu0 %v32
  %v609 = vpop.f32.mrf.mxu0
  %v610 = vadd.f32 %v568, %v609
  %v611 = vpop.f32.mrf.mxu0
  %v612 = vadd.f32 %v570, %v611
  %613 = vdwg.mxu0
  %614 = vmatpush.bf16.msra.mxu0 %v450
  %615 = vmatpush.bf16.msra.mxu0 %v448
  %616 = vmatpush.bf16.msra.mxu0 %v446
  %617 = vmatpush.bf16.msra.mxu0 %v444
  %618 = vmatpush.bf16.msra.mxu0 %v442
  %619 = vmatpush.bf16.msra.mxu0 %v440
  %620 = vmatpush.bf16.msra.mxu0 %v438
  %621 = vmatpush.bf16.msra.mxu0 %v436
  %622 = vmatmul.bf16.gmra.mxu0 %v33
  %v623 = vpop.f32.mrf.mxu0
  %v624 = vadd.f32 %v610, %v623
  %v625 = vpop.f32.mrf.mxu0
  %v626 = vadd.f32 %v612, %v625
  %627 = vdwg.mxu0
  %628 = vmatpush.bf16.msra.mxu0 %v435
  %629 = vmatpush.bf16.msra.mxu0 %v433
  %630 = vmatpush.bf16.msra.mxu0 %v431
  %631 = vmatpush.bf16.msra.mxu0 %v429
  %632 = vmatpush.bf16.msra.mxu0 %v427
  %633 = vmatpush.bf16.msra.mxu0 %v425
  %634 = vmatpush.bf16.msra.mxu0 %v423
  %635 = vmatpush.bf16.msra.mxu0 %v421
  %636 = vmatmul.bf16.gmra.mxu0 %v32
  %v637 = vpop.f32.mrf.mxu0
  %v638 = vadd.f32 %v596, %v637
  %v639 = vpop.f32.mrf.mxu0
  %v640 = vadd.f32 %v598, %v639
  %641 = vdwg.mxu0
  %642 = vmatpush.bf16.msra.mxu0 %v451
  %643 = vmatpush.bf16.msra.mxu0 %v449
  %644 = vmatpush.bf16.msra.mxu0 %v447
  %645 = vmatpush.bf16.msra.mxu0 %v445
  %646 = vmatpush.bf16.msra.mxu0 %v443
  %647 = vmatpush.bf16.msra.mxu0 %v441
  %648 = vmatpush.bf16.msra.mxu0 %v439
  %649 = vmatpush.bf16.msra.mxu0 %v437
  %650 = vmatmul.bf16.gmra.mxu0 %v33
  %v651 = vpop.f32.mrf.mxu0
  %v652 = vadd.f32 %v638, %v651
  %v653 = vpop.f32.mrf.mxu0
  %v654 = vadd.f32 %v640, %v653
  %655 = vdwg.mxu0
  %v656 = vmul.f32 %v540, %v540
  %v657 = vmul.f32 %v541, %v541
  %v658 = vmul.f32 %v542, %v542
  %v659 = vmul.f32 %v543, %v543
  %v660 = vmul.f32 %v624, %v624
  %v661 = vmul.f32 %v652, %v652
  %v662 = vmul.f32 %v626, %v626
  %v663 = vmul.f32 %v654, %v654
  %v664 = vadd.f32 %v656, %v660
  %v665 = vadd.f32 %v657, %v661
  %v666 = vadd.f32 %v658, %v662
  %v667 = vadd.f32 %v659, %v663
  %v668 = vrsqrt.pop %v664
  %v669 = vmul.f32 %v668, %v664
  %v670 = vmul.f32 %v669, %v668
  %v671 = vmul.f32 0.5, %v670
  %v672 = vsub.f32 1.5, %v671
  %v673 = vmul.f32 %v668, %v672
  %v674 = vmul.f32 %v664, %v673
  %vm675 = vcmp.eq.f32.partialorder %v664, inf
  %v676 = vsel %vm675, %v664, %v674
  %vm677 = vcmp.eq.f32.partialorder %v664, 0.0
  %v678 = vand.u32 %v664, 2147483648
  %v679 = vsel %vm677, %v678, %v676
  %v680 = vrsqrt.pop %v665
  %v681 = vmul.f32 %v680, %v665
  %v682 = vmul.f32 %v681, %v680
  %v683 = vmul.f32 0.5, %v682
  %v684 = vsub.f32 1.5, %v683
  %v685 = vmul.f32 %v680, %v684
  %v686 = vmul.f32 %v665, %v685
  %vm687 = vcmp.eq.f32.partialorder %v665, inf
  %v688 = vsel %vm687, %v665, %v686
  %vm689 = vcmp.eq.f32.partialorder %v665, 0.0
  %v690 = vand.u32 %v665, 2147483648
  %v691 = vsel %vm689, %v690, %v688
  %v692 = vrsqrt.pop %v666
  %v693 = vmul.f32 %v692, %v666
  %v694 = vmul.f32 %v693, %v692
  %v695 = vmul.f32 0.5, %v694
  %v696 = vsub.f32 1.5, %v695
  %v697 = vmul.f32 %v692, %v696
  %v698 = vmul.f32 %v666, %v697
  %vm699 = vcmp.eq.f32.partialorder %v666, inf
  %v700 = vsel %vm699, %v666, %v698
  %vm701 = vcmp.eq.f32.partialorder %v666, 0.0
  %v702 = vand.u32 %v666, 2147483648
  %v703 = vsel %vm701, %v702, %v700
  %v704 = vrsqrt.pop %v667
  %v705 = vmul.f32 %v704, %v667
  %v706 = vmul.f32 %v705, %v704
  %v707 = vmul.f32 0.5, %v706
  %v708 = vsub.f32 1.5, %v707
  %v709 = vmul.f32 %v704, %v708
  %v710 = vmul.f32 %v667, %v709
  %vm711 = vcmp.eq.f32.partialorder %v667, inf
  %v712 = vsel %vm711, %v667, %v710
  %vm713 = vcmp.eq.f32.partialorder %v667, 0.0
  %v714 = vand.u32 %v667, 2147483648
  %v715 = vsel %vm713, %v714, %v712
  %716 = vst [vmem:[%s5] sm:$0xff] %v679
  %717 = vst [vmem:[%s5 + $0x8] sm:$0xff] %v691
  %718 = vst [vmem:[%s5 + $0x10] sm:$0xff] %v703
  %719 = vst [vmem:[%s5 + $0x18] sm:$0xff] %v715
  // Predicated region
  $region22: #{dfhgb_forward.13} parent=0 // pred_check
    _
  $region23: #{dfhgb_forward.13} parent=0 // pred_check_branch
    %721 = sbr.rel (0) target = $region25
  $region24: #{dfhgb_forward.13} parent=0 // pred_region
    _
  $region25: #{dfhgb_forward.13} parent=0 // pred_fallthru
    _
  // Predicated region
  $region26: #{dfhgb_forward.13} parent=0 // pred_check
    _
  $region27: #{dfhgb_forward.13} parent=0 // pred_check_branch
    %723 = sbr.rel (0) target = $region29
  $region28: #{dfhgb_forward.13} parent=0 // pred_region
    _
  $region29: #{dfhgb_forward.13} parent=0 // pred_fallthru
    _

// kernel: dfhgb_forward.14
$region0: #{dfhgb_forward.14}
  #allocation0 [shape = 'u32[]', space=smem, size = 0x4, offset = 0x4, fixed_abs, tag = 'smem constant byte address 0x4 - core index']
  #allocation1 [shape = 'u32[72,128]{1,0:T(1,128)}', space=vmem, size = 0x9000, scoped, tag = 'internal scratch']
  %s0 = inlined_call_operand.vmem [shape: bf16[2,8,256], index: 0, kind: input, shape index: {}]
  %s1 = inlined_call_operand.vmem [shape: bf16[8,8], index: 1, kind: input, shape index: {}]
  %s2 = inlined_call_operand.vmem [shape: f32[8,1], index: 2, kind: input, shape index: {}]
  %s3 = inlined_call_operand.vmem [shape: f32[2,8,256], index: 3, kind: output, shape index: {}]
  %s4 = sld [smem:[#allocation0]]
  $region45: #{dfhgb_forward.14} parent=0
    _
  %s6 = ssub.s32 1, %s4
  %s7 = scalar_select 0, %s6, %s4
  loop: start=0, step=1, limit=4
  $region2: #{dfhgb_forward.14} parent=0 // loop_pre_header
    _
  $region3: #{dfhgb_forward.14} parent=0 // loop_header
    %s9 = sphi 0, %s13
    %p10 = scmp.ge.s32.totalorder %s9, 4
    %s16 = sphi 0, %s28
    %s17 = sphi 0, %s24
    %s18 = sphi 0, %s16
    %s19 = sphi 0, %s17
    %s20 = sphi 0, %s18
    %s21 = sphi 0, %s19
    %s33 = sphi 0, %s35
    %s36 = sphi 0, %s33
    %s37 = sphi 0, %s36
    %s53 = sphi 0, %s37
    %s57 = sphi 0, %s57
    %s59 = sphi 0, %s57
    %s60 = sphi 0, %s59
    %s74 = sphi 0, %s60
    %s78 = sphi 0, %s78
    %s80 = sphi 0, %s78
    %s81 = sphi 0, %s80
    %s95 = sphi 0, %s81
    %s103 = sphi 0, %s105
    %s106 = sphi 0, %s103
    %s107 = sphi 0, %s106
    %s123 = sphi 0, %s107
  $region4: #{dfhgb_forward.14} parent=0 // loop_header_branch
    %12 = sbr.rel (%p10) target = $region8
  $region5: #{dfhgb_forward.14} parent=0 // loop_body
    %s14 = ssub.s32 %s9, 1
    %s15 = ssub.s32 %s9, 2
    %s22 = sadd.s32 1, %s17
    %p23 = scmp.ge.s32.totalorder %s22, 1
    %s24 = scalar_select %p23, 0, %s22
    %s25 = sadd.s32 1, %s16
    %s26 = scalar_select %p23, %s25, %s16
    %p27 = scmp.ge.s32.totalorder %s26, 2
    %s28 = scalar_select %p27, 0, %s26
    %s29 = ssub.s32 %s16, %s28
    %s30 = ssub.s32 %s17, %s24
    %s31 = sor.u32 %s29, %s30
    %p32 = scmp.eq.s32.totalorder %s31, 0
    %s34 = sadd.s32 %s33, 1
    %s35 = scalar_select %p32, %s33, %s34
    %p38 = pneg %p32
    %p39 = scmp.eq.s32.totalorder %s9, 1
    %p40 = por %p38, %p39
    %p41 = scmp.ne.s32.totalorder %s33, %s36
    %p42 = scmp.eq.s32.totalorder %s9, 0
    %p43 = por %p41, %p42
    %p44 = scmp.ne.s32.totalorder %s33, %s36
    %p45 = scmp.eq.s32.totalorder %s14, 1
    %p46 = por %p44, %p45
    %p47 = scmp.ne.s32.totalorder %s36, %s37
    %p48 = scmp.eq.s32.totalorder %s14, 0
    %p49 = por %p47, %p48
    %p50 = scmp.ne.s32.totalorder %s36, %s37
    %p51 = scmp.eq.s32.totalorder %s15, 1
    %p52 = por %p50, %p51
    %p54 = scmp.ne.s32.totalorder %s37, %s53
    %p55 = scmp.eq.s32.totalorder %s15, 0
    %p56 = por %p54, %p55
    %s58 = sadd.s32 %s57, 1
    %p61 = scmp.eq.s32.totalorder %s9, 1
    %p62 = scmp.ne.s32.totalorder %s57, %s59
    %p63 = scmp.eq.s32.totalorder %s9, 0
    %p64 = por %p62, %p63
    %p65 = scmp.ne.s32.totalorder %s57, %s59
    %p66 = scmp.eq.s32.totalorder %s14, 1
    %p67 = por %p65, %p66
    %p68 = scmp.ne.s32.totalorder %s59, %s60
    %p69 = scmp.eq.s32.totalorder %s14, 0
    %p70 = por %p68, %p69
    %p71 = scmp.ne.s32.totalorder %s59, %s60
    %p72 = scmp.eq.s32.totalorder %s15, 1
    %p73 = por %p71, %p72
    %p75 = scmp.ne.s32.totalorder %s60, %s74
    %p76 = scmp.eq.s32.totalorder %s15, 0
    %p77 = por %p75, %p76
    %s79 = sadd.s32 %s78, 1
    %p82 = scmp.eq.s32.totalorder %s9, 1
    %p83 = scmp.ne.s32.totalorder %s78, %s80
    %p84 = scmp.eq.s32.totalorder %s9, 0
    %p85 = por %p83, %p84
    %p86 = scmp.ne.s32.totalorder %s78, %s80
    %p87 = scmp.eq.s32.totalorder %s14, 1
    %p88 = por %p86, %p87
    %p89 = scmp.ne.s32.totalorder %s80, %s81
    %p90 = scmp.eq.s32.totalorder %s14, 0
    %p91 = por %p89, %p90
    %p92 = scmp.ne.s32.totalorder %s80, %s81
    %p93 = scmp.eq.s32.totalorder %s15, 1
    %p94 = por %p92, %p93
    %p96 = scmp.ne.s32.totalorder %s81, %s95
    %p97 = scmp.eq.s32.totalorder %s15, 0
    %p98 = por %p96, %p97
    %s99 = ssub.s32 %s16, %s28
    %s100 = ssub.s32 %s17, %s24
    %s101 = sor.u32 %s99, %s100
    %p102 = scmp.eq.s32.totalorder %s101, 0
    %s104 = sadd.s32 %s103, 1
    %s105 = scalar_select %p102, %s103, %s104
    %p108 = pneg %p102
    %p109 = scmp.eq.s32.totalorder %s9, 1
    %p110 = por %p108, %p109
    %p111 = scmp.ne.s32.totalorder %s103, %s106
    %p112 = scmp.eq.s32.totalorder %s9, 0
    %p113 = por %p111, %p112
    %p114 = scmp.ne.s32.totalorder %s103, %s106
    %p115 = scmp.eq.s32.totalorder %s14, 1
    %p116 = por %p114, %p115
    %p117 = scmp.ne.s32.totalorder %s106, %s107
    %p118 = scmp.eq.s32.totalorder %s14, 0
    %p119 = por %p117, %p118
    %p120 = scmp.ne.s32.totalorder %s106, %s107
    %p121 = scmp.eq.s32.totalorder %s15, 1
    %p122 = por %p120, %p121
    %p124 = scmp.ne.s32.totalorder %s107, %s123
    %p125 = scmp.eq.s32.totalorder %s15, 0
    %p126 = por %p124, %p125
    %p127 = scmp.le.s32.totalorder 1, %s9
    %p128 = scmp.lt.s32.totalorder %s9, 3
    %p129 = pnand %p127, %p128
    %p130 = pneg %p129
    // Predicated region
    $region9: #{dfhgb_forward.14} parent=5 // pred_check
      _
    $region10: #{dfhgb_forward.14} parent=5 // pred_check_branch
      %132 = sbr.rel (%p129) target = $region12
    $region11: #{dfhgb_forward.14} parent=5 // pred_region
      %s133 = ssub.s32 %s9, 1
      // Predicated region
      $region13: #{dfhgb_forward.14} parent=11 // pred_check
        %p134 = pneg %p70
      $region14: #{dfhgb_forward.14} parent=11 // pred_check_branch
        %136 = sbr.rel (%p134) target = $region16
      $region15: #{dfhgb_forward.14} parent=11 // pred_region
        _
      $region16: #{dfhgb_forward.14} parent=11 // pred_fallthru
        _
      // Predicated region
      $region17: #{dfhgb_forward.14} parent=11 // pred_check
        %p137 = pneg %p91
      $region18: #{dfhgb_forward.14} parent=11 // pred_check_branch
        %139 = sbr.rel (%p137) target = $region20
      $region19: #{dfhgb_forward.14} parent=11 // pred_region
        _
      $region20: #{dfhgb_forward.14} parent=11 // pred_fallthru
        _
    $region12: #{dfhgb_forward.14} parent=5 // pred_fallthru
      _
    %p140 = scmp.lt.s32.totalorder %s9, 2
    // Predicated region
    $region21: #{dfhgb_forward.14} parent=5 // pred_check
      %p141 = pneg %p140
    $region22: #{dfhgb_forward.14} parent=5 // pred_check_branch
      %143 = sbr.rel (%p141) target = $region24
    $region23: #{dfhgb_forward.14} parent=5 // pred_region
      // Predicated region
      $region25: #{dfhgb_forward.14} parent=23 // pred_check
        %p144 = pneg %p43
      $region26: #{dfhgb_forward.14} parent=23 // pred_check_branch
        %146 = sbr.rel (%p144) target = $region28
      $region27: #{dfhgb_forward.14} parent=23 // pred_region
        %s147 = smul.u32 2, %s17
        %p148 = scmp.lt.s32.totalorder %s16, 1
        %s149 = scalar_select %p148, %s16, 1
        %p150 = scmp.lt.s32.totalorder %s147, 1
        %s151 = scalar_select %p150, %s147, 1
        %s152 = smul.addr %s149, 2
        %s153 = sadd.s32 %s151, %s152
        %s154 = smul.addr %s153, 4
        %s155 = scalar_lea.vmem %s0, %s154
        %s156 = smul.u32 2, %s17
      $region28: #{dfhgb_forward.14} parent=23 // pred_fallthru
        _
    $region24: #{dfhgb_forward.14} parent=5 // pred_fallthru
      _
    %p157 = scmp.le.s32.totalorder 1, %s9
    %p158 = scmp.lt.s32.totalorder %s9, 3
    %p159 = pnand %p157, %p158
    %p160 = pneg %p159
    // Predicated region
    $region29: #{dfhgb_forward.14} parent=5 // pred_check
      _
    $region30: #{dfhgb_forward.14} parent=5 // pred_check_branch
      %162 = sbr.rel (%p159) target = $region32
    $region31: #{dfhgb_forward.14} parent=5 // pred_region
      %s163 = ssub.s32 %s9, 1
      %s164 = smul.u32 2, %s19
      %p165 = scmp.lt.s32.totalorder %s18, 1
      %s166 = scalar_select %p165, %s18, 1
      %p167 = scmp.lt.s32.totalorder %s164, 1
      %s168 = scalar_select %p167, %s164, 1
      %s169 = smul.addr %s166, 2
      %s170 = sadd.s32 %s168, %s169
      %s171 = smul.addr %s170, 4
      %s172 = scalar_lea.vmem %s0, %s171
      %p173 = pneg %p49
      %p174 = pneg %p46
      %p175 = pneg %p70
      %p176 = pneg %p67
      %p177 = pneg %p91
      %p178 = pneg %p88
      %p179 = pneg %p119
      %p180 = pneg %p116
      %s181 = smul.u32 2, %s19
      %p182 = scmp.lt.s32.totalorder %s18, 1
      %s183 = scalar_select %p182, %s18, 1
      %p184 = scmp.lt.s32.totalorder %s181, 1
      %s185 = scalar_select %p184, %s181, 1
      %s186 = smul.addr %s183, 2
      %s187 = sadd.s32 %s185, %s186
      %s188 = smul.addr %s187, 8
      %s189 = scalar_lea.vmem %s3, %s188
      %s190 = smul.u32 2, %s19
      %p191 = scmp.lt.s32.totalorder %s18, 1
      %s192 = scalar_select %p191, %s18, 1
      %p193 = scmp.lt.s32.totalorder %s190, 1
      %s194 = scalar_select %p193, %s190, 1
      %s195 = smul.addr %s192, 2
      %s196 = sadd.s32 %s194, %s195
      %s197 = smul.addr %s196, 4
      %s198 = scalar_lea.vmem %s0, %s197
      %s199 = smul.u32 2, %s19
      %s200 = smul.u32 2, %s19
      %p201 = scmp.lt.s32.totalorder %s18, 1
      %s202 = scalar_select %p201, %s18, 1
      %p203 = scmp.lt.s32.totalorder %s200, 1
      %s204 = scalar_select %p203, %s200, 1
      %s205 = smul.addr %s202, 2
      %s206 = sadd.s32 %s204, %s205
      %s207 = smul.addr %s206, 8
      %s208 = scalar_lea.vmem %s3, %s207
      %s209 = smul.u32 2, %s19
      %v211 = vld [vmem:[%s1] sm:$0xf]
      %v212 = vld [vmem:[%s198] sm:$0xff]
      %v213 = vld [vmem:[%s2] sm:$0xff]
      %215 = vset.pattern.permute.xlu0 0
      %216 = vperm.xlu0 %215, %v213
      %v217 = vpop.permute.xlu0 %216
      %v220 = vunpack.c.l.b16 %v212
      %v221 = vunpack.c.h.b16 %v212
      %v222 = vpack.c.b16 %v220, %v220
      %v223 = vpack.c.b16 %v221, %v221
      %vm224 = vcmask 64512
      %v226 = vsel %vm224, %v211, 0
      %vm228 = vcmask 1043456
      %v230 = vsel %vm228, %v222, 0
      %v233 = vsel %vm228, %v223, 0
      %235 = vmatpush.bf16.msra.mxu0 0
      %236 = vmatpush.bf16.msra.mxu0 0
      %237 = vmatpush.bf16.msra.mxu0 0
      %238 = vmatpush.bf16.msra.mxu0 0
      %239 = vmatpush.bf16.msra.mxu0 0
      %240 = vmatpush.bf16.msra.mxu0 0
      %241 = vmatpush.bf16.msra.mxu0 0
      %242 = vmatpush.bf16.msra.mxu0 %v230
      %243 = vmatmul.bf16.gmra.mxu0 %v226
      %v244 = vpop.f32.mrf.mxu0
      %v245 = vadd.f32 %v217, %v244
      %v246 = vpop.f32.mrf.mxu0
      %247 = vdwg.mxu0
      %248 = vmatpush.bf16.msra.mxu0 0
      %249 = vmatpush.bf16.msra.mxu0 0
      %250 = vmatpush.bf16.msra.mxu0 0
      %251 = vmatpush.bf16.msra.mxu0 0
      %252 = vmatpush.bf16.msra.mxu0 0
      %253 = vmatpush.bf16.msra.mxu0 0
      %254 = vmatpush.bf16.msra.mxu0 0
      %255 = vmatpush.bf16.msra.mxu0 %v233
      %256 = vmatmul.bf16.gmra.mxu0 %v226
      %v257 = vpop.f32.mrf.mxu0
      %v258 = vadd.f32 %v217, %v257
      %v259 = vpop.f32.mrf.mxu0
      %260 = vdwg.mxu0
      %261 = vst [vmem:[%s208] sm:$0xff] %v245
      %262 = vst [vmem:[%s208 + $0x8] sm:$0xff] %v258
      %s263 = smul.u32 2, %s19
      %p264 = scmp.lt.s32.totalorder %s18, 1
      %s265 = scalar_select %p264, %s18, 1
      %p266 = scmp.lt.s32.totalorder %s263, 1
      %s267 = scalar_select %p266, %s263, 1
      %s268 = smul.addr %s265, 2
      %s269 = sadd.s32 %s267, %s268
      %s270 = smul.addr %s269, 8
      %s271 = scalar_lea.vmem %s3, %s270
      // Predicated region
      $region33: #{dfhgb_forward.14} parent=31 // pred_check
        %p272 = pneg %p116
      $region34: #{dfhgb_forward.14} parent=31 // pred_check_branch
        %274 = sbr.rel (%p272) target = $region36
      $region35: #{dfhgb_forward.14} parent=31 // pred_region
        %s275 = smul.u32 2, %s19
      $region36: #{dfhgb_forward.14} parent=31 // pred_fallthru
        _
    $region32: #{dfhgb_forward.14} parent=5 // pred_fallthru
      _
    %p276 = scmp.le.s32.totalorder 2, %s9
    // Predicated region
    $region37: #{dfhgb_forward.14} parent=5 // pred_check
      %p277 = pneg %p276
    $region38: #{dfhgb_forward.14} parent=5 // pred_check_branch
      %279 = sbr.rel (%p277) target = $region40
    $region39: #{dfhgb_forward.14} parent=5 // pred_region
      %s280 = ssub.s32 %s9, 2
      // Predicated region
      $region41: #{dfhgb_forward.14} parent=39 // pred_check
        %p281 = pneg %p122
      $region42: #{dfhgb_forward.14} parent=39 // pred_check_branch
        %283 = sbr.rel (%p281) target = $region44
      $region43: #{dfhgb_forward.14} parent=39 // pred_region
        %s284 = smul.u32 2, %s21
        %p285 = scmp.lt.s32.totalorder %s20, 1
        %s286 = scalar_select %p285, %s20, 1
        %p287 = scmp.lt.s32.totalorder %s284, 1
        %s288 = scalar_select %p287, %s284, 1
        %s289 = smul.addr %s286, 2
        %s290 = sadd.s32 %s288, %s289
        %s291 = smul.addr %s290, 8
        %s292 = scalar_lea.vmem %s3, %s291
      $region44: #{dfhgb_forward.14} parent=39 // pred_fallthru
        _
    $region40: #{dfhgb_forward.14} parent=5 // pred_fallthru
      _
  $region6: #{dfhgb_forward.14} parent=0 // loop_footer
    %s13 = sadd.s32 1, %s9
  $region7: #{dfhgb_forward.14} parent=0 // loop_footer_branch
    %8 = sbr.rel target = $region3
  $region8: #{dfhgb_forward.14} parent=0 // loop_exit
    _

// kernel: dfhgb_forward.15
$region0: #{dfhgb_forward.15}
  #allocation0 [shape = 'u32[]', space=smem, size = 0x4, offset = 0x4, fixed_abs, tag = 'smem constant byte address 0x4 - core index']
  #allocation1 [shape = 'u32[72,128]{1,0:T(1,128)}', space=vmem, size = 0x9000, scoped, tag = 'internal scratch']
  %s0 = inlined_call_operand.vmem [shape: f32[2,16,256], index: 0, kind: input, shape index: {}]
  %s1 = inlined_call_operand.vmem [shape: f32[2,8,256], index: 1, kind: input, shape index: {}]
  %s2 = inlined_call_operand.vmem [shape: f32[4,16], index: 2, kind: input, shape index: {}]
  %s3 = inlined_call_operand.vmem [shape: f32[4,1], index: 3, kind: input, shape index: {}]
  %s4 = inlined_call_operand.vmem [shape: f32[16,4], index: 4, kind: input, shape index: {}]
  %s5 = inlined_call_operand.vmem [shape: f32[16,1], index: 5, kind: input, shape index: {}]
  %s6 = inlined_call_operand.vmem [shape: bf16[8,16], index: 6, kind: input, shape index: {}]
  %s7 = inlined_call_operand.vmem [shape: f32[8,1], index: 7, kind: input, shape index: {}]
  %s8 = inlined_call_operand.vmem [shape: f32[2,8,256], index: 8, kind: output, shape index: {}]
  %s9 = sld [smem:[#allocation0]]
  $region65: #{dfhgb_forward.15} parent=0
    _
  %s11 = ssub.s32 1, %s9
  %s12 = scalar_select 0, %s11, %s9
  loop: start=0, step=1, limit=4
  $region2: #{dfhgb_forward.15} parent=0 // loop_pre_header
    _
  $region3: #{dfhgb_forward.15} parent=0 // loop_header
    %s14 = sphi 0, %s18
    %p15 = scmp.ge.s32.totalorder %s14, 4
    %s24 = sphi 0, %s26
    %s27 = sphi 0, %s24
    %s28 = sphi 0, %s27
    %s44 = sphi 0, %s28
    %s50 = sphi 0, %s52
    %s53 = sphi 0, %s50
    %s54 = sphi 0, %s53
    %s70 = sphi 0, %s54
    %s74 = sphi 0, %s74
    %s76 = sphi 0, %s74
    %s77 = sphi 0, %s76
    %s91 = sphi 0, %s77
    %s95 = sphi 0, %s95
    %s97 = sphi 0, %s95
    %s98 = sphi 0, %s97
    %s112 = sphi 0, %s98
    %s116 = sphi 0, %s116
    %s118 = sphi 0, %s116
    %s119 = sphi 0, %s118
    %s133 = sphi 0, %s119
    %s137 = sphi 0, %s137
    %s139 = sphi 0, %s137
    %s140 = sphi 0, %s139
    %s154 = sphi 0, %s140
    %s158 = sphi 0, %s158
    %s160 = sphi 0, %s158
    %s161 = sphi 0, %s160
    %s175 = sphi 0, %s161
    %s179 = sphi 0, %s179
    %s181 = sphi 0, %s179
    %s182 = sphi 0, %s181
    %s196 = sphi 0, %s182
    %s202 = sphi 0, %s204
    %s205 = sphi 0, %s202
    %s206 = sphi 0, %s205
    %s222 = sphi 0, %s206
  $region4: #{dfhgb_forward.15} parent=0 // loop_header_branch
    %17 = sbr.rel (%p15) target = $region8
  $region5: #{dfhgb_forward.15} parent=0 // loop_body
    %s19 = ssub.s32 %s14, 1
    %s20 = ssub.s32 %s14, 2
    %s21 = sadd.s32 %s14, 1
    %s22 = ssub.s32 %s14, %s21
    %p23 = scmp.eq.s32.totalorder %s22, 0
    %s25 = sadd.s32 %s24, 1
    %s26 = scalar_select %p23, %s24, %s25
    %p29 = pneg %p23
    %p30 = scmp.eq.s32.totalorder %s14, 1
    %p31 = por %p29, %p30
    %p32 = scmp.ne.s32.totalorder %s24, %s27
    %p33 = scmp.eq.s32.totalorder %s14, 0
    %p34 = por %p32, %p33
    %p35 = scmp.ne.s32.totalorder %s24, %s27
    %p36 = scmp.eq.s32.totalorder %s19, 1
    %p37 = por %p35, %p36
    %p38 = scmp.ne.s32.totalorder %s27, %s28
    %p39 = scmp.eq.s32.totalorder %s19, 0
    %p40 = por %p38, %p39
    %p41 = scmp.ne.s32.totalorder %s27, %s28
    %p42 = scmp.eq.s32.totalorder %s20, 1
    %p43 = por %p41, %p42
    %p45 = scmp.ne.s32.totalorder %s28, %s44
    %p46 = scmp.eq.s32.totalorder %s20, 0
    %p47 = por %p45, %p46
    %s48 = ssub.s32 %s14, %s21
    %p49 = scmp.eq.s32.totalorder %s48, 0
    %s51 = sadd.s32 %s50, 1
    %s52 = scalar_select %p49, %s50, %s51
    %p55 = pneg %p49
    %p56 = scmp.eq.s32.totalorder %s14, 1
    %p57 = por %p55, %p56
    %p58 = scmp.ne.s32.totalorder %s50, %s53
    %p59 = scmp.eq.s32.totalorder %s14, 0
    %p60 = por %p58, %p59
    %p61 = scmp.ne.s32.totalorder %s50, %s53
    %p62 = scmp.eq.s32.totalorder %s19, 1
    %p63 = por %p61, %p62
    %p64 = scmp.ne.s32.totalorder %s53, %s54
    %p65 = scmp.eq.s32.totalorder %s19, 0
    %p66 = por %p64, %p65
    %p67 = scmp.ne.s32.totalorder %s53, %s54
    %p68 = scmp.eq.s32.totalorder %s20, 1
    %p69 = por %p67, %p68
    %p71 = scmp.ne.s32.totalorder %s54, %s70
    %p72 = scmp.eq.s32.totalorder %s20, 0
    %p73 = por %p71, %p72
    %s75 = sadd.s32 %s74, 1
    %p78 = scmp.eq.s32.totalorder %s14, 1
    %p79 = scmp.ne.s32.totalorder %s74, %s76
    %p80 = scmp.eq.s32.totalorder %s14, 0
    %p81 = por %p79, %p80
    %p82 = scmp.ne.s32.totalorder %s74, %s76
    %p83 = scmp.eq.s32.totalorder %s19, 1
    %p84 = por %p82, %p83
    %p85 = scmp.ne.s32.totalorder %s76, %s77
    %p86 = scmp.eq.s32.totalorder %s19, 0
    %p87 = por %p85, %p86
    %p88 = scmp.ne.s32.totalorder %s76, %s77
    %p89 = scmp.eq.s32.totalorder %s20, 1
    %p90 = por %p88, %p89
    %p92 = scmp.ne.s32.totalorder %s77, %s91
    %p93 = scmp.eq.s32.totalorder %s20, 0
    %p94 = por %p92, %p93
    %s96 = sadd.s32 %s95, 1
    %p99 = scmp.eq.s32.totalorder %s14, 1
    %p100 = scmp.ne.s32.totalorder %s95, %s97
    %p101 = scmp.eq.s32.totalorder %s14, 0
    %p102 = por %p100, %p101
    %p103 = scmp.ne.s32.totalorder %s95, %s97
    %p104 = scmp.eq.s32.totalorder %s19, 1
    %p105 = por %p103, %p104
    %p106 = scmp.ne.s32.totalorder %s97, %s98
    %p107 = scmp.eq.s32.totalorder %s19, 0
    %p108 = por %p106, %p107
    %p109 = scmp.ne.s32.totalorder %s97, %s98
    %p110 = scmp.eq.s32.totalorder %s20, 1
    %p111 = por %p109, %p110
    %p113 = scmp.ne.s32.totalorder %s98, %s112
    %p114 = scmp.eq.s32.totalorder %s20, 0
    %p115 = por %p113, %p114
    %s117 = sadd.s32 %s116, 1
    %p120 = scmp.eq.s32.totalorder %s14, 1
    %p121 = scmp.ne.s32.totalorder %s116, %s118
    %p122 = scmp.eq.s32.totalorder %s14, 0
    %p123 = por %p121, %p122
    %p124 = scmp.ne.s32.totalorder %s116, %s118
    %p125 = scmp.eq.s32.totalorder %s19, 1
    %p126 = por %p124, %p125
    %p127 = scmp.ne.s32.totalorder %s118, %s119
    %p128 = scmp.eq.s32.totalorder %s19, 0
    %p129 = por %p127, %p128
    %p130 = scmp.ne.s32.totalorder %s118, %s119
    %p131 = scmp.eq.s32.totalorder %s20, 1
    %p132 = por %p130, %p131
    %p134 = scmp.ne.s32.totalorder %s119, %s133
    %p135 = scmp.eq.s32.totalorder %s20, 0
    %p136 = por %p134, %p135
    %s138 = sadd.s32 %s137, 1
    %p141 = scmp.eq.s32.totalorder %s14, 1
    %p142 = scmp.ne.s32.totalorder %s137, %s139
    %p143 = scmp.eq.s32.totalorder %s14, 0
    %p144 = por %p142, %p143
    %p145 = scmp.ne.s32.totalorder %s137, %s139
    %p146 = scmp.eq.s32.totalorder %s19, 1
    %p147 = por %p145, %p146
    %p148 = scmp.ne.s32.totalorder %s139, %s140
    %p149 = scmp.eq.s32.totalorder %s19, 0
    %p150 = por %p148, %p149
    %p151 = scmp.ne.s32.totalorder %s139, %s140
    %p152 = scmp.eq.s32.totalorder %s20, 1
    %p153 = por %p151, %p152
    %p155 = scmp.ne.s32.totalorder %s140, %s154
    %p156 = scmp.eq.s32.totalorder %s20, 0
    %p157 = por %p155, %p156
    %s159 = sadd.s32 %s158, 1
    %p162 = scmp.eq.s32.totalorder %s14, 1
    %p163 = scmp.ne.s32.totalorder %s158, %s160
    %p164 = scmp.eq.s32.totalorder %s14, 0
    %p165 = por %p163, %p164
    %p166 = scmp.ne.s32.totalorder %s158, %s160
    %p167 = scmp.eq.s32.totalorder %s19, 1
    %p168 = por %p166, %p167
    %p169 = scmp.ne.s32.totalorder %s160, %s161
    %p170 = scmp.eq.s32.totalorder %s19, 0
    %p171 = por %p169, %p170
    %p172 = scmp.ne.s32.totalorder %s160, %s161
    %p173 = scmp.eq.s32.totalorder %s20, 1
    %p174 = por %p172, %p173
    %p176 = scmp.ne.s32.totalorder %s161, %s175
    %p177 = scmp.eq.s32.totalorder %s20, 0
    %p178 = por %p176, %p177
    %s180 = sadd.s32 %s179, 1
    %p183 = scmp.eq.s32.totalorder %s14, 1
    %p184 = scmp.ne.s32.totalorder %s179, %s181
    %p185 = scmp.eq.s32.totalorder %s14, 0
    %p186 = por %p184, %p185
    %p187 = scmp.ne.s32.totalorder %s179, %s181
    %p188 = scmp.eq.s32.totalorder %s19, 1
    %p189 = por %p187, %p188
    %p190 = scmp.ne.s32.totalorder %s181, %s182
    %p191 = scmp.eq.s32.totalorder %s19, 0
    %p192 = por %p190, %p191
    %p193 = scmp.ne.s32.totalorder %s181, %s182
    %p194 = scmp.eq.s32.totalorder %s20, 1
    %p195 = por %p193, %p194
    %p197 = scmp.ne.s32.totalorder %s182, %s196
    %p198 = scmp.eq.s32.totalorder %s20, 0
    %p199 = por %p197, %p198
    %s200 = ssub.s32 %s14, %s21
    %p201 = scmp.eq.s32.totalorder %s200, 0
    %s203 = sadd.s32 %s202, 1
    %s204 = scalar_select %p201, %s202, %s203
    %p207 = pneg %p201
    %p208 = scmp.eq.s32.totalorder %s14, 1
    %p209 = por %p207, %p208
    %p210 = scmp.ne.s32.totalorder %s202, %s205
    %p211 = scmp.eq.s32.totalorder %s14, 0
    %p212 = por %p210, %p211
    %p213 = scmp.ne.s32.totalorder %s202, %s205
    %p214 = scmp.eq.s32.totalorder %s19, 1
    %p215 = por %p213, %p214
    %p216 = scmp.ne.s32.totalorder %s205, %s206
    %p217 = scmp.eq.s32.totalorder %s19, 0
    %p218 = por %p216, %p217
    %p219 = scmp.ne.s32.totalorder %s205, %s206
    %p220 = scmp.eq.s32.totalorder %s20, 1
    %p221 = por %p219, %p220
    %p223 = scmp.ne.s32.totalorder %s206, %s222
    %p224 = scmp.eq.s32.totalorder %s20, 0
    %p225 = por %p223, %p224
    %p226 = scmp.le.s32.totalorder 1, %s14
    %p227 = scmp.lt.s32.totalorder %s14, 3
    %p228 = pnand %p226, %p227
    %p229 = pneg %p228
    // Predicated region
    $region9: #{dfhgb_forward.15} parent=5 // pred_check
      _
    $region10: #{dfhgb_forward.15} parent=5 // pred_check_branch
      %231 = sbr.rel (%p228) target = $region12
    $region11: #{dfhgb_forward.15} parent=5 // pred_region
      %s232 = ssub.s32 %s14, 1
      // Predicated region
      $region13: #{dfhgb_forward.15} parent=11 // pred_check
        %p233 = pneg %p87
      $region14: #{dfhgb_forward.15} parent=11 // pred_check_branch
        %235 = sbr.rel (%p233) target = $region16
      $region15: #{dfhgb_forward.15} parent=11 // pred_region
        _
      $region16: #{dfhgb_forward.15} parent=11 // pred_fallthru
        _
      // Predicated region
      $region17: #{dfhgb_forward.15} parent=11 // pred_check
        %p236 = pneg %p108
      $region18: #{dfhgb_forward.15} parent=11 // pred_check_branch
        %238 = sbr.rel (%p236) target = $region20
      $region19: #{dfhgb_forward.15} parent=11 // pred_region
        _
      $region20: #{dfhgb_forward.15} parent=11 // pred_fallthru
        _
      // Predicated region
      $region21: #{dfhgb_forward.15} parent=11 // pred_check
        %p239 = pneg %p129
      $region22: #{dfhgb_forward.15} parent=11 // pred_check_branch
        %241 = sbr.rel (%p239) target = $region24
      $region23: #{dfhgb_forward.15} parent=11 // pred_region
        _
      $region24: #{dfhgb_forward.15} parent=11 // pred_fallthru
        _
      // Predicated region
      $region25: #{dfhgb_forward.15} parent=11 // pred_check
        %p242 = pneg %p150
      $region26: #{dfhgb_forward.15} parent=11 // pred_check_branch
        %244 = sbr.rel (%p242) target = $region28
      $region27: #{dfhgb_forward.15} parent=11 // pred_region
        _
      $region28: #{dfhgb_forward.15} parent=11 // pred_fallthru
        _
      // Predicated region
      $region29: #{dfhgb_forward.15} parent=11 // pred_check
        %p245 = pneg %p171
      $region30: #{dfhgb_forward.15} parent=11 // pred_check_branch
        %247 = sbr.rel (%p245) target = $region32
      $region31: #{dfhgb_forward.15} parent=11 // pred_region
        _
      $region32: #{dfhgb_forward.15} parent=11 // pred_fallthru
        _
      // Predicated region
      $region33: #{dfhgb_forward.15} parent=11 // pred_check
        %p248 = pneg %p192
      $region34: #{dfhgb_forward.15} parent=11 // pred_check_branch
        %250 = sbr.rel (%p248) target = $region36
      $region35: #{dfhgb_forward.15} parent=11 // pred_region
        _
      $region36: #{dfhgb_forward.15} parent=11 // pred_fallthru
        _
    $region12: #{dfhgb_forward.15} parent=5 // pred_fallthru
      _
    %p251 = scmp.lt.s32.totalorder %s14, 2
    // Predicated region
    $region37: #{dfhgb_forward.15} parent=5 // pred_check
      %p252 = pneg %p251
    $region38: #{dfhgb_forward.15} parent=5 // pred_check_branch
      %254 = sbr.rel (%p252) target = $region40
    $region39: #{dfhgb_forward.15} parent=5 // pred_region
      // Predicated region
      $region41: #{dfhgb_forward.15} parent=39 // pred_check
        %p255 = pneg %p34
      $region42: #{dfhgb_forward.15} parent=39 // pred_check_branch
        %257 = sbr.rel (%p255) target = $region44
      $region43: #{dfhgb_forward.15} parent=39 // pred_region
        %p258 = scmp.lt.s32.totalorder %s14, 1
        %s259 = scalar_select %p258, %s14, 1
        %s260 = smul.addr %s259, 4
        %s261 = smul.addr %s260, 8
        %s262 = scalar_lea.vmem %s0, %s261
      $region44: #{dfhgb_forward.15} parent=39 // pred_fallthru
        _
      // Predicated region
      $region45: #{dfhgb_forward.15} parent=39 // pred_check
        %p263 = pneg %p60
      $region46: #{dfhgb_forward.15} parent=39 // pred_check_branch
        %265 = sbr.rel (%p263) target = $region48
      $region47: #{dfhgb_forward.15} parent=39 // pred_region
        %p266 = scmp.lt.s32.totalorder %s14, 1
        %s267 = scalar_select %p266, %s14, 1
        %s268 = smul.addr %s267, 2
        %s269 = smul.addr %s268, 8
        %s270 = scalar_lea.vmem %s1, %s269
      $region48: #{dfhgb_forward.15} parent=39 // pred_fallthru
        _
    $region40: #{dfhgb_forward.15} parent=5 // pred_fallthru
      _
    %p271 = scmp.le.s32.totalorder 1, %s14
    %p272 = scmp.lt.s32.totalorder %s14, 3
    %p273 = pnand %p271, %p272
    %p274 = pneg %p273
    // Predicated region
    $region49: #{dfhgb_forward.15} parent=5 // pred_check
      _
    $region50: #{dfhgb_forward.15} parent=5 // pred_check_branch
      %276 = sbr.rel (%p273) target = $region52
    $region51: #{dfhgb_forward.15} parent=5 // pred_region
      %s277 = ssub.s32 %s14, 1
      %p278 = scmp.lt.s32.totalorder %s19, 1
      %s279 = scalar_select %p278, %s19, 1
      %s280 = smul.addr %s279, 4
      %s281 = smul.addr %s280, 8
      %s282 = scalar_lea.vmem %s0, %s281
      %p283 = pneg %p40
      %p284 = pneg %p37
      %p285 = scmp.lt.s32.totalorder %s19, 1
      %s286 = scalar_select %p285, %s19, 1
      %s287 = smul.addr %s286, 2
      %s288 = smul.addr %s287, 8
      %s289 = scalar_lea.vmem %s1, %s288
      %p290 = pneg %p66
      %p291 = pneg %p63
      %p292 = pneg %p87
      %p293 = pneg %p84
      %p294 = pneg %p108
      %p295 = pneg %p105
      %p296 = pneg %p129
      %p297 = pneg %p126
      %p298 = pneg %p150
      %p299 = pneg %p147
      %p300 = pneg %p171
      %p301 = pneg %p168
      %p302 = pneg %p192
      %p303 = pneg %p189
      %p304 = pneg %p218
      %p305 = pneg %p215
      %p306 = scmp.lt.s32.totalorder %s19, 1
      %s307 = scalar_select %p306, %s19, 1
      %s308 = smul.addr %s307, 2
      %s309 = smul.addr %s308, 8
      %s310 = scalar_lea.vmem %s8, %s309
      %p311 = scmp.lt.s32.totalorder %s19, 1
      %s312 = scalar_select %p311, %s19, 1
      %s313 = smul.addr %s312, 4
      %s314 = smul.addr %s313, 8
      %s315 = scalar_lea.vmem %s0, %s314
      %p316 = scmp.lt.s32.totalorder %s19, 1
      %s317 = scalar_select %p316, %s19, 1
      %s318 = smul.addr %s317, 2
      %s319 = smul.addr %s318, 8
      %s320 = scalar_lea.vmem %s1, %s319
      %p321 = scmp.lt.s32.totalorder %s19, 1
      %s322 = scalar_select %p321, %s19, 1
      %s323 = smul.addr %s322, 2
      %s324 = smul.addr %s323, 8
      %s325 = scalar_lea.vmem %s8, %s324
      %v327 = vld [vmem:[%s315] sm:$0xff]
      %v328 = vld [vmem:[%s315 + $0x8] sm:$0xff]
      %v329 = vld [vmem:[%s315 + $0x10] sm:$0xff]
      %v330 = vld [vmem:[%s315 + $0x18] sm:$0xff]
      %v331 = vadd.f32 %v327, %v328
      %332 = vadd.xlane.f32.xlu0 %v331
      %v333 = vpop.xlane.xlu0 %332
      %v334 = vadd.f32 %v329, %v330
      %335 = vadd.xlane.f32.xlu0 %v334
      %v336 = vpop.xlane.xlu0 %335
      %v337 = vmul.f32 %v333, 0.00390625
      %v338 = vmul.f32 %v336, 0.00390625
      %v339 = vld [vmem:[%s2] sm:$0xf]
      %v340 = vld [vmem:[%s3] sm:$0xf]
      %vm341 = vcmask 130048
      %v343 = vsel %vm341, %v339, 0
      %345 = vmatpush.msra.mxu0 0.0
      %346 = vmatpush.msra.mxu0 0.0
      %347 = vmatpush.msra.mxu0 0.0
      %348 = vmatpush.msra.mxu0 0.0
      %349 = vmatpush.msra.mxu0 0.0
      %350 = vmatpush.msra.mxu0 0.0
      %351 = vmatpush.msra.mxu0 0.0
      %352 = vmatpush.msra.mxu0 0.0
      %353 = vmatpush.msra.mxu0 0.0
      %354 = vmatpush.msra.mxu0 0.0
      %355 = vmatpush.msra.mxu0 0.0
      %356 = vmatpush.msra.mxu0 0.0
      %357 = vmatpush.msra.mxu0 0.0
      %358 = vmatpush.msra.mxu0 0.0
      %359 = vmatpush.msra.mxu0 %v338
      %360 = vmatpush.msra.mxu0 %v337
      %361 = vmatmul.f32.gmra.mxu0 %v343
      %v362 = vpop.f32.mrf.mxu0
      %v363 = vadd.f32 %v340, %v362
      %364 = vdwg.mxu0
      %v365 = vmax.f32 %v363, 0.0
      %v366 = vld [vmem:[%s4] sm:$0xff]
      %v367 = vld [vmem:[%s4 + $0x8] sm:$0xff]
      %v368 = vld [vmem:[%s5] sm:$0xff]
      %v369 = vld [vmem:[%s5 + $0x8] sm:$0xff]
      %vm370 = vcmask 31744
      %v372 = vsel %vm370, %v366, 0
      %v375 = vsel %vm370, %v367, 0
      %vm377 = vcmask 1043456
      %v379 = vsel %vm377, %v365, 0
      %381 = vmatpush.msra.mxu0 0.0
      %382 = vmatpush.msra.mxu0 0.0
      %383 = vmatpush.msra.mxu0 0.0
      %384 = vmatpush.msra.mxu0 0.0
      %385 = vmatpush.msra.mxu0 0.0
      %386 = vmatpush.msra.mxu0 0.0
      %387 = vmatpush.msra.mxu0 0.0
      %388 = vmatpush.msra.mxu0 0.0
      %389 = vmatpush.msra.mxu0 0.0
      %390 = vmatpush.msra.mxu0 0.0
      %391 = vmatpush.msra.mxu0 0.0
      %392 = vmatpush.msra.mxu0 0.0
      %393 = vmatpush.msra.mxu0 0.0
      %394 = vmatpush.msra.mxu0 0.0
      %395 = vmatpush.msra.mxu0 0.0
      %396 = vmatpush.msra.mxu0 %v379
      %397 = vmatmul.f32.gmra.mxu0 %v372
      %v398 = vpop.f32.mrf.mxu0
      %v399 = vadd.f32 %v368, %v398
      %400 = vmatmul.f32.gmra.mxu0 %v375
      %v401 = vpop.f32.mrf.mxu0
      %v402 = vadd.f32 %v369, %v401
      %403 = vdwg.mxu0
      %v404 = vxor.u32 %v399, 2147483648
      %v405 = vxor.u32 %v402, 2147483648
      %v406 = vmul.f32 %v404, 1.442695
      %v407 = vpow.pop %v406
      %v408 = vmul.f32 %v405, 1.442695
      %v409 = vpow.pop %v408
      %v410 = vadd.f32 %v407, 1.0
      %v411 = vadd.f32 %v409, 1.0
      %v412 = vrcp.pop %v410
      %v413 = vmul.f32 %v410, %v412
      %v414 = vsub.f32 1.0, %v413
      %v415 = vmul.f32 %v412, %v414
      %v416 = vadd.f32 %v412, %v415
      %vm417 = vweird.f32 %v410
      %vm418 = vweird.f32 %v412
      %vm419 = vmor %vm417, %vm418
      %v420 = vsel %vm419, %v412, %v416
      %v421 = vand.u32 2147483647, %v410
      %vm422 = vcmp.eq.f32.partialorder %v421, 8.507059e+37
      %v423 = vand.u32 %v410, 2147483648
      %v424 = vor.u32 1.1754944e-38, %v423
      %v425 = vsel %vm422, %v424, %v420
      %v426 = vmul.f32 1.0, %v425
      %v427 = vrcp.pop %v411
      %v428 = vmul.f32 %v411, %v427
      %v429 = vsub.f32 1.0, %v428
      %v430 = vmul.f32 %v427, %v429
      %v431 = vadd.f32 %v427, %v430
      %vm432 = vweird.f32 %v411
      %vm433 = vweird.f32 %v427
      %vm434 = vmor %vm432, %vm433
      %v435 = vsel %vm434, %v427, %v431
      %v436 = vand.u32 2147483647, %v411
      %vm437 = vcmp.eq.f32.partialorder %v436, 8.507059e+37
      %v438 = vand.u32 %v411, 2147483648
      %v439 = vor.u32 1.1754944e-38, %v438
      %v440 = vsel %vm437, %v439, %v435
      %v441 = vmul.f32 1.0, %v440
      %443 = vset.pattern.permute.xlu0 0
      %444 = vperm.xlu0 %443, %v426
      %v445 = vpop.permute.xlu0 %444
      %448 = vset.pattern.permute.xlu0 0
      %449 = vperm.xlu0 %448, %v441
      %v450 = vpop.permute.xlu0 %449
      %v452 = vmul.f32 %v327, %v445
      %v453 = vmul.f32 %v328, %v445
      %v454 = vmul.f32 %v329, %v450
      %v455 = vmul.f32 %v330, %v450
      %v456 = vpack.c.bf16 %v454, %v452
      %v457 = vpack.c.bf16 %v455, %v453
      %v458 = vld [vmem:[%s6] sm:$0xf]
      %v459 = vld [vmem:[%s7] sm:$0xff]
      %461 = vset.pattern.permute.xlu0 0
      %462 = vperm.xlu0 %461, %v459
      %v463 = vpop.permute.xlu0 %462
      %v466 = vsel %vm341, %v458, 0
      %468 = vmatpush.bf16.msra.mxu0 0
      %469 = vmatpush.bf16.msra.mxu0 0
      %470 = vmatpush.bf16.msra.mxu0 0
      %471 = vmatpush.bf16.msra.mxu0 0
      %472 = vmatpush.bf16.msra.mxu0 0
      %473 = vmatpush.bf16.msra.mxu0 0
      %474 = vmatpush.bf16.msra.mxu0 0
      %475 = vmatpush.bf16.msra.mxu0 %v456
      %476 = vmatmul.bf16.gmra.mxu0 %v466
      %v477 = vpop.f32.mrf.mxu0
      %v478 = vadd.f32 %v463, %v477
      %v479 = vpop.f32.mrf.mxu0
      %480 = vdwg.mxu0
      %481 = vmatpush.bf16.msra.mxu0 0
      %482 = vmatpush.bf16.msra.mxu0 0
      %483 = vmatpush.bf16.msra.mxu0 0
      %484 = vmatpush.bf16.msra.mxu0 0
      %485 = vmatpush.bf16.msra.mxu0 0
      %486 = vmatpush.bf16.msra.mxu0 0
      %487 = vmatpush.bf16.msra.mxu0 0
      %488 = vmatpush.bf16.msra.mxu0 %v457
      %489 = vmatmul.bf16.gmra.mxu0 %v466
      %v490 = vpop.f32.mrf.mxu0
      %v491 = vadd.f32 %v463, %v490
      %v492 = vpop.f32.mrf.mxu0
      %493 = vdwg.mxu0
      %v494 = vld [vmem:[%s320] sm:$0xff]
      %v495 = vld [vmem:[%s320 + $0x8] sm:$0xff]
      %v496 = vadd.f32 %v478, %v494
      %v497 = vadd.f32 %v491, %v495
      %498 = vst [vmem:[%s325] sm:$0xff] %v496
      %499 = vst [vmem:[%s325 + $0x8] sm:$0xff] %v497
      %p500 = scmp.lt.s32.totalorder %s19, 1
      %s501 = scalar_select %p500, %s19, 1
      %s502 = smul.addr %s501, 2
      %s503 = smul.addr %s502, 8
      %s504 = scalar_lea.vmem %s8, %s503
      // Predicated region
      $region53: #{dfhgb_forward.15} parent=51 // pred_check
        %p505 = pneg %p215
      $region54: #{dfhgb_forward.15} parent=51 // pred_check_branch
        %507 = sbr.rel (%p505) target = $region56
      $region55: #{dfhgb_forward.15} parent=51 // pred_region
        _
      $region56: #{dfhgb_forward.15} parent=51 // pred_fallthru
        _
    $region52: #{dfhgb_forward.15} parent=5 // pred_fallthru
      _
    %p508 = scmp.le.s32.totalorder 2, %s14
    // Predicated region
    $region57: #{dfhgb_forward.15} parent=5 // pred_check
      %p509 = pneg %p508
    $region58: #{dfhgb_forward.15} parent=5 // pred_check_branch
      %511 = sbr.rel (%p509) target = $region60
    $region59: #{dfhgb_forward.15} parent=5 // pred_region
      %s512 = ssub.s32 %s14, 2
      // Predicated region
      $region61: #{dfhgb_forward.15} parent=59 // pred_check
        %p513 = pneg %p221
      $region62: #{dfhgb_forward.15} parent=59 // pred_check_branch
        %515 = sbr.rel (%p513) target = $region64
      $region63: #{dfhgb_forward.15} parent=59 // pred_region
        %p516 = scmp.lt.s32.totalorder %s20, 1
        %s517 = scalar_select %p516, %s20, 1
        %s518 = smul.addr %s517, 2
        %s519 = smul.addr %s518, 8
        %s520 = scalar_lea.vmem %s8, %s519
      $region64: #{dfhgb_forward.15} parent=59 // pred_fallthru
        _
    $region60: #{dfhgb_forward.15} parent=5 // pred_fallthru
      _
  $region6: #{dfhgb_forward.15} parent=0 // loop_footer
    %s18 = sadd.s32 1, %s14
  $region7: #{dfhgb_forward.15} parent=0 // loop_footer_branch
    %13 = sbr.rel target = $region3
  $region8: #{dfhgb_forward.15} parent=0 // loop_exit
    _

</llo_original>
